<compile_context>
chip_gen: v7x
topology: tpu7x:2x2x1
jax: 0.10.0
libtpu: 0.0.40
codegen_flags: <defaults>
</compile_context>

<pallas_src>
import jax
import jax.numpy as jnp
import numpy as np
from jax.experimental import pallas as pl
from jax.experimental.pallas import tpu as pltpu

LANE = 128     # lane tile (last dim)
SUBLANE = 8    # sublane tile (second-to-last dim)


def _round_up(x, m):
    return (x + m - 1) // m * m


# ----------------------------------------------------------------------------
# Fused kernel: conv1 (one lane-dense MXU matmul) -> v1 kept on-chip ->
#               conv2 accumulated over its (static) receptive-field taps.
# ----------------------------------------------------------------------------
def _make_fused_kernel(contribs, cout2_pad):
    """contribs[q] = [(row_in_v1, tap_index_into_w2_stack), ...]  (static)."""

    def kernel(p_ref, w1_ref, b1_ref, w2_ref, b2_ref, o1_ref, o2_ref):
        # conv1: (M1p, K1p) @ (K1p, 128) + (1, 128); padded cols of v1 are exactly 0.
        v1 = jnp.dot(p_ref[...], w1_ref[...],
                     preferred_element_type=jnp.float32) + b1_ref[...]
        o1_ref[...] = v1                      # lane-dense output slab

        # conv2: for each output position, sum v1[row] @ W2[tap] over the taps
        # that fall inside v1.  The row is pulled as an MXU-friendly 8-row slab
        # and only slab-row 0 of the product is kept (rows are in vregs; v1
        # never goes back to HBM).
        rows = []
        for plist in contribs:
            acc = jnp.zeros((1, cout2_pad), jnp.float32)
            for (p, k) in plist:
                prod = jnp.dot(v1[p:p + SUBLANE, :], w2_ref[k],
                               preferred_element_type=jnp.float32)
                acc = acc + prod[0:1, :]
            rows.append(acc + b2_ref[...])
        o2_ref[...] = rows[0] if len(rows) == 1 else jnp.concatenate(rows, axis=0)

    return kernel


# ----------------------------------------------------------------------------
# Wrapper-side glue
# ----------------------------------------------------------------------------
def _im2col(xp, kh, kw, stride, ho, wo):
    """xp: (N, Hp, Wp, Cin) -> (N*ho*wo, kh*kw*Cin), tap order (kh, kw, cin)."""
    n, _, _, cin = xp.shape
    cols = []
    for i in range(kh):
        for j in range(kw):
            cols.append(xp[:, i:i + stride * (ho - 1) + 1:stride,
                            j:j + stride * (wo - 1) + 1:stride, :])
    patches = jnp.stack(cols, axis=3)                 # (N, ho, wo, kh*kw, cin)
    return patches.reshape(n * ho * wo, kh * kw * cin)


def _pad2d(a, rows, cols):
    return jnp.pad(a, ((0, rows - a.shape[0]), (0, cols - a.shape[1])))


def model_forward(x_nchw, params):
    w1, b1 = params["w1"], params["b1"]               # (20,18,9,9), (20,)
    w2, b2 = params["w2"], params["b2"]               # (16,20,7,7), (16,)
    C1o, C1i, KH1, KW1 = w1.shape
    C2o, _, KH2, KW2 = w2.shape
    S1, P1 = 2, 1
    S2, P2 = 3, 2

    N, Cin, H, W = x_nchw.shape
    assert Cin == C1i
    Ho1 = (H + 2 * P1 - KH1) // S1 + 1
    Wo1 = (W + 2 * P1 - KW1) // S1 + 1
    assert Ho1 > 0 and Wo1 > 0, "conv_1 output size must be positive"
    Ho2 = (Ho1 + 2 * P2 - KH2) // S2 + 1
    Wo2 = (Wo1 + 2 * P2 - KW2) // S2 + 1
    assert Ho2 > 0 and Wo2 > 0, "conv_2 output size must be positive"

    M1 = N * Ho1 * Wo1                                # conv1 output rows
    K1 = KH1 * KW1 * C1i                              # conv1 contraction size
    Q = N * Ho2 * Wo2                                 # conv2 output rows
    # Leave >= 7 slack rows so every 8-row slab slice in the kernel is in-bounds.
    M1_PAD = _round_up(M1 + SUBLANE - 1, SUBLANE)
    K1_PAD = _round_up(K1, LANE)
    C1o_PAD = _round_up(C1o, LANE)                    # lane-dense v1 / conv2 K
    C2o_PAD = _round_up(C2o, LANE)                    # lane-dense v2

    # ---- conv1 operands (lane-dense, zero-padded) ---------------------------
    x = jnp.transpose(x_nchw, (0, 2, 3, 1)).astype(jnp.float32)        # NHWC
    xp = jnp.pad(x, ((0, 0), (P1, P1), (P1, P1), (0, 0)))
    # TODO(synk): at larger batch, build im2col patches inside the kernel
    # instead of materializing them through XLA/HBM.
    patches_p = _pad2d(_im2col(xp, KH1, KW1, S1, Ho1, Wo1), M1_PAD, K1_PAD)
    w1_mat = jnp.transpose(w1, (2, 3, 1, 0)).reshape(K1, C1o)          # (K1, 20)
    w1_p = _pad2d(w1_mat, K1_PAD, C1o_PAD)
    b1_p = _pad2d(b1.reshape(1, C1o), 1, C1o_PAD)

    # ---- conv2: static receptive-field map + per-tap weight stack -----------
    contribs, used_taps = [], []
    for n in range(N):
        for oy in range(Ho2):
            for ox in range(Wo2):
                plist = []
                for kh in range(KH2):
                    for kw in range(KW2):
                        ih = oy * S2 + kh - P2
                        iw = ox * S2 + kw - P2
                        if 0 <= ih < Ho1 and 0 <= iw < Wo1:
                            tap = kh * KW2 + kw
                            if tap not in used_taps:
                                used_taps.append(tap)
                            p = (n * Ho1 + ih) * Wo1 + iw
                            plist.append((p, used_taps.index(tap)))
                contribs.append(plist)
    mats = []
    for tap in used_taps:
        kh, kw = divmod(tap, KW2)
        m = jnp.transpose(w2[:, :, kh, kw], (1, 0))                    # (C1o, C2o)
        mats.append(_pad2d(m, C1o_PAD, C2o_PAD))
    w2_stack = jnp.stack(mats, axis=0)                                 # (NK,128,128)
    b2_p = _pad2d(b2.reshape(1, C2o), 1, C2o_PAD)

    kernel = _make_fused_kernel(contribs, C2o_PAD)
    out1_p, out2_p = pl.pallas_call(
        kernel,
        out_shape=(jax.ShapeDtypeStruct((M1_PAD, C1o_PAD), jnp.float32),
                   jax.ShapeDtypeStruct((Q, C2o_PAD), jnp.float32)),
        grid=(1,),
        in_specs=[
            pl.BlockSpec((M1_PAD, K1_PAD), lambda i: (0, 0)),
            pl.BlockSpec((K1_PAD, C1o_PAD), lambda i: (0, 0)),
            pl.BlockSpec((1, C1o_PAD), lambda i: (0, 0)),
            pl.BlockSpec((len(used_taps), C1o_PAD, C2o_PAD), lambda i: (0, 0, 0)),
            pl.BlockSpec((1, C2o_PAD), lambda i: (0, 0)),
        ],
        out_specs=(pl.BlockSpec((M1_PAD, C1o_PAD), lambda i: (0, 0)),
                   pl.BlockSpec((Q, C2o_PAD), lambda i: (0, 0))),
        compiler_params=pltpu.CompilerParams(dimension_semantics=("arbitrary",)),
    )(patches_p, w1_p, b1_p, w2_stack, b2_p)

    v1 = out1_p[:M1, :C1o].reshape(N, Ho1, Wo1, C1o)
    v2 = out2_p[:Q, :C2o].reshape(N, Ho2, Wo2, C2o)
    v1_nchw = jnp.transpose(v1, (0, 3, 1, 2))
    v2_nchw = jnp.transpose(v2, (0, 3, 1, 2))

    # Reference computes v3 = v1 + v2, which is shape-invalid for this module
    # (20 vs 16 channels) and raises in PyTorch.  If shapes ever broadcast, add;
    # otherwise return both conv outputs.
    try:
        jnp.broadcast_shapes(v1_nchw.shape, v2_nchw.shape)
        broadcastable = True
    except ValueError:
        broadcastable = False
    if broadcastable:
        # TODO(synk): fold the add into the fused kernel if this path becomes reachable.
        return (v1_nchw + v2_nchw,)
    return (v1_nchw, v2_nchw)


# ----------------------------------------------------------------------------
# Parameters (deterministic, PyTorch-default-style kaiming-uniform bounds)
# ----------------------------------------------------------------------------
def init_params(key):
    def conv_init(key, cout, cin, k):
        kw_, kb_ = jax.random.split(key)
        fan_in = cin * k * k
        bound = 1.0 / jnp.sqrt(fan_in)
        w = jax.random.uniform(kw_, (cout, cin, k, k), jnp.float32, -bound, bound)
        b = jax.random.uniform(kb_, (cout,), jnp.float32, -bound, bound)
        return w, b

    k1, k2 = jax.random.split(key)
    w1, b1 = conv_init(k1, 20, 18, 9)
    w2, b2 = conv_init(k2, 16, 20, 7)
    return {"w1": w1, "b1": b1, "w2": w2, "b2": b2}


if __name__ == "__main__":
    key = jax.random.PRNGKey(0)
    kx, kp = jax.random.split(key)
    # Channels must be 18 (module contract); spatial chosen so both convs are
    # valid (the original 3x9 spatial makes conv_1's output size negative).
    x1 = jax.random.normal(kx, (1, 18, 16, 16), jnp.float32)
    params = init_params(kp)

    fwd = jax.jit(model_forward)
    outs = jax.block_until_ready(fwd(x1, params))      # v1: (1,20,5,5), v2: (1,16,1,1)

    # Light correctness check against XLA's own conv path.
    v1_ref = jax.lax.conv_general_dilated(
        x1, params["w1"], (2, 2), [(1, 1), (1, 1)],
        dimension_numbers=("NCHW", "OIHW", "NCHW")) + params["b1"][None, :, None, None]
    v2_ref = jax.lax.conv_general_dilated(
        v1_ref, params["w2"], (3, 3), [(2, 2), (2, 2)],
        dimension_numbers=("NCHW", "OIHW", "NCHW")) + params["b2"][None, :, None, None]
    np.testing.assert_allclose(np.asarray(outs[0]), np.asarray(v1_ref), rtol=5e-2, atol=5e-2)
    np.testing.assert_allclose(np.asarray(outs[1]), np.asarray(v2_ref), rtol=5e-2, atol=5e-2)

    print("KERNEL_OK")
</pallas_src>

<mosaic_0001>
module attributes {stable_mosaic.version = 11 : i64} {
  func.func @kernel(%arg0: i32, %arg1: memref<32x1536xf32, #tpu.memory_space<vmem>>, %arg2: memref<1536x128xf32, #tpu.memory_space<vmem>>, %arg3: memref<1x128xf32, #tpu.memory_space<vmem>>, %arg4: memref<25x128x128xf32, #tpu.memory_space<vmem>>, %arg5: memref<1x128xf32, #tpu.memory_space<vmem>>, %arg6: memref<32x128xf32, #tpu.memory_space<vmem>>, %arg7: memref<1x128xf32, #tpu.memory_space<vmem>>) attributes {dimension_semantics = [#tpu.dimension_semantics<arbitrary>], iteration_bounds = array<i64: 1>, scalar_prefetch = 0 : i64, scratch_operands = 0 : i64, tpu.core_type = #tpu.core_type<tc>, window_params = [{pipeline_mode = #tpu.pipeline_mode<synchronous>, transform_indices = @transform_0, window_bounds = array<i64: 32, 1536>}, {pipeline_mode = #tpu.pipeline_mode<synchronous>, transform_indices = @transform_1, window_bounds = array<i64: 1536, 128>}, {pipeline_mode = #tpu.pipeline_mode<synchronous>, transform_indices = @transform_2, window_bounds = array<i64: 1, 128>}, {pipeline_mode = #tpu.pipeline_mode<synchronous>, transform_indices = @transform_3, window_bounds = array<i64: 25, 128, 128>}, {pipeline_mode = #tpu.pipeline_mode<synchronous>, transform_indices = @transform_4, window_bounds = array<i64: 1, 128>}, {pipeline_mode = #tpu.pipeline_mode<synchronous>, transform_indices = @transform_5, window_bounds = array<i64: 32, 128>}, {pipeline_mode = #tpu.pipeline_mode<synchronous>, transform_indices = @transform_6, window_bounds = array<i64: 1, 128>}]} {
    %c0 = arith.constant 0 : index
    %c0_0 = arith.constant 0 : index
    %0 = vector.load %arg1[%c0, %c0_0] : memref<32x1536xf32, #tpu.memory_space<vmem>>, vector<32x1536xf32>
    %c0_1 = arith.constant 0 : index
    %c0_2 = arith.constant 0 : index
    %1 = vector.load %arg2[%c0_1, %c0_2] : memref<1536x128xf32, #tpu.memory_space<vmem>>, vector<1536x128xf32>
    %cst = arith.constant dense<0.000000e+00> : vector<32x128xf32>
    %2 = tpu.matmul %0, %1, %cst {dimension_numbers = #tpu.dot_dimension_numbers<[1], [0], [0], [1], [0, 0, 1, 1], [], []>} : vector<32x1536xf32>, vector<1536x128xf32>, vector<32x128xf32> -> vector<32x128xf32>
    %c0_3 = arith.constant 0 : index
    %c0_4 = arith.constant 0 : index
    %3 = vector.load %arg3[%c0_3, %c0_4] : memref<1x128xf32, #tpu.memory_space<vmem>>, vector<1x128xf32>
    %4 = vector.broadcast %3 : vector<1x128xf32> to vector<32x128xf32>
    %5 = arith.addf %2, %4 : vector<32x128xf32>
    %c0_5 = arith.constant 0 : index
    %c0_6 = arith.constant 0 : index
    %6 = vector.load %arg6[%c0_5, %c0_6] : memref<32x128xf32, #tpu.memory_space<vmem>>, vector<32x128xf32>
    tpu.vector_store %arg6[%c0_5, %c0_6], %5 {strides = array<i32>} : memref<32x128xf32, #tpu.memory_space<vmem>>, vector<32x128xf32>,
    %cst_7 = arith.constant 0.000000e+00 : f32
    %7 = vector.broadcast %cst_7 : f32 to vector<1x128xf32>
    %8 = vector.extract_strided_slice %5 {offsets = [0, 0], sizes = [8, 128], strides = [1, 1]} : vector<32x128xf32> to vector<8x128xf32>
    %c0_8 = arith.constant 0 : index
    %c0_9 = arith.constant 0 : index
    %c0_10 = arith.constant 0 : index
    %9 = vector.load %arg4[%c0_8, %c0_9, %c0_10] : memref<25x128x128xf32, #tpu.memory_space<vmem>>, vector<1x128x128xf32>
    %10 = vector.shape_cast %9 : vector<1x128x128xf32> to vector<128x128xf32>
    %cst_11 = arith.constant dense<0.000000e+00> : vector<8x128xf32>
    %11 = tpu.matmul %8, %10, %cst_11 {dimension_numbers = #tpu.dot_dimension_numbers<[1], [0], [0], [1], [0, 0, 1, 1], [], []>} : vector<8x128xf32>, vector<128x128xf32>, vector<8x128xf32> -> vector<8x128xf32>
    %12 = vector.extract_strided_slice %11 {offsets = [0, 0], sizes = [1, 128], strides = [1, 1]} : vector<8x128xf32> to vector<1x128xf32>
    %13 = arith.addf %7, %12 : vector<1x128xf32>
    %14 = vector.extract_strided_slice %5 {offsets = [1, 0], sizes = [8, 128], strides = [1, 1]} : vector<32x128xf32> to vector<8x128xf32>
    %c1 = arith.constant 1 : index
    %c0_12 = arith.constant 0 : index
    %c0_13 = arith.constant 0 : index
    %15 = vector.load %arg4[%c1, %c0_12, %c0_13] : memref<25x128x128xf32, #tpu.memory_space<vmem>>, vector<1x128x128xf32>
    %16 = vector.shape_cast %15 : vector<1x128x128xf32> to vector<128x128xf32>
    %cst_14 = arith.constant dense<0.000000e+00> : vector<8x128xf32>
    %17 = tpu.matmul %14, %16, %cst_14 {dimension_numbers = #tpu.dot_dimension_numbers<[1], [0], [0], [1], [0, 0, 1, 1], [], []>} : vector<8x128xf32>, vector<128x128xf32>, vector<8x128xf32> -> vector<8x128xf32>
    %18 = vector.extract_strided_slice %17 {offsets = [0, 0], sizes = [1, 128], strides = [1, 1]} : vector<8x128xf32> to vector<1x128xf32>
    %19 = arith.addf %13, %18 : vector<1x128xf32>
    %20 = vector.extract_strided_slice %5 {offsets = [2, 0], sizes = [8, 128], strides = [1, 1]} : vector<32x128xf32> to vector<8x128xf32>
    %c2 = arith.constant 2 : index
    %c0_15 = arith.constant 0 : index
    %c0_16 = arith.constant 0 : index
    %21 = vector.load %arg4[%c2, %c0_15, %c0_16] : memref<25x128x128xf32, #tpu.memory_space<vmem>>, vector<1x128x128xf32>
    %22 = vector.shape_cast %21 : vector<1x128x128xf32> to vector<128x128xf32>
    %cst_17 = arith.constant dense<0.000000e+00> : vector<8x128xf32>
    %23 = tpu.matmul %20, %22, %cst_17 {dimension_numbers = #tpu.dot_dimension_numbers<[1], [0], [0], [1], [0, 0, 1, 1], [], []>} : vector<8x128xf32>, vector<128x128xf32>, vector<8x128xf32> -> vector<8x128xf32>
    %24 = vector.extract_strided_slice %23 {offsets = [0, 0], sizes = [1, 128], strides = [1, 1]} : vector<8x128xf32> to vector<1x128xf32>
    %25 = arith.addf %19, %24 : vector<1x128xf32>
    %26 = vector.extract_strided_slice %5 {offsets = [3, 0], sizes = [8, 128], strides = [1, 1]} : vector<32x128xf32> to vector<8x128xf32>
    %c3 = arith.constant 3 : index
    %c0_18 = arith.constant 0 : index
    %c0_19 = arith.constant 0 : index
    %27 = vector.load %arg4[%c3, %c0_18, %c0_19] : memref<25x128x128xf32, #tpu.memory_space<vmem>>, vector<1x128x128xf32>
    %28 = vector.shape_cast %27 : vector<1x128x128xf32> to vector<128x128xf32>
    %cst_20 = arith.constant dense<0.000000e+00> : vector<8x128xf32>
    %29 = tpu.matmul %26, %28, %cst_20 {dimension_numbers = #tpu.dot_dimension_numbers<[1], [0], [0], [1], [0, 0, 1, 1], [], []>} : vector<8x128xf32>, vector<128x128xf32>, vector<8x128xf32> -> vector<8x128xf32>
    %30 = vector.extract_strided_slice %29 {offsets = [0, 0], sizes = [1, 128], strides = [1, 1]} : vector<8x128xf32> to vector<1x128xf32>
    %31 = arith.addf %25, %30 : vector<1x128xf32>
    %32 = vector.extract_strided_slice %5 {offsets = [4, 0], sizes = [8, 128], strides = [1, 1]} : vector<32x128xf32> to vector<8x128xf32>
    %c4 = arith.constant 4 : index
    %c0_21 = arith.constant 0 : index
    %c0_22 = arith.constant 0 : index
    %33 = vector.load %arg4[%c4, %c0_21, %c0_22] : memref<25x128x128xf32, #tpu.memory_space<vmem>>, vector<1x128x128xf32>
    %34 = vector.shape_cast %33 : vector<1x128x128xf32> to vector<128x128xf32>
    %cst_23 = arith.constant dense<0.000000e+00> : vector<8x128xf32>
    %35 = tpu.matmul %32, %34, %cst_23 {dimension_numbers = #tpu.dot_dimension_numbers<[1], [0], [0], [1], [0, 0, 1, 1], [], []>} : vector<8x128xf32>, vector<128x128xf32>, vector<8x128xf32> -> vector<8x128xf32>
    %36 = vector.extract_strided_slice %35 {offsets = [0, 0], sizes = [1, 128], strides = [1, 1]} : vector<8x128xf32> to vector<1x128xf32>
    %37 = arith.addf %31, %36 : vector<1x128xf32>
    %38 = vector.extract_strided_slice %5 {offsets = [5, 0], sizes = [8, 128], strides = [1, 1]} : vector<32x128xf32> to vector<8x128xf32>
    %c5 = arith.constant 5 : index
    %c0_24 = arith.constant 0 : index
    %c0_25 = arith.constant 0 : index
    %39 = vector.load %arg4[%c5, %c0_24, %c0_25] : memref<25x128x128xf32, #tpu.memory_space<vmem>>, vector<1x128x128xf32>
    %40 = vector.shape_cast %39 : vector<1x128x128xf32> to vector<128x128xf32>
    %cst_26 = arith.constant dense<0.000000e+00> : vector<8x128xf32>
    %41 = tpu.matmul %38, %40, %cst_26 {dimension_numbers = #tpu.dot_dimension_numbers<[1], [0], [0], [1], [0, 0, 1, 1], [], []>} : vector<8x128xf32>, vector<128x128xf32>, vector<8x128xf32> -> vector<8x128xf32>
    %42 = vector.extract_strided_slice %41 {offsets = [0, 0], sizes = [1, 128], strides = [1, 1]} : vector<8x128xf32> to vector<1x128xf32>
    %43 = arith.addf %37, %42 : vector<1x128xf32>
    %44 = vector.extract_strided_slice %5 {offsets = [6, 0], sizes = [8, 128], strides = [1, 1]} : vector<32x128xf32> to vector<8x128xf32>
    %c6 = arith.constant 6 : index
    %c0_27 = arith.constant 0 : index
    %c0_28 = arith.constant 0 : index
    %45 = vector.load %arg4[%c6, %c0_27, %c0_28] : memref<25x128x128xf32, #tpu.memory_space<vmem>>, vector<1x128x128xf32>
    %46 = vector.shape_cast %45 : vector<1x128x128xf32> to vector<128x128xf32>
    %cst_29 = arith.constant dense<0.000000e+00> : vector<8x128xf32>
    %47 = tpu.matmul %44, %46, %cst_29 {dimension_numbers = #tpu.dot_dimension_numbers<[1], [0], [0], [1], [0, 0, 1, 1], [], []>} : vector<8x128xf32>, vector<128x128xf32>, vector<8x128xf32> -> vector<8x128xf32>
    %48 = vector.extract_strided_slice %47 {offsets = [0, 0], sizes = [1, 128], strides = [1, 1]} : vector<8x128xf32> to vector<1x128xf32>
    %49 = arith.addf %43, %48 : vector<1x128xf32>
    %50 = vector.extract_strided_slice %5 {offsets = [7, 0], sizes = [8, 128], strides = [1, 1]} : vector<32x128xf32> to vector<8x128xf32>
    %c7 = arith.constant 7 : index
    %c0_30 = arith.constant 0 : index
    %c0_31 = arith.constant 0 : index
    %51 = vector.load %arg4[%c7, %c0_30, %c0_31] : memref<25x128x128xf32, #tpu.memory_space<vmem>>, vector<1x128x128xf32>
    %52 = vector.shape_cast %51 : vector<1x128x128xf32> to vector<128x128xf32>
    %cst_32 = arith.constant dense<0.000000e+00> : vector<8x128xf32>
    %53 = tpu.matmul %50, %52, %cst_32 {dimension_numbers = #tpu.dot_dimension_numbers<[1], [0], [0], [1], [0, 0, 1, 1], [], []>} : vector<8x128xf32>, vector<128x128xf32>, vector<8x128xf32> -> vector<8x128xf32>
    %54 = vector.extract_strided_slice %53 {offsets = [0, 0], sizes = [1, 128], strides = [1, 1]} : vector<8x128xf32> to vector<1x128xf32>
    %55 = arith.addf %49, %54 : vector<1x128xf32>
    %56 = vector.extract_strided_slice %5 {offsets = [8, 0], sizes = [8, 128], strides = [1, 1]} : vector<32x128xf32> to vector<8x128xf32>
    %c8 = arith.constant 8 : index
    %c0_33 = arith.constant 0 : index
    %c0_34 = arith.constant 0 : index
    %57 = vector.load %arg4[%c8, %c0_33, %c0_34] : memref<25x128x128xf32, #tpu.memory_space<vmem>>, vector<1x128x128xf32>
    %58 = vector.shape_cast %57 : vector<1x128x128xf32> to vector<128x128xf32>
    %cst_35 = arith.constant dense<0.000000e+00> : vector<8x128xf32>
    %59 = tpu.matmul %56, %58, %cst_35 {dimension_numbers = #tpu.dot_dimension_numbers<[1], [0], [0], [1], [0, 0, 1, 1], [], []>} : vector<8x128xf32>, vector<128x128xf32>, vector<8x128xf32> -> vector<8x128xf32>
    %60 = vector.extract_strided_slice %59 {offsets = [0, 0], sizes = [1, 128], strides = [1, 1]} : vector<8x128xf32> to vector<1x128xf32>
    %61 = arith.addf %55, %60 : vector<1x128xf32>
    %62 = vector.extract_strided_slice %5 {offsets = [9, 0], sizes = [8, 128], strides = [1, 1]} : vector<32x128xf32> to vector<8x128xf32>
    %c9 = arith.constant 9 : index
    %c0_36 = arith.constant 0 : index
    %c0_37 = arith.constant 0 : index
    %63 = vector.load %arg4[%c9, %c0_36, %c0_37] : memref<25x128x128xf32, #tpu.memory_space<vmem>>, vector<1x128x128xf32>
    %64 = vector.shape_cast %63 : vector<1x128x128xf32> to vector<128x128xf32>
    %cst_38 = arith.constant dense<0.000000e+00> : vector<8x128xf32>
    %65 = tpu.matmul %62, %64, %cst_38 {dimension_numbers = #tpu.dot_dimension_numbers<[1], [0], [0], [1], [0, 0, 1, 1], [], []>} : vector<8x128xf32>, vector<128x128xf32>, vector<8x128xf32> -> vector<8x128xf32>
    %66 = vector.extract_strided_slice %65 {offsets = [0, 0], sizes = [1, 128], strides = [1, 1]} : vector<8x128xf32> to vector<1x128xf32>
    %67 = arith.addf %61, %66 : vector<1x128xf32>
    %68 = vector.extract_strided_slice %5 {offsets = [10, 0], sizes = [8, 128], strides = [1, 1]} : vector<32x128xf32> to vector<8x128xf32>
    %c10 = arith.constant 10 : index
    %c0_39 = arith.constant 0 : index
    %c0_40 = arith.constant 0 : index
    %69 = vector.load %arg4[%c10, %c0_39, %c0_40] : memref<25x128x128xf32, #tpu.memory_space<vmem>>, vector<1x128x128xf32>
    %70 = vector.shape_cast %69 : vector<1x128x128xf32> to vector<128x128xf32>
    %cst_41 = arith.constant dense<0.000000e+00> : vector<8x128xf32>
    %71 = tpu.matmul %68, %70, %cst_41 {dimension_numbers = #tpu.dot_dimension_numbers<[1], [0], [0], [1], [0, 0, 1, 1], [], []>} : vector<8x128xf32>, vector<128x128xf32>, vector<8x128xf32> -> vector<8x128xf32>
    %72 = vector.extract_strided_slice %71 {offsets = [0, 0], sizes = [1, 128], strides = [1, 1]} : vector<8x128xf32> to vector<1x128xf32>
    %73 = arith.addf %67, %72 : vector<1x128xf32>
    %74 = vector.extract_strided_slice %5 {offsets = [11, 0], sizes = [8, 128], strides = [1, 1]} : vector<32x128xf32> to vector<8x128xf32>
    %c11 = arith.constant 11 : index
    %c0_42 = arith.constant 0 : index
    %c0_43 = arith.constant 0 : index
    %75 = vector.load %arg4[%c11, %c0_42, %c0_43] : memref<25x128x128xf32, #tpu.memory_space<vmem>>, vector<1x128x128xf32>
    %76 = vector.shape_cast %75 : vector<1x128x128xf32> to vector<128x128xf32>
    %cst_44 = arith.constant dense<0.000000e+00> : vector<8x128xf32>
    %77 = tpu.matmul %74, %76, %cst_44 {dimension_numbers = #tpu.dot_dimension_numbers<[1], [0], [0], [1], [0, 0, 1, 1], [], []>} : vector<8x128xf32>, vector<128x128xf32>, vector<8x128xf32> -> vector<8x128xf32>
    %78 = vector.extract_strided_slice %77 {offsets = [0, 0], sizes = [1, 128], strides = [1, 1]} : vector<8x128xf32> to vector<1x128xf32>
    %79 = arith.addf %73, %78 : vector<1x128xf32>
    %80 = vector.extract_strided_slice %5 {offsets = [12, 0], sizes = [8, 128], strides = [1, 1]} : vector<32x128xf32> to vector<8x128xf32>
    %c12 = arith.constant 12 : index
    %c0_45 = arith.constant 0 : index
    %c0_46 = arith.constant 0 : index
    %81 = vector.load %arg4[%c12, %c0_45, %c0_46] : memref<25x128x128xf32, #tpu.memory_space<vmem>>, vector<1x128x128xf32>
    %82 = vector.shape_cast %81 : vector<1x128x128xf32> to vector<128x128xf32>
    %cst_47 = arith.constant dense<0.000000e+00> : vector<8x128xf32>
    %83 = tpu.matmul %80, %82, %cst_47 {dimension_numbers = #tpu.dot_dimension_numbers<[1], [0], [0], [1], [0, 0, 1, 1], [], []>} : vector<8x128xf32>, vector<128x128xf32>, vector<8x128xf32> -> vector<8x128xf32>
    %84 = vector.extract_strided_slice %83 {offsets = [0, 0], sizes = [1, 128], strides = [1, 1]} : vector<8x128xf32> to vector<1x128xf32>
    %85 = arith.addf %79, %84 : vector<1x128xf32>
    %86 = vector.extract_strided_slice %5 {offsets = [13, 0], sizes = [8, 128], strides = [1, 1]} : vector<32x128xf32> to vector<8x128xf32>
    %c13 = arith.constant 13 : index
    %c0_48 = arith.constant 0 : index
    %c0_49 = arith.constant 0 : index
    %87 = vector.load %arg4[%c13, %c0_48, %c0_49] : memref<25x128x128xf32, #tpu.memory_space<vmem>>, vector<1x128x128xf32>
    %88 = vector.shape_cast %87 : vector<1x128x128xf32> to vector<128x128xf32>
    %cst_50 = arith.constant dense<0.000000e+00> : vector<8x128xf32>
    %89 = tpu.matmul %86, %88, %cst_50 {dimension_numbers = #tpu.dot_dimension_numbers<[1], [0], [0], [1], [0, 0, 1, 1], [], []>} : vector<8x128xf32>, vector<128x128xf32>, vector<8x128xf32> -> vector<8x128xf32>
    %90 = vector.extract_strided_slice %89 {offsets = [0, 0], sizes = [1, 128], strides = [1, 1]} : vector<8x128xf32> to vector<1x128xf32>
    %91 = arith.addf %85, %90 : vector<1x128xf32>
    %92 = vector.extract_strided_slice %5 {offsets = [14, 0], sizes = [8, 128], strides = [1, 1]} : vector<32x128xf32> to vector<8x128xf32>
    %c14 = arith.constant 14 : index
    %c0_51 = arith.constant 0 : index
    %c0_52 = arith.constant 0 : index
    %93 = vector.load %arg4[%c14, %c0_51, %c0_52] : memref<25x128x128xf32, #tpu.memory_space<vmem>>, vector<1x128x128xf32>
    %94 = vector.shape_cast %93 : vector<1x128x128xf32> to vector<128x128xf32>
    %cst_53 = arith.constant dense<0.000000e+00> : vector<8x128xf32>
    %95 = tpu.matmul %92, %94, %cst_53 {dimension_numbers = #tpu.dot_dimension_numbers<[1], [0], [0], [1], [0, 0, 1, 1], [], []>} : vector<8x128xf32>, vector<128x128xf32>, vector<8x128xf32> -> vector<8x128xf32>
    %96 = vector.extract_strided_slice %95 {offsets = [0, 0], sizes = [1, 128], strides = [1, 1]} : vector<8x128xf32> to vector<1x128xf32>
    %97 = arith.addf %91, %96 : vector<1x128xf32>
    %98 = vector.extract_strided_slice %5 {offsets = [15, 0], sizes = [8, 128], strides = [1, 1]} : vector<32x128xf32> to vector<8x128xf32>
    %c15 = arith.constant 15 : index
    %c0_54 = arith.constant 0 : index
    %c0_55 = arith.constant 0 : index
    %99 = vector.load %arg4[%c15, %c0_54, %c0_55] : memref<25x128x128xf32, #tpu.memory_space<vmem>>, vector<1x128x128xf32>
    %100 = vector.shape_cast %99 : vector<1x128x128xf32> to vector<128x128xf32>
    %cst_56 = arith.constant dense<0.000000e+00> : vector<8x128xf32>
    %101 = tpu.matmul %98, %100, %cst_56 {dimension_numbers = #tpu.dot_dimension_numbers<[1], [0], [0], [1], [0, 0, 1, 1], [], []>} : vector<8x128xf32>, vector<128x128xf32>, vector<8x128xf32> -> vector<8x128xf32>
    %102 = vector.extract_strided_slice %101 {offsets = [0, 0], sizes = [1, 128], strides = [1, 1]} : vector<8x128xf32> to vector<1x128xf32>
    %103 = arith.addf %97, %102 : vector<1x128xf32>
    %104 = vector.extract_strided_slice %5 {offsets = [16, 0], sizes = [8, 128], strides = [1, 1]} : vector<32x128xf32> to vector<8x128xf32>
    %c16 = arith.constant 16 : index
    %c0_57 = arith.constant 0 : index
    %c0_58 = arith.constant 0 : index
    %105 = vector.load %arg4[%c16, %c0_57, %c0_58] : memref<25x128x128xf32, #tpu.memory_space<vmem>>, vector<1x128x128xf32>
    %106 = vector.shape_cast %105 : vector<1x128x128xf32> to vector<128x128xf32>
    %cst_59 = arith.constant dense<0.000000e+00> : vector<8x128xf32>
    %107 = tpu.matmul %104, %106, %cst_59 {dimension_numbers = #tpu.dot_dimension_numbers<[1], [0], [0], [1], [0, 0, 1, 1], [], []>} : vector<8x128xf32>, vector<128x128xf32>, vector<8x128xf32> -> vector<8x128xf32>
    %108 = vector.extract_strided_slice %107 {offsets = [0, 0], sizes = [1, 128], strides = [1, 1]} : vector<8x128xf32> to vector<1x128xf32>
    %109 = arith.addf %103, %108 : vector<1x128xf32>
    %110 = vector.extract_strided_slice %5 {offsets = [17, 0], sizes = [8, 128], strides = [1, 1]} : vector<32x128xf32> to vector<8x128xf32>
    %c17 = arith.constant 17 : index
    %c0_60 = arith.constant 0 : index
    %c0_61 = arith.constant 0 : index
    %111 = vector.load %arg4[%c17, %c0_60, %c0_61] : memref<25x128x128xf32, #tpu.memory_space<vmem>>, vector<1x128x128xf32>
    %112 = vector.shape_cast %111 : vector<1x128x128xf32> to vector<128x128xf32>
    %cst_62 = arith.constant dense<0.000000e+00> : vector<8x128xf32>
    %113 = tpu.matmul %110, %112, %cst_62 {dimension_numbers = #tpu.dot_dimension_numbers<[1], [0], [0], [1], [0, 0, 1, 1], [], []>} : vector<8x128xf32>, vector<128x128xf32>, vector<8x128xf32> -> vector<8x128xf32>
    %114 = vector.extract_strided_slice %113 {offsets = [0, 0], sizes = [1, 128], strides = [1, 1]} : vector<8x128xf32> to vector<1x128xf32>
    %115 = arith.addf %109, %114 : vector<1x128xf32>
    %116 = vector.extract_strided_slice %5 {offsets = [18, 0], sizes = [8, 128], strides = [1, 1]} : vector<32x128xf32> to vector<8x128xf32>
    %c18 = arith.constant 18 : index
    %c0_63 = arith.constant 0 : index
    %c0_64 = arith.constant 0 : index
    %117 = vector.load %arg4[%c18, %c0_63, %c0_64] : memref<25x128x128xf32, #tpu.memory_space<vmem>>, vector<1x128x128xf32>
    %118 = vector.shape_cast %117 : vector<1x128x128xf32> to vector<128x128xf32>
    %cst_65 = arith.constant dense<0.000000e+00> : vector<8x128xf32>
    %119 = tpu.matmul %116, %118, %cst_65 {dimension_numbers = #tpu.dot_dimension_numbers<[1], [0], [0], [1], [0, 0, 1, 1], [], []>} : vector<8x128xf32>, vector<128x128xf32>, vector<8x128xf32> -> vector<8x128xf32>
    %120 = vector.extract_strided_slice %119 {offsets = [0, 0], sizes = [1, 128], strides = [1, 1]} : vector<8x128xf32> to vector<1x128xf32>
    %121 = arith.addf %115, %120 : vector<1x128xf32>
    %122 = vector.extract_strided_slice %5 {offsets = [19, 0], sizes = [8, 128], strides = [1, 1]} : vector<32x128xf32> to vector<8x128xf32>
    %c19 = arith.constant 19 : index
    %c0_66 = arith.constant 0 : index
    %c0_67 = arith.constant 0 : index
    %123 = vector.load %arg4[%c19, %c0_66, %c0_67] : memref<25x128x128xf32, #tpu.memory_space<vmem>>, vector<1x128x128xf32>
    %124 = vector.shape_cast %123 : vector<1x128x128xf32> to vector<128x128xf32>
    %cst_68 = arith.constant dense<0.000000e+00> : vector<8x128xf32>
    %125 = tpu.matmul %122, %124, %cst_68 {dimension_numbers = #tpu.dot_dimension_numbers<[1], [0], [0], [1], [0, 0, 1, 1], [], []>} : vector<8x128xf32>, vector<128x128xf32>, vector<8x128xf32> -> vector<8x128xf32>
    %126 = vector.extract_strided_slice %125 {offsets = [0, 0], sizes = [1, 128], strides = [1, 1]} : vector<8x128xf32> to vector<1x128xf32>
    %127 = arith.addf %121, %126 : vector<1x128xf32>
    %128 = vector.extract_strided_slice %5 {offsets = [20, 0], sizes = [8, 128], strides = [1, 1]} : vector<32x128xf32> to vector<8x128xf32>
    %c20 = arith.constant 20 : index
    %c0_69 = arith.constant 0 : index
    %c0_70 = arith.constant 0 : index
    %129 = vector.load %arg4[%c20, %c0_69, %c0_70] : memref<25x128x128xf32, #tpu.memory_space<vmem>>, vector<1x128x128xf32>
    %130 = vector.shape_cast %129 : vector<1x128x128xf32> to vector<128x128xf32>
    %cst_71 = arith.constant dense<0.000000e+00> : vector<8x128xf32>
    %131 = tpu.matmul %128, %130, %cst_71 {dimension_numbers = #tpu.dot_dimension_numbers<[1], [0], [0], [1], [0, 0, 1, 1], [], []>} : vector<8x128xf32>, vector<128x128xf32>, vector<8x128xf32> -> vector<8x128xf32>
    %132 = vector.extract_strided_slice %131 {offsets = [0, 0], sizes = [1, 128], strides = [1, 1]} : vector<8x128xf32> to vector<1x128xf32>
    %133 = arith.addf %127, %132 : vector<1x128xf32>
    %134 = vector.extract_strided_slice %5 {offsets = [21, 0], sizes = [8, 128], strides = [1, 1]} : vector<32x128xf32> to vector<8x128xf32>
    %c21 = arith.constant 21 : index
    %c0_72 = arith.constant 0 : index
    %c0_73 = arith.constant 0 : index
    %135 = vector.load %arg4[%c21, %c0_72, %c0_73] : memref<25x128x128xf32, #tpu.memory_space<vmem>>, vector<1x128x128xf32>
    %136 = vector.shape_cast %135 : vector<1x128x128xf32> to vector<128x128xf32>
    %cst_74 = arith.constant dense<0.000000e+00> : vector<8x128xf32>
    %137 = tpu.matmul %134, %136, %cst_74 {dimension_numbers = #tpu.dot_dimension_numbers<[1], [0], [0], [1], [0, 0, 1, 1], [], []>} : vector<8x128xf32>, vector<128x128xf32>, vector<8x128xf32> -> vector<8x128xf32>
    %138 = vector.extract_strided_slice %137 {offsets = [0, 0], sizes = [1, 128], strides = [1, 1]} : vector<8x128xf32> to vector<1x128xf32>
    %139 = arith.addf %133, %138 : vector<1x128xf32>
    %140 = vector.extract_strided_slice %5 {offsets = [22, 0], sizes = [8, 128], strides = [1, 1]} : vector<32x128xf32> to vector<8x128xf32>
    %c22 = arith.constant 22 : index
    %c0_75 = arith.constant 0 : index
    %c0_76 = arith.constant 0 : index
    %141 = vector.load %arg4[%c22, %c0_75, %c0_76] : memref<25x128x128xf32, #tpu.memory_space<vmem>>, vector<1x128x128xf32>
    %142 = vector.shape_cast %141 : vector<1x128x128xf32> to vector<128x128xf32>
    %cst_77 = arith.constant dense<0.000000e+00> : vector<8x128xf32>
    %143 = tpu.matmul %140, %142, %cst_77 {dimension_numbers = #tpu.dot_dimension_numbers<[1], [0], [0], [1], [0, 0, 1, 1], [], []>} : vector<8x128xf32>, vector<128x128xf32>, vector<8x128xf32> -> vector<8x128xf32>
    %144 = vector.extract_strided_slice %143 {offsets = [0, 0], sizes = [1, 128], strides = [1, 1]} : vector<8x128xf32> to vector<1x128xf32>
    %145 = arith.addf %139, %144 : vector<1x128xf32>
    %146 = vector.extract_strided_slice %5 {offsets = [23, 0], sizes = [8, 128], strides = [1, 1]} : vector<32x128xf32> to vector<8x128xf32>
    %c23 = arith.constant 23 : index
    %c0_78 = arith.constant 0 : index
    %c0_79 = arith.constant 0 : index
    %147 = vector.load %arg4[%c23, %c0_78, %c0_79] : memref<25x128x128xf32, #tpu.memory_space<vmem>>, vector<1x128x128xf32>
    %148 = vector.shape_cast %147 : vector<1x128x128xf32> to vector<128x128xf32>
    %cst_80 = arith.constant dense<0.000000e+00> : vector<8x128xf32>
    %149 = tpu.matmul %146, %148, %cst_80 {dimension_numbers = #tpu.dot_dimension_numbers<[1], [0], [0], [1], [0, 0, 1, 1], [], []>} : vector<8x128xf32>, vector<128x128xf32>, vector<8x128xf32> -> vector<8x128xf32>
    %150 = vector.extract_strided_slice %149 {offsets = [0, 0], sizes = [1, 128], strides = [1, 1]} : vector<8x128xf32> to vector<1x128xf32>
    %151 = arith.addf %145, %150 : vector<1x128xf32>
    %152 = vector.extract_strided_slice %5 {offsets = [24, 0], sizes = [8, 128], strides = [1, 1]} : vector<32x128xf32> to vector<8x128xf32>
    %c24 = arith.constant 24 : index
    %c0_81 = arith.constant 0 : index
    %c0_82 = arith.constant 0 : index
    %153 = vector.load %arg4[%c24, %c0_81, %c0_82] : memref<25x128x128xf32, #tpu.memory_space<vmem>>, vector<1x128x128xf32>
    %154 = vector.shape_cast %153 : vector<1x128x128xf32> to vector<128x128xf32>
    %cst_83 = arith.constant dense<0.000000e+00> : vector<8x128xf32>
    %155 = tpu.matmul %152, %154, %cst_83 {dimension_numbers = #tpu.dot_dimension_numbers<[1], [0], [0], [1], [0, 0, 1, 1], [], []>} : vector<8x128xf32>, vector<128x128xf32>, vector<8x128xf32> -> vector<8x128xf32>
    %156 = vector.extract_strided_slice %155 {offsets = [0, 0], sizes = [1, 128], strides = [1, 1]} : vector<8x128xf32> to vector<1x128xf32>
    %157 = arith.addf %151, %156 : vector<1x128xf32>
    %c0_84 = arith.constant 0 : index
    %c0_85 = arith.constant 0 : index
    %158 = vector.load %arg5[%c0_84, %c0_85] : memref<1x128xf32, #tpu.memory_space<vmem>>, vector<1x128xf32>
    %159 = arith.addf %157, %158 : vector<1x128xf32>
    %c0_86 = arith.constant 0 : index
    %c0_87 = arith.constant 0 : index
    %160 = vector.load %arg7[%c0_86, %c0_87] : memref<1x128xf32, #tpu.memory_space<vmem>>, vector<1x128xf32>
    tpu.vector_store %arg7[%c0_86, %c0_87], %159 {strides = array<i32>} : memref<1x128xf32, #tpu.memory_space<vmem>>, vector<1x128xf32>,
    return
  }
  func.func @transform_0(%arg0: i32) -> (i32, i32) {
    %c0_i32 = arith.constant 0 : i32
    %c0_i32_0 = arith.constant 0 : i32
    %c0_i32_1 = arith.constant 0 : i32
    return %c0_i32, %c0_i32_0 : i32, i32
  }
  func.func @transform_1(%arg0: i32) -> (i32, i32) {
    %c0_i32 = arith.constant 0 : i32
    %c0_i32_0 = arith.constant 0 : i32
    %c0_i32_1 = arith.constant 0 : i32
    return %c0_i32, %c0_i32_0 : i32, i32
  }
  func.func @transform_2(%arg0: i32) -> (i32, i32) {
    %c0_i32 = arith.constant 0 : i32
    %c0_i32_0 = arith.constant 0 : i32
    %c0_i32_1 = arith.constant 0 : i32
    return %c0_i32, %c0_i32_0 : i32, i32
  }
  func.func @transform_3(%arg0: i32) -> (i32, i32, i32) {
    %c0_i32 = arith.constant 0 : i32
    %c0_i32_0 = arith.constant 0 : i32
    %c0_i32_1 = arith.constant 0 : i32
    %c0_i32_2 = arith.constant 0 : i32
    return %c0_i32, %c0_i32_0, %c0_i32_1 : i32, i32, i32
  }
  func.func @transform_4(%arg0: i32) -> (i32, i32) {
    %c0_i32 = arith.constant 0 : i32
    %c0_i32_0 = arith.constant 0 : i32
    %c0_i32_1 = arith.constant 0 : i32
    return %c0_i32, %c0_i32_0 : i32, i32
  }
  func.func @transform_5(%arg0: i32) -> (i32, i32) {
    %c0_i32 = arith.constant 0 : i32
    %c0_i32_0 = arith.constant 0 : i32
    %c0_i32_1 = arith.constant 0 : i32
    return %c0_i32, %c0_i32_0 : i32, i32
  }
  func.func @transform_6(%arg0: i32) -> (i32, i32) {
    %c0_i32 = arith.constant 0 : i32
    %c0_i32_0 = arith.constant 0 : i32
    %c0_i32_1 = arith.constant 0 : i32
    return %c0_i32, %c0_i32_0 : i32, i32
  }
}

</mosaic_0001>

<llo_original>
// kernel: model_forward.1
$region0: #{model_forward.1}
  #allocation0 [shape = 'u32[]', space=smem, size = 0x4, offset = 0x4, fixed_abs, tag = 'smem constant byte address 0x4 - core index']
  #allocation1 [shape = 'u32[144,128]{1,0:T(1,128)}', space=vmem, size = 0x12000, scoped, tag = 'internal scratch']
  %s0 = inlined_call_operand.vmem [shape: f32[32,1536], index: 0, kind: input, shape index: {}]
  %s1 = inlined_call_operand.vmem [shape: f32[1536,128], index: 1, kind: input, shape index: {}]
  %s2 = inlined_call_operand.vmem [shape: f32[1,128], index: 2, kind: input, shape index: {}]
  %s3 = inlined_call_operand.vmem [shape: f32[25,128,128], index: 3, kind: input, shape index: {}]
  %s4 = inlined_call_operand.vmem [shape: f32[1,128], index: 4, kind: input, shape index: {}]
  %s5 = inlined_call_operand.vmem [shape: f32[32,128], index: 5, kind: output, shape index: {0}]
  %s6 = inlined_call_operand.vmem [shape: f32[1,128], index: 6, kind: output, shape index: {1}]
  %7 = xla_tuple %s5, %s6
  %s8 = sld [smem:[#allocation0]]
  $region38: #{model_forward.1} parent=0
    _
  %s10 = ssub.s32 1, %s8
  %s11 = scalar_select 0, %s10, %s8
  // Predicated region
  $region2: #{model_forward.1} parent=0 // pred_check
    _
  $region3: #{model_forward.1} parent=0 // pred_check_branch
    %13 = sbr.rel (0) target = $region5
  $region4: #{model_forward.1} parent=0 // pred_region
    _
  $region5: #{model_forward.1} parent=0 // pred_fallthru
    _
  // Predicated region
  $region6: #{model_forward.1} parent=0 // pred_check
    _
  $region7: #{model_forward.1} parent=0 // pred_check_branch
    %15 = sbr.rel (0) target = $region9
  $region8: #{model_forward.1} parent=0 // pred_region
    _
  $region9: #{model_forward.1} parent=0 // pred_fallthru
    _
  // Predicated region
  $region10: #{model_forward.1} parent=0 // pred_check
    _
  $region11: #{model_forward.1} parent=0 // pred_check_branch
    %17 = sbr.rel (0) target = $region13
  $region12: #{model_forward.1} parent=0 // pred_region
    _
  $region13: #{model_forward.1} parent=0 // pred_fallthru
    _
  // Predicated region
  $region14: #{model_forward.1} parent=0 // pred_check
    _
  $region15: #{model_forward.1} parent=0 // pred_check_branch
    %19 = sbr.rel (0) target = $region17
  $region16: #{model_forward.1} parent=0 // pred_region
    _
  $region17: #{model_forward.1} parent=0 // pred_fallthru
    _
  // Predicated region
  $region18: #{model_forward.1} parent=0 // pred_check
    _
  $region19: #{model_forward.1} parent=0 // pred_check_branch
    %21 = sbr.rel (0) target = $region21
  $region20: #{model_forward.1} parent=0 // pred_region
    _
  $region21: #{model_forward.1} parent=0 // pred_fallthru
    _
  %v22 = vld [vmem:[%s0] sm:$0xff]
  %v23 = vld [vmem:[%s0 + $0x8] sm:$0xff]
  %v24 = vld [vmem:[%s0 + $0x10] sm:$0xff]
  %v25 = vld [vmem:[%s0 + $0x18] sm:$0xff]
  %v26 = vld [vmem:[%s0 + $0x20] sm:$0xff]
  %v27 = vld [vmem:[%s0 + $0x28] sm:$0xff]
  %v28 = vld [vmem:[%s0 + $0x30] sm:$0xff]
  %v29 = vld [vmem:[%s0 + $0x38] sm:$0xff]
  %v30 = vld [vmem:[%s0 + $0x40] sm:$0xff]
  %v31 = vld [vmem:[%s0 + $0x48] sm:$0xff]
  %v32 = vld [vmem:[%s0 + $0x50] sm:$0xff]
  %v33 = vld [vmem:[%s0 + $0x58] sm:$0xff]
  %v34 = vld [vmem:[%s0 + $0x60] sm:$0xff]
  %v35 = vld [vmem:[%s0 + $0x68] sm:$0xff]
  %v36 = vld [vmem:[%s0 + $0x70] sm:$0xff]
  %v37 = vld [vmem:[%s0 + $0x78] sm:$0xff]
  %v38 = vld [vmem:[%s0 + $0x80] sm:$0xff]
  %v39 = vld [vmem:[%s0 + $0x88] sm:$0xff]
  %v40 = vld [vmem:[%s0 + $0x90] sm:$0xff]
  %v41 = vld [vmem:[%s0 + $0x98] sm:$0xff]
  %v42 = vld [vmem:[%s0 + $0xa0] sm:$0xff]
  %v43 = vld [vmem:[%s0 + $0xa8] sm:$0xff]
  %v44 = vld [vmem:[%s0 + $0xb0] sm:$0xff]
  %v45 = vld [vmem:[%s0 + $0xb8] sm:$0xff]
  %v46 = vld [vmem:[%s0 + $0xc0] sm:$0xff]
  %v47 = vld [vmem:[%s0 + $0xc8] sm:$0xff]
  %v48 = vld [vmem:[%s0 + $0xd0] sm:$0xff]
  %v49 = vld [vmem:[%s0 + $0xd8] sm:$0xff]
  %v50 = vld [vmem:[%s0 + $0xe0] sm:$0xff]
  %v51 = vld [vmem:[%s0 + $0xe8] sm:$0xff]
  %v52 = vld [vmem:[%s0 + $0xf0] sm:$0xff]
  %v53 = vld [vmem:[%s0 + $0xf8] sm:$0xff]
  %v54 = vld [vmem:[%s0 + $0x100] sm:$0xff]
  %v55 = vld [vmem:[%s0 + $0x108] sm:$0xff]
  %v56 = vld [vmem:[%s0 + $0x110] sm:$0xff]
  %v57 = vld [vmem:[%s0 + $0x118] sm:$0xff]
  %v58 = vld [vmem:[%s0 + $0x120] sm:$0xff]
  %v59 = vld [vmem:[%s0 + $0x128] sm:$0xff]
  %v60 = vld [vmem:[%s0 + $0x130] sm:$0xff]
  %v61 = vld [vmem:[%s0 + $0x138] sm:$0xff]
  %v62 = vld [vmem:[%s0 + $0x140] sm:$0xff]
  %v63 = vld [vmem:[%s0 + $0x148] sm:$0xff]
  %v64 = vld [vmem:[%s0 + $0x150] sm:$0xff]
  %v65 = vld [vmem:[%s0 + $0x158] sm:$0xff]
  %v66 = vld [vmem:[%s0 + $0x160] sm:$0xff]
  %v67 = vld [vmem:[%s0 + $0x168] sm:$0xff]
  %v68 = vld [vmem:[%s0 + $0x170] sm:$0xff]
  %v69 = vld [vmem:[%s0 + $0x178] sm:$0xff]
  %v70 = vld [vmem:[%s1] sm:$0xff]
  %v71 = vld [vmem:[%s1 + $0x8] sm:$0xff]
  %v72 = vld [vmem:[%s1 + $0x10] sm:$0xff]
  %v73 = vld [vmem:[%s1 + $0x18] sm:$0xff]
  %v74 = vld [vmem:[%s1 + $0x20] sm:$0xff]
  %v75 = vld [vmem:[%s1 + $0x28] sm:$0xff]
  %v76 = vld [vmem:[%s1 + $0x30] sm:$0xff]
  %v77 = vld [vmem:[%s1 + $0x38] sm:$0xff]
  %v78 = vld [vmem:[%s1 + $0x40] sm:$0xff]
  %v79 = vld [vmem:[%s1 + $0x48] sm:$0xff]
  %v80 = vld [vmem:[%s1 + $0x50] sm:$0xff]
  %v81 = vld [vmem:[%s1 + $0x58] sm:$0xff]
  %v82 = vld [vmem:[%s1 + $0x60] sm:$0xff]
  %v83 = vld [vmem:[%s1 + $0x68] sm:$0xff]
  %v84 = vld [vmem:[%s1 + $0x70] sm:$0xff]
  %v85 = vld [vmem:[%s1 + $0x78] sm:$0xff]
  %v86 = vld [vmem:[%s1 + $0x80] sm:$0xff]
  %v87 = vld [vmem:[%s1 + $0x88] sm:$0xff]
  %v88 = vld [vmem:[%s1 + $0x90] sm:$0xff]
  %v89 = vld [vmem:[%s1 + $0x98] sm:$0xff]
  %v90 = vld [vmem:[%s1 + $0xa0] sm:$0xff]
  %v91 = vld [vmem:[%s1 + $0xa8] sm:$0xff]
  %v92 = vld [vmem:[%s1 + $0xb0] sm:$0xff]
  %v93 = vld [vmem:[%s1 + $0xb8] sm:$0xff]
  %v94 = vld [vmem:[%s1 + $0xc0] sm:$0xff]
  %v95 = vld [vmem:[%s1 + $0xc8] sm:$0xff]
  %v96 = vld [vmem:[%s1 + $0xd0] sm:$0xff]
  %v97 = vld [vmem:[%s1 + $0xd8] sm:$0xff]
  %v98 = vld [vmem:[%s1 + $0xe0] sm:$0xff]
  %v99 = vld [vmem:[%s1 + $0xe8] sm:$0xff]
  %v100 = vld [vmem:[%s1 + $0xf0] sm:$0xff]
  %v101 = vld [vmem:[%s1 + $0xf8] sm:$0xff]
  %v102 = vld [vmem:[%s1 + $0x100] sm:$0xff]
  %v103 = vld [vmem:[%s1 + $0x108] sm:$0xff]
  %v104 = vld [vmem:[%s1 + $0x110] sm:$0xff]
  %v105 = vld [vmem:[%s1 + $0x118] sm:$0xff]
  %v106 = vld [vmem:[%s1 + $0x120] sm:$0xff]
  %v107 = vld [vmem:[%s1 + $0x128] sm:$0xff]
  %v108 = vld [vmem:[%s1 + $0x130] sm:$0xff]
  %v109 = vld [vmem:[%s1 + $0x138] sm:$0xff]
  %v110 = vld [vmem:[%s1 + $0x140] sm:$0xff]
  %v111 = vld [vmem:[%s1 + $0x148] sm:$0xff]
  %v112 = vld [vmem:[%s1 + $0x150] sm:$0xff]
  %v113 = vld [vmem:[%s1 + $0x158] sm:$0xff]
  %v114 = vld [vmem:[%s1 + $0x160] sm:$0xff]
  %v115 = vld [vmem:[%s1 + $0x168] sm:$0xff]
  %v116 = vld [vmem:[%s1 + $0x170] sm:$0xff]
  %v117 = vld [vmem:[%s1 + $0x178] sm:$0xff]
  %v118 = vld [vmem:[%s1 + $0x180] sm:$0xff]
  %v119 = vld [vmem:[%s1 + $0x188] sm:$0xff]
  %v120 = vld [vmem:[%s1 + $0x190] sm:$0xff]
  %v121 = vld [vmem:[%s1 + $0x198] sm:$0xff]
  %v122 = vld [vmem:[%s1 + $0x1a0] sm:$0xff]
  %v123 = vld [vmem:[%s1 + $0x1a8] sm:$0xff]
  %v124 = vld [vmem:[%s1 + $0x1b0] sm:$0xff]
  %v125 = vld [vmem:[%s1 + $0x1b8] sm:$0xff]
  %v126 = vld [vmem:[%s1 + $0x1c0] sm:$0xff]
  %v127 = vld [vmem:[%s1 + $0x1c8] sm:$0xff]
  %v128 = vld [vmem:[%s1 + $0x1d0] sm:$0xff]
  %v129 = vld [vmem:[%s1 + $0x1d8] sm:$0xff]
  %v130 = vld [vmem:[%s1 + $0x1e0] sm:$0xff]
  %v131 = vld [vmem:[%s1 + $0x1e8] sm:$0xff]
  %v132 = vld [vmem:[%s1 + $0x1f0] sm:$0xff]
  %v133 = vld [vmem:[%s1 + $0x1f8] sm:$0xff]
  %v134 = vld [vmem:[%s1 + $0x200] sm:$0xff]
  %v135 = vld [vmem:[%s1 + $0x208] sm:$0xff]
  %v136 = vld [vmem:[%s1 + $0x210] sm:$0xff]
  %v137 = vld [vmem:[%s1 + $0x218] sm:$0xff]
  %v138 = vld [vmem:[%s1 + $0x220] sm:$0xff]
  %v139 = vld [vmem:[%s1 + $0x228] sm:$0xff]
  %v140 = vld [vmem:[%s1 + $0x230] sm:$0xff]
  %v141 = vld [vmem:[%s1 + $0x238] sm:$0xff]
  %v142 = vld [vmem:[%s1 + $0x240] sm:$0xff]
  %v143 = vld [vmem:[%s1 + $0x248] sm:$0xff]
  %v144 = vld [vmem:[%s1 + $0x250] sm:$0xff]
  %v145 = vld [vmem:[%s1 + $0x258] sm:$0xff]
  %v146 = vld [vmem:[%s1 + $0x260] sm:$0xff]
  %v147 = vld [vmem:[%s1 + $0x268] sm:$0xff]
  %v148 = vld [vmem:[%s1 + $0x270] sm:$0xff]
  %v149 = vld [vmem:[%s1 + $0x278] sm:$0xff]
  %v150 = vld [vmem:[%s1 + $0x280] sm:$0xff]
  %v151 = vld [vmem:[%s1 + $0x288] sm:$0xff]
  %v152 = vld [vmem:[%s1 + $0x290] sm:$0xff]
  %v153 = vld [vmem:[%s1 + $0x298] sm:$0xff]
  %v154 = vld [vmem:[%s1 + $0x2a0] sm:$0xff]
  %v155 = vld [vmem:[%s1 + $0x2a8] sm:$0xff]
  %v156 = vld [vmem:[%s1 + $0x2b0] sm:$0xff]
  %v157 = vld [vmem:[%s1 + $0x2b8] sm:$0xff]
  %v158 = vld [vmem:[%s1 + $0x2c0] sm:$0xff]
  %v159 = vld [vmem:[%s1 + $0x2c8] sm:$0xff]
  %v160 = vld [vmem:[%s1 + $0x2d0] sm:$0xff]
  %v161 = vld [vmem:[%s1 + $0x2d8] sm:$0xff]
  %v162 = vld [vmem:[%s1 + $0x2e0] sm:$0xff]
  %v163 = vld [vmem:[%s1 + $0x2e8] sm:$0xff]
  %v164 = vld [vmem:[%s1 + $0x2f0] sm:$0xff]
  %v165 = vld [vmem:[%s1 + $0x2f8] sm:$0xff]
  %v166 = vld [vmem:[%s1 + $0x300] sm:$0xff]
  %v167 = vld [vmem:[%s1 + $0x308] sm:$0xff]
  %v168 = vld [vmem:[%s1 + $0x310] sm:$0xff]
  %v169 = vld [vmem:[%s1 + $0x318] sm:$0xff]
  %v170 = vld [vmem:[%s1 + $0x320] sm:$0xff]
  %v171 = vld [vmem:[%s1 + $0x328] sm:$0xff]
  %v172 = vld [vmem:[%s1 + $0x330] sm:$0xff]
  %v173 = vld [vmem:[%s1 + $0x338] sm:$0xff]
  %v174 = vld [vmem:[%s1 + $0x340] sm:$0xff]
  %v175 = vld [vmem:[%s1 + $0x348] sm:$0xff]
  %v176 = vld [vmem:[%s1 + $0x350] sm:$0xff]
  %v177 = vld [vmem:[%s1 + $0x358] sm:$0xff]
  %v178 = vld [vmem:[%s1 + $0x360] sm:$0xff]
  %v179 = vld [vmem:[%s1 + $0x368] sm:$0xff]
  %v180 = vld [vmem:[%s1 + $0x370] sm:$0xff]
  %v181 = vld [vmem:[%s1 + $0x378] sm:$0xff]
  %v182 = vld [vmem:[%s1 + $0x380] sm:$0xff]
  %v183 = vld [vmem:[%s1 + $0x388] sm:$0xff]
  %v184 = vld [vmem:[%s1 + $0x390] sm:$0xff]
  %v185 = vld [vmem:[%s1 + $0x398] sm:$0xff]
  %v186 = vld [vmem:[%s1 + $0x3a0] sm:$0xff]
  %v187 = vld [vmem:[%s1 + $0x3a8] sm:$0xff]
  %v188 = vld [vmem:[%s1 + $0x3b0] sm:$0xff]
  %v189 = vld [vmem:[%s1 + $0x3b8] sm:$0xff]
  %v190 = vld [vmem:[%s1 + $0x3c0] sm:$0xff]
  %v191 = vld [vmem:[%s1 + $0x3c8] sm:$0xff]
  %v192 = vld [vmem:[%s1 + $0x3d0] sm:$0xff]
  %v193 = vld [vmem:[%s1 + $0x3d8] sm:$0xff]
  %v194 = vld [vmem:[%s1 + $0x3e0] sm:$0xff]
  %v195 = vld [vmem:[%s1 + $0x3e8] sm:$0xff]
  %v196 = vld [vmem:[%s1 + $0x3f0] sm:$0xff]
  %v197 = vld [vmem:[%s1 + $0x3f8] sm:$0xff]
  %v198 = vld [vmem:[%s1 + $0x400] sm:$0xff]
  %v199 = vld [vmem:[%s1 + $0x408] sm:$0xff]
  %v200 = vld [vmem:[%s1 + $0x410] sm:$0xff]
  %v201 = vld [vmem:[%s1 + $0x418] sm:$0xff]
  %v202 = vld [vmem:[%s1 + $0x420] sm:$0xff]
  %v203 = vld [vmem:[%s1 + $0x428] sm:$0xff]
  %v204 = vld [vmem:[%s1 + $0x430] sm:$0xff]
  %v205 = vld [vmem:[%s1 + $0x438] sm:$0xff]
  %v206 = vld [vmem:[%s1 + $0x440] sm:$0xff]
  %v207 = vld [vmem:[%s1 + $0x448] sm:$0xff]
  %v208 = vld [vmem:[%s1 + $0x450] sm:$0xff]
  %v209 = vld [vmem:[%s1 + $0x458] sm:$0xff]
  %v210 = vld [vmem:[%s1 + $0x460] sm:$0xff]
  %v211 = vld [vmem:[%s1 + $0x468] sm:$0xff]
  %v212 = vld [vmem:[%s1 + $0x470] sm:$0xff]
  %v213 = vld [vmem:[%s1 + $0x478] sm:$0xff]
  %v214 = vld [vmem:[%s1 + $0x480] sm:$0xff]
  %v215 = vld [vmem:[%s1 + $0x488] sm:$0xff]
  %v216 = vld [vmem:[%s1 + $0x490] sm:$0xff]
  %v217 = vld [vmem:[%s1 + $0x498] sm:$0xff]
  %v218 = vld [vmem:[%s1 + $0x4a0] sm:$0xff]
  %v219 = vld [vmem:[%s1 + $0x4a8] sm:$0xff]
  %v220 = vld [vmem:[%s1 + $0x4b0] sm:$0xff]
  %v221 = vld [vmem:[%s1 + $0x4b8] sm:$0xff]
  %v222 = vld [vmem:[%s1 + $0x4c0] sm:$0xff]
  %v223 = vld [vmem:[%s1 + $0x4c8] sm:$0xff]
  %v224 = vld [vmem:[%s1 + $0x4d0] sm:$0xff]
  %v225 = vld [vmem:[%s1 + $0x4d8] sm:$0xff]
  %v226 = vld [vmem:[%s1 + $0x4e0] sm:$0xff]
  %v227 = vld [vmem:[%s1 + $0x4e8] sm:$0xff]
  %v228 = vld [vmem:[%s1 + $0x4f0] sm:$0xff]
  %v229 = vld [vmem:[%s1 + $0x4f8] sm:$0xff]
  %v230 = vld [vmem:[%s1 + $0x500] sm:$0xff]
  %v231 = vld [vmem:[%s1 + $0x508] sm:$0xff]
  %v232 = vld [vmem:[%s1 + $0x510] sm:$0xff]
  %v233 = vld [vmem:[%s1 + $0x518] sm:$0xff]
  %v234 = vld [vmem:[%s1 + $0x520] sm:$0xff]
  %v235 = vld [vmem:[%s1 + $0x528] sm:$0xff]
  %v236 = vld [vmem:[%s1 + $0x530] sm:$0xff]
  %v237 = vld [vmem:[%s1 + $0x538] sm:$0xff]
  %v238 = vld [vmem:[%s1 + $0x540] sm:$0xff]
  %v239 = vld [vmem:[%s1 + $0x548] sm:$0xff]
  %v240 = vld [vmem:[%s1 + $0x550] sm:$0xff]
  %v241 = vld [vmem:[%s1 + $0x558] sm:$0xff]
  %v242 = vld [vmem:[%s1 + $0x560] sm:$0xff]
  %v243 = vld [vmem:[%s1 + $0x568] sm:$0xff]
  %v244 = vld [vmem:[%s1 + $0x570] sm:$0xff]
  %v245 = vld [vmem:[%s1 + $0x578] sm:$0xff]
  %v246 = vld [vmem:[%s1 + $0x580] sm:$0xff]
  %v247 = vld [vmem:[%s1 + $0x588] sm:$0xff]
  %v248 = vld [vmem:[%s1 + $0x590] sm:$0xff]
  %v249 = vld [vmem:[%s1 + $0x598] sm:$0xff]
  %v250 = vld [vmem:[%s1 + $0x5a0] sm:$0xff]
  %v251 = vld [vmem:[%s1 + $0x5a8] sm:$0xff]
  %v252 = vld [vmem:[%s1 + $0x5b0] sm:$0xff]
  %v253 = vld [vmem:[%s1 + $0x5b8] sm:$0xff]
  %v254 = vld [vmem:[%s1 + $0x5c0] sm:$0xff]
  %v255 = vld [vmem:[%s1 + $0x5c8] sm:$0xff]
  %v256 = vld [vmem:[%s1 + $0x5d0] sm:$0xff]
  %v257 = vld [vmem:[%s1 + $0x5d8] sm:$0xff]
  %v258 = vld [vmem:[%s1 + $0x5e0] sm:$0xff]
  %v259 = vld [vmem:[%s1 + $0x5e8] sm:$0xff]
  %v260 = vld [vmem:[%s1 + $0x5f0] sm:$0xff]
  %v261 = vld [vmem:[%s1 + $0x5f8] sm:$0xff]
  %v262 = vld [vmem:[%s2] sm:$0x1]
  %v264 = vlaneseq
  %v265 = vshrl.u32 %v264, 7
  %v266 = vsub.s32 0, %v265
  %v267 = vrot.slane %v262, %v266
  %269 = vmatprep.subr.mxu0 0.0
  %270 = vmatpush1.msra.mxu0 %v70
  %271 = vmatprep.subr.mxu0 0.0
  %272 = vmatpush1.msra.mxu0 %v71
  %273 = vmatprep.subr.mxu0 0.0
  %274 = vmatpush1.msra.mxu0 %v72
  %275 = vmatprep.subr.mxu0 0.0
  %276 = vmatpush1.msra.mxu0 %v73
  %277 = vmatprep.subr.mxu0 0.0
  %278 = vmatpush1.msra.mxu0 %v74
  %279 = vmatprep.subr.mxu0 0.0
  %280 = vmatpush1.msra.mxu0 %v75
  %281 = vmatprep.subr.mxu0 0.0
  %282 = vmatpush1.msra.mxu0 %v76
  %283 = vmatprep.subr.mxu0 0.0
  %284 = vmatpush1.msra.mxu0 %v77
  %285 = vmatprep.subr.mxu0 0.0
  %286 = vmatpush1.msra.mxu0 %v78
  %287 = vmatprep.subr.mxu0 0.0
  %288 = vmatpush1.msra.mxu0 %v79
  %289 = vmatprep.subr.mxu0 0.0
  %290 = vmatpush1.msra.mxu0 %v80
  %291 = vmatprep.subr.mxu0 0.0
  %292 = vmatpush1.msra.mxu0 %v81
  %293 = vmatprep.subr.mxu0 0.0
  %294 = vmatpush1.msra.mxu0 %v82
  %295 = vmatprep.subr.mxu0 0.0
  %296 = vmatpush1.msra.mxu0 %v83
  %297 = vmatprep.subr.mxu0 0.0
  %298 = vmatpush1.msra.mxu0 %v84
  %299 = vmatprep.subr.mxu0 0.0
  %300 = vmatpush1.msra.mxu0 %v85
  %301 = vmatprep.subr.mxu0 0.0
  %302 = vmatpush1.msra.mxu0 %v86
  %303 = vmatprep.subr.mxu0 0.0
  %304 = vmatpush1.msra.mxu0 %v87
  %305 = vmatprep.subr.mxu0 0.0
  %306 = vmatpush1.msra.mxu0 %v88
  %307 = vmatprep.subr.mxu0 0.0
  %308 = vmatpush1.msra.mxu0 %v89
  %309 = vmatprep.subr.mxu0 0.0
  %310 = vmatpush1.msra.mxu0 %v90
  %311 = vmatprep.subr.mxu0 0.0
  %312 = vmatpush1.msra.mxu0 %v91
  %313 = vmatprep.subr.mxu0 0.0
  %314 = vmatpush1.msra.mxu0 %v92
  %315 = vmatprep.subr.mxu0 0.0
  %316 = vmatpush1.msra.mxu0 %v93
  %317 = vmatprep.subr.mxu0 0.0
  %318 = vmatpush1.msra.mxu0 %v94
  %319 = vmatprep.subr.mxu0 0.0
  %320 = vmatpush1.msra.mxu0 %v95
  %321 = vmatprep.subr.mxu0 0.0
  %322 = vmatpush1.msra.mxu0 %v96
  %323 = vmatprep.subr.mxu0 0.0
  %324 = vmatpush1.msra.mxu0 %v97
  %325 = vmatprep.subr.mxu0 0.0
  %326 = vmatpush1.msra.mxu0 %v98
  %327 = vmatprep.subr.mxu0 0.0
  %328 = vmatpush1.msra.mxu0 %v99
  %329 = vmatprep.subr.mxu0 0.0
  %330 = vmatpush1.msra.mxu0 %v100
  %331 = vmatprep.subr.mxu0 0.0
  %332 = vmatpush1.msra.mxu0 %v101
  %333 = vmatprep.mubr.f32.mxu0 %v23
  %334 = vmatmul.mubr.f32.gmra.mrb[0].mxu0 %v22
  %v335 = vpop.f32.mrb[0].mxu0
  %v336 = vadd.f32 %v267, %v335
  %v337 = vpop.f32.mrb[0].mxu0
  %338 = vmatprep.mubr.f32.mxu0 %v35
  %339 = vmatmul.mubr.f32.gmra.mrb[0].mxu0 %v34
  %v340 = vpop.f32.mrb[0].mxu0
  %v341 = vadd.f32 %v267, %v340
  %v342 = vpop.f32.mrb[0].mxu0
  %343 = vmatprep.mubr.f32.mxu0 %v47
  %344 = vmatmul.mubr.f32.gmra.mrb[0].mxu0 %v46
  %v345 = vpop.f32.mrb[0].mxu0
  %v346 = vadd.f32 %v267, %v345
  %v347 = vpop.f32.mrb[0].mxu0
  %348 = vmatprep.mubr.f32.mxu0 %v59
  %349 = vmatmul.mubr.f32.gmra.mrb[0].mxu0 %v58
  %v350 = vpop.f32.mrb[0].mxu0
  %v351 = vadd.f32 %v267, %v350
  %v352 = vpop.f32.mrb[0].mxu0
  %353 = vdwg.mxu0
  %354 = vmatprep.subr.mxu0 0.0
  %355 = vmatpush1.msra.mxu0 %v102
  %356 = vmatprep.subr.mxu0 0.0
  %357 = vmatpush1.msra.mxu0 %v103
  %358 = vmatprep.subr.mxu0 0.0
  %359 = vmatpush1.msra.mxu0 %v104
  %360 = vmatprep.subr.mxu0 0.0
  %361 = vmatpush1.msra.mxu0 %v105
  %362 = vmatprep.subr.mxu0 0.0
  %363 = vmatpush1.msra.mxu0 %v106
  %364 = vmatprep.subr.mxu0 0.0
  %365 = vmatpush1.msra.mxu0 %v107
  %366 = vmatprep.subr.mxu0 0.0
  %367 = vmatpush1.msra.mxu0 %v108
  %368 = vmatprep.subr.mxu0 0.0
  %369 = vmatpush1.msra.mxu0 %v109
  %370 = vmatprep.subr.mxu0 0.0
  %371 = vmatpush1.msra.mxu0 %v110
  %372 = vmatprep.subr.mxu0 0.0
  %373 = vmatpush1.msra.mxu0 %v111
  %374 = vmatprep.subr.mxu0 0.0
  %375 = vmatpush1.msra.mxu0 %v112
  %376 = vmatprep.subr.mxu0 0.0
  %377 = vmatpush1.msra.mxu0 %v113
  %378 = vmatprep.subr.mxu0 0.0
  %379 = vmatpush1.msra.mxu0 %v114
  %380 = vmatprep.subr.mxu0 0.0
  %381 = vmatpush1.msra.mxu0 %v115
  %382 = vmatprep.subr.mxu0 0.0
  %383 = vmatpush1.msra.mxu0 %v116
  %384 = vmatprep.subr.mxu0 0.0
  %385 = vmatpush1.msra.mxu0 %v117
  %386 = vmatprep.subr.mxu0 0.0
  %387 = vmatpush1.msra.mxu0 %v118
  %388 = vmatprep.subr.mxu0 0.0
  %389 = vmatpush1.msra.mxu0 %v119
  %390 = vmatprep.subr.mxu0 0.0
  %391 = vmatpush1.msra.mxu0 %v120
  %392 = vmatprep.subr.mxu0 0.0
  %393 = vmatpush1.msra.mxu0 %v121
  %394 = vmatprep.subr.mxu0 0.0
  %395 = vmatpush1.msra.mxu0 %v122
  %396 = vmatprep.subr.mxu0 0.0
  %397 = vmatpush1.msra.mxu0 %v123
  %398 = vmatprep.subr.mxu0 0.0
  %399 = vmatpush1.msra.mxu0 %v124
  %400 = vmatprep.subr.mxu0 0.0
  %401 = vmatpush1.msra.mxu0 %v125
  %402 = vmatprep.subr.mxu0 0.0
  %403 = vmatpush1.msra.mxu0 %v126
  %404 = vmatprep.subr.mxu0 0.0
  %405 = vmatpush1.msra.mxu0 %v127
  %406 = vmatprep.subr.mxu0 0.0
  %407 = vmatpush1.msra.mxu0 %v128
  %408 = vmatprep.subr.mxu0 0.0
  %409 = vmatpush1.msra.mxu0 %v129
  %410 = vmatprep.subr.mxu0 0.0
  %411 = vmatpush1.msra.mxu0 %v130
  %412 = vmatprep.subr.mxu0 0.0
  %413 = vmatpush1.msra.mxu0 %v131
  %414 = vmatprep.subr.mxu0 0.0
  %415 = vmatpush1.msra.mxu0 %v132
  %416 = vmatprep.subr.mxu0 0.0
  %417 = vmatpush1.msra.mxu0 %v133
  %418 = vmatprep.mubr.f32.mxu0 %v25
  %419 = vmatmul.mubr.f32.gmra.mrb[0].mxu0 %v24
  %v420 = vpop.f32.mrb[0].mxu0
  %v421 = vadd.f32 %v336, %v420
  %v422 = vpop.f32.mrb[0].mxu0
  %423 = vmatprep.mubr.f32.mxu0 %v37
  %424 = vmatmul.mubr.f32.gmra.mrb[0].mxu0 %v36
  %v425 = vpop.f32.mrb[0].mxu0
  %v426 = vadd.f32 %v341, %v425
  %v427 = vpop.f32.mrb[0].mxu0
  %428 = vmatprep.mubr.f32.mxu0 %v49
  %429 = vmatmul.mubr.f32.gmra.mrb[0].mxu0 %v48
  %v430 = vpop.f32.mrb[0].mxu0
  %v431 = vadd.f32 %v346, %v430
  %v432 = vpop.f32.mrb[0].mxu0
  %433 = vmatprep.mubr.f32.mxu0 %v61
  %434 = vmatmul.mubr.f32.gmra.mrb[0].mxu0 %v60
  %v435 = vpop.f32.mrb[0].mxu0
  %v436 = vadd.f32 %v351, %v435
  %v437 = vpop.f32.mrb[0].mxu0
  %438 = vdwg.mxu0
  %439 = vmatprep.subr.mxu0 0.0
  %440 = vmatpush1.msra.mxu0 %v134
  %441 = vmatprep.subr.mxu0 0.0
  %442 = vmatpush1.msra.mxu0 %v135
  %443 = vmatprep.subr.mxu0 0.0
  %444 = vmatpush1.msra.mxu0 %v136
  %445 = vmatprep.subr.mxu0 0.0
  %446 = vmatpush1.msra.mxu0 %v137
  %447 = vmatprep.subr.mxu0 0.0
  %448 = vmatpush1.msra.mxu0 %v138
  %449 = vmatprep.subr.mxu0 0.0
  %450 = vmatpush1.msra.mxu0 %v139
  %451 = vmatprep.subr.mxu0 0.0
  %452 = vmatpush1.msra.mxu0 %v140
  %453 = vmatprep.subr.mxu0 0.0
  %454 = vmatpush1.msra.mxu0 %v141
  %455 = vmatprep.subr.mxu0 0.0
  %456 = vmatpush1.msra.mxu0 %v142
  %457 = vmatprep.subr.mxu0 0.0
  %458 = vmatpush1.msra.mxu0 %v143
  %459 = vmatprep.subr.mxu0 0.0
  %460 = vmatpush1.msra.mxu0 %v144
  %461 = vmatprep.subr.mxu0 0.0
  %462 = vmatpush1.msra.mxu0 %v145
  %463 = vmatprep.subr.mxu0 0.0
  %464 = vmatpush1.msra.mxu0 %v146
  %465 = vmatprep.subr.mxu0 0.0
  %466 = vmatpush1.msra.mxu0 %v147
  %467 = vmatprep.subr.mxu0 0.0
  %468 = vmatpush1.msra.mxu0 %v148
  %469 = vmatprep.subr.mxu0 0.0
  %470 = vmatpush1.msra.mxu0 %v149
  %471 = vmatprep.subr.mxu0 0.0
  %472 = vmatpush1.msra.mxu0 %v150
  %473 = vmatprep.subr.mxu0 0.0
  %474 = vmatpush1.msra.mxu0 %v151
  %475 = vmatprep.subr.mxu0 0.0
  %476 = vmatpush1.msra.mxu0 %v152
  %477 = vmatprep.subr.mxu0 0.0
  %478 = vmatpush1.msra.mxu0 %v153
  %479 = vmatprep.subr.mxu0 0.0
  %480 = vmatpush1.msra.mxu0 %v154
  %481 = vmatprep.subr.mxu0 0.0
  %482 = vmatpush1.msra.mxu0 %v155
  %483 = vmatprep.subr.mxu0 0.0
  %484 = vmatpush1.msra.mxu0 %v156
  %485 = vmatprep.subr.mxu0 0.0
  %486 = vmatpush1.msra.mxu0 %v157
  %487 = vmatprep.subr.mxu0 0.0
  %488 = vmatpush1.msra.mxu0 %v158
  %489 = vmatprep.subr.mxu0 0.0
  %490 = vmatpush1.msra.mxu0 %v159
  %491 = vmatprep.subr.mxu0 0.0
  %492 = vmatpush1.msra.mxu0 %v160
  %493 = vmatprep.subr.mxu0 0.0
  %494 = vmatpush1.msra.mxu0 %v161
  %495 = vmatprep.subr.mxu0 0.0
  %496 = vmatpush1.msra.mxu0 %v162
  %497 = vmatprep.subr.mxu0 0.0
  %498 = vmatpush1.msra.mxu0 %v163
  %499 = vmatprep.subr.mxu0 0.0
  %500 = vmatpush1.msra.mxu0 %v164
  %501 = vmatprep.subr.mxu0 0.0
  %502 = vmatpush1.msra.mxu0 %v165
  %503 = vmatprep.mubr.f32.mxu0 %v27
  %504 = vmatmul.mubr.f32.gmra.mrb[0].mxu0 %v26
  %v505 = vpop.f32.mrb[0].mxu0
  %v506 = vadd.f32 %v421, %v505
  %v507 = vpop.f32.mrb[0].mxu0
  %508 = vmatprep.mubr.f32.mxu0 %v39
  %509 = vmatmul.mubr.f32.gmra.mrb[0].mxu0 %v38
  %v510 = vpop.f32.mrb[0].mxu0
  %v511 = vadd.f32 %v426, %v510
  %v512 = vpop.f32.mrb[0].mxu0
  %513 = vmatprep.mubr.f32.mxu0 %v51
  %514 = vmatmul.mubr.f32.gmra.mrb[0].mxu0 %v50
  %v515 = vpop.f32.mrb[0].mxu0
  %v516 = vadd.f32 %v431, %v515
  %v517 = vpop.f32.mrb[0].mxu0
  %518 = vmatprep.mubr.f32.mxu0 %v63
  %519 = vmatmul.mubr.f32.gmra.mrb[0].mxu0 %v62
  %v520 = vpop.f32.mrb[0].mxu0
  %v521 = vadd.f32 %v436, %v520
  %v522 = vpop.f32.mrb[0].mxu0
  %523 = vdwg.mxu0
  %524 = vmatprep.subr.mxu0 0.0
  %525 = vmatpush1.msra.mxu0 %v166
  %526 = vmatprep.subr.mxu0 0.0
  %527 = vmatpush1.msra.mxu0 %v167
  %528 = vmatprep.subr.mxu0 0.0
  %529 = vmatpush1.msra.mxu0 %v168
  %530 = vmatprep.subr.mxu0 0.0
  %531 = vmatpush1.msra.mxu0 %v169
  %532 = vmatprep.subr.mxu0 0.0
  %533 = vmatpush1.msra.mxu0 %v170
  %534 = vmatprep.subr.mxu0 0.0
  %535 = vmatpush1.msra.mxu0 %v171
  %536 = vmatprep.subr.mxu0 0.0
  %537 = vmatpush1.msra.mxu0 %v172
  %538 = vmatprep.subr.mxu0 0.0
  %539 = vmatpush1.msra.mxu0 %v173
  %540 = vmatprep.subr.mxu0 0.0
  %541 = vmatpush1.msra.mxu0 %v174
  %542 = vmatprep.subr.mxu0 0.0
  %543 = vmatpush1.msra.mxu0 %v175
  %544 = vmatprep.subr.mxu0 0.0
  %545 = vmatpush1.msra.mxu0 %v176
  %546 = vmatprep.subr.mxu0 0.0
  %547 = vmatpush1.msra.mxu0 %v177
  %548 = vmatprep.subr.mxu0 0.0
  %549 = vmatpush1.msra.mxu0 %v178
  %550 = vmatprep.subr.mxu0 0.0
  %551 = vmatpush1.msra.mxu0 %v179
  %552 = vmatprep.subr.mxu0 0.0
  %553 = vmatpush1.msra.mxu0 %v180
  %554 = vmatprep.subr.mxu0 0.0
  %555 = vmatpush1.msra.mxu0 %v181
  %556 = vmatprep.subr.mxu0 0.0
  %557 = vmatpush1.msra.mxu0 %v182
  %558 = vmatprep.subr.mxu0 0.0
  %559 = vmatpush1.msra.mxu0 %v183
  %560 = vmatprep.subr.mxu0 0.0
  %561 = vmatpush1.msra.mxu0 %v184
  %562 = vmatprep.subr.mxu0 0.0
  %563 = vmatpush1.msra.mxu0 %v185
  %564 = vmatprep.subr.mxu0 0.0
  %565 = vmatpush1.msra.mxu0 %v186
  %566 = vmatprep.subr.mxu0 0.0
  %567 = vmatpush1.msra.mxu0 %v187
  %568 = vmatprep.subr.mxu0 0.0
  %569 = vmatpush1.msra.mxu0 %v188
  %570 = vmatprep.subr.mxu0 0.0
  %571 = vmatpush1.msra.mxu0 %v189
  %572 = vmatprep.subr.mxu0 0.0
  %573 = vmatpush1.msra.mxu0 %v190
  %574 = vmatprep.subr.mxu0 0.0
  %575 = vmatpush1.msra.mxu0 %v191
  %576 = vmatprep.subr.mxu0 0.0
  %577 = vmatpush1.msra.mxu0 %v192
  %578 = vmatprep.subr.mxu0 0.0
  %579 = vmatpush1.msra.mxu0 %v193
  %580 = vmatprep.subr.mxu0 0.0
  %581 = vmatpush1.msra.mxu0 %v194
  %582 = vmatprep.subr.mxu0 0.0
  %583 = vmatpush1.msra.mxu0 %v195
  %584 = vmatprep.subr.mxu0 0.0
  %585 = vmatpush1.msra.mxu0 %v196
  %586 = vmatprep.subr.mxu0 0.0
  %587 = vmatpush1.msra.mxu0 %v197
  %588 = vmatprep.mubr.f32.mxu0 %v29
  %589 = vmatmul.mubr.f32.gmra.mrb[0].mxu0 %v28
  %v590 = vpop.f32.mrb[0].mxu0
  %v591 = vadd.f32 %v506, %v590
  %v592 = vpop.f32.mrb[0].mxu0
  %593 = vmatprep.mubr.f32.mxu0 %v41
  %594 = vmatmul.mubr.f32.gmra.mrb[0].mxu0 %v40
  %v595 = vpop.f32.mrb[0].mxu0
  %v596 = vadd.f32 %v511, %v595
  %v597 = vpop.f32.mrb[0].mxu0
  %598 = vmatprep.mubr.f32.mxu0 %v53
  %599 = vmatmul.mubr.f32.gmra.mrb[0].mxu0 %v52
  %v600 = vpop.f32.mrb[0].mxu0
  %v601 = vadd.f32 %v516, %v600
  %v602 = vpop.f32.mrb[0].mxu0
  %603 = vmatprep.mubr.f32.mxu0 %v65
  %604 = vmatmul.mubr.f32.gmra.mrb[0].mxu0 %v64
  %v605 = vpop.f32.mrb[0].mxu0
  %v606 = vadd.f32 %v521, %v605
  %v607 = vpop.f32.mrb[0].mxu0
  %608 = vdwg.mxu0
  %609 = vmatprep.subr.mxu0 0.0
  %610 = vmatpush1.msra.mxu0 %v198
  %611 = vmatprep.subr.mxu0 0.0
  %612 = vmatpush1.msra.mxu0 %v199
  %613 = vmatprep.subr.mxu0 0.0
  %614 = vmatpush1.msra.mxu0 %v200
  %615 = vmatprep.subr.mxu0 0.0
  %616 = vmatpush1.msra.mxu0 %v201
  %617 = vmatprep.subr.mxu0 0.0
  %618 = vmatpush1.msra.mxu0 %v202
  %619 = vmatprep.subr.mxu0 0.0
  %620 = vmatpush1.msra.mxu0 %v203
  %621 = vmatprep.subr.mxu0 0.0
  %622 = vmatpush1.msra.mxu0 %v204
  %623 = vmatprep.subr.mxu0 0.0
  %624 = vmatpush1.msra.mxu0 %v205
  %625 = vmatprep.subr.mxu0 0.0
  %626 = vmatpush1.msra.mxu0 %v206
  %627 = vmatprep.subr.mxu0 0.0
  %628 = vmatpush1.msra.mxu0 %v207
  %629 = vmatprep.subr.mxu0 0.0
  %630 = vmatpush1.msra.mxu0 %v208
  %631 = vmatprep.subr.mxu0 0.0
  %632 = vmatpush1.msra.mxu0 %v209
  %633 = vmatprep.subr.mxu0 0.0
  %634 = vmatpush1.msra.mxu0 %v210
  %635 = vmatprep.subr.mxu0 0.0
  %636 = vmatpush1.msra.mxu0 %v211
  %637 = vmatprep.subr.mxu0 0.0
  %638 = vmatpush1.msra.mxu0 %v212
  %639 = vmatprep.subr.mxu0 0.0
  %640 = vmatpush1.msra.mxu0 %v213
  %641 = vmatprep.subr.mxu0 0.0
  %642 = vmatpush1.msra.mxu0 %v214
  %643 = vmatprep.subr.mxu0 0.0
  %644 = vmatpush1.msra.mxu0 %v215
  %645 = vmatprep.subr.mxu0 0.0
  %646 = vmatpush1.msra.mxu0 %v216
  %647 = vmatprep.subr.mxu0 0.0
  %648 = vmatpush1.msra.mxu0 %v217
  %649 = vmatprep.subr.mxu0 0.0
  %650 = vmatpush1.msra.mxu0 %v218
  %651 = vmatprep.subr.mxu0 0.0
  %652 = vmatpush1.msra.mxu0 %v219
  %653 = vmatprep.subr.mxu0 0.0
  %654 = vmatpush1.msra.mxu0 %v220
  %655 = vmatprep.subr.mxu0 0.0
  %656 = vmatpush1.msra.mxu0 %v221
  %657 = vmatprep.subr.mxu0 0.0
  %658 = vmatpush1.msra.mxu0 %v222
  %659 = vmatprep.subr.mxu0 0.0
  %660 = vmatpush1.msra.mxu0 %v223
  %661 = vmatprep.subr.mxu0 0.0
  %662 = vmatpush1.msra.mxu0 %v224
  %663 = vmatprep.subr.mxu0 0.0
  %664 = vmatpush1.msra.mxu0 %v225
  %665 = vmatprep.subr.mxu0 0.0
  %666 = vmatpush1.msra.mxu0 %v226
  %667 = vmatprep.subr.mxu0 0.0
  %668 = vmatpush1.msra.mxu0 %v227
  %669 = vmatprep.subr.mxu0 0.0
  %670 = vmatpush1.msra.mxu0 %v228
  %671 = vmatprep.subr.mxu0 0.0
  %672 = vmatpush1.msra.mxu0 %v229
  %673 = vmatprep.mubr.f32.mxu0 %v31
  %674 = vmatmul.mubr.f32.gmra.mrb[0].mxu0 %v30
  %v675 = vpop.f32.mrb[0].mxu0
  %v676 = vadd.f32 %v591, %v675
  %v677 = vpop.f32.mrb[0].mxu0
  %678 = vmatprep.mubr.f32.mxu0 %v43
  %679 = vmatmul.mubr.f32.gmra.mrb[0].mxu0 %v42
  %v680 = vpop.f32.mrb[0].mxu0
  %v681 = vadd.f32 %v596, %v680
  %v682 = vpop.f32.mrb[0].mxu0
  %683 = vmatprep.mubr.f32.mxu0 %v55
  %684 = vmatmul.mubr.f32.gmra.mrb[0].mxu0 %v54
  %v685 = vpop.f32.mrb[0].mxu0
  %v686 = vadd.f32 %v601, %v685
  %v687 = vpop.f32.mrb[0].mxu0
  %688 = vmatprep.mubr.f32.mxu0 %v67
  %689 = vmatmul.mubr.f32.gmra.mrb[0].mxu0 %v66
  %v690 = vpop.f32.mrb[0].mxu0
  %v691 = vadd.f32 %v606, %v690
  %v692 = vpop.f32.mrb[0].mxu0
  %693 = vdwg.mxu0
  %694 = vmatprep.subr.mxu0 0.0
  %695 = vmatpush1.msra.mxu0 %v230
  %696 = vmatprep.subr.mxu0 0.0
  %697 = vmatpush1.msra.mxu0 %v231
  %698 = vmatprep.subr.mxu0 0.0
  %699 = vmatpush1.msra.mxu0 %v232
  %700 = vmatprep.subr.mxu0 0.0
  %701 = vmatpush1.msra.mxu0 %v233
  %702 = vmatprep.subr.mxu0 0.0
  %703 = vmatpush1.msra.mxu0 %v234
  %704 = vmatprep.subr.mxu0 0.0
  %705 = vmatpush1.msra.mxu0 %v235
  %706 = vmatprep.subr.mxu0 0.0
  %707 = vmatpush1.msra.mxu0 %v236
  %708 = vmatprep.subr.mxu0 0.0
  %709 = vmatpush1.msra.mxu0 %v237
  %710 = vmatprep.subr.mxu0 0.0
  %711 = vmatpush1.msra.mxu0 %v238
  %712 = vmatprep.subr.mxu0 0.0
  %713 = vmatpush1.msra.mxu0 %v239
  %714 = vmatprep.subr.mxu0 0.0
  %715 = vmatpush1.msra.mxu0 %v240
  %716 = vmatprep.subr.mxu0 0.0
  %717 = vmatpush1.msra.mxu0 %v241
  %718 = vmatprep.subr.mxu0 0.0
  %719 = vmatpush1.msra.mxu0 %v242
  %720 = vmatprep.subr.mxu0 0.0
  %721 = vmatpush1.msra.mxu0 %v243
  %722 = vmatprep.subr.mxu0 0.0
  %723 = vmatpush1.msra.mxu0 %v244
  %724 = vmatprep.subr.mxu0 0.0
  %725 = vmatpush1.msra.mxu0 %v245
  %726 = vmatprep.subr.mxu0 0.0
  %727 = vmatpush1.msra.mxu0 %v246
  %728 = vmatprep.subr.mxu0 0.0
  %729 = vmatpush1.msra.mxu0 %v247
  %730 = vmatprep.subr.mxu0 0.0
  %731 = vmatpush1.msra.mxu0 %v248
  %732 = vmatprep.subr.mxu0 0.0
  %733 = vmatpush1.msra.mxu0 %v249
  %734 = vmatprep.subr.mxu0 0.0
  %735 = vmatpush1.msra.mxu0 %v250
  %736 = vmatprep.subr.mxu0 0.0
  %737 = vmatpush1.msra.mxu0 %v251
  %738 = vmatprep.subr.mxu0 0.0
  %739 = vmatpush1.msra.mxu0 %v252
  %740 = vmatprep.subr.mxu0 0.0
  %741 = vmatpush1.msra.mxu0 %v253
  %742 = vmatprep.subr.mxu0 0.0
  %743 = vmatpush1.msra.mxu0 %v254
  %744 = vmatprep.subr.mxu0 0.0
  %745 = vmatpush1.msra.mxu0 %v255
  %746 = vmatprep.subr.mxu0 0.0
  %747 = vmatpush1.msra.mxu0 %v256
  %748 = vmatprep.subr.mxu0 0.0
  %749 = vmatpush1.msra.mxu0 %v257
  %750 = vmatprep.subr.mxu0 0.0
  %751 = vmatpush1.msra.mxu0 %v258
  %752 = vmatprep.subr.mxu0 0.0
  %753 = vmatpush1.msra.mxu0 %v259
  %754 = vmatprep.subr.mxu0 0.0
  %755 = vmatpush1.msra.mxu0 %v260
  %756 = vmatprep.subr.mxu0 0.0
  %757 = vmatpush1.msra.mxu0 %v261
  %758 = vmatprep.mubr.f32.mxu0 %v33
  %759 = vmatmul.mubr.f32.gmra.mrb[0].mxu0 %v32
  %v760 = vpop.f32.mrb[0].mxu0
  %v761 = vadd.f32 %v676, %v760
  %v762 = vpop.f32.mrb[0].mxu0
  %763 = vmatprep.mubr.f32.mxu0 %v45
  %764 = vmatmul.mubr.f32.gmra.mrb[0].mxu0 %v44
  %v765 = vpop.f32.mrb[0].mxu0
  %v766 = vadd.f32 %v681, %v765
  %v767 = vpop.f32.mrb[0].mxu0
  %768 = vmatprep.mubr.f32.mxu0 %v57
  %769 = vmatmul.mubr.f32.gmra.mrb[0].mxu0 %v56
  %v770 = vpop.f32.mrb[0].mxu0
  %v771 = vadd.f32 %v686, %v770
  %v772 = vpop.f32.mrb[0].mxu0
  %773 = vmatprep.mubr.f32.mxu0 %v69
  %774 = vmatmul.mubr.f32.gmra.mrb[0].mxu0 %v68
  %v775 = vpop.f32.mrb[0].mxu0
  %v776 = vadd.f32 %v691, %v775
  %v777 = vpop.f32.mrb[0].mxu0
  %778 = vdwg.mxu0
  %779 = vst [vmem:[%s5] sm:$0xff] %v761
  %780 = vst [vmem:[%s5 + $0x8] sm:$0xff] %v766
  %781 = vst [vmem:[%s5 + $0x10] sm:$0xff] %v771
  %782 = vst [vmem:[%s5 + $0x18] sm:$0xff] %v776
  %v783 = vld [vmem:[%s3] sm:$0xff]
  %v784 = vld [vmem:[%s3 + $0x8] sm:$0xff]
  %v785 = vld [vmem:[%s3 + $0x10] sm:$0xff]
  %v786 = vld [vmem:[%s3 + $0x18] sm:$0xff]
  %v787 = vld [vmem:[%s3 + $0x20] sm:$0xff]
  %v788 = vld [vmem:[%s3 + $0x28] sm:$0xff]
  %v789 = vld [vmem:[%s3 + $0x30] sm:$0xff]
  %v790 = vld [vmem:[%s3 + $0x38] sm:$0xff]
  %v791 = vld [vmem:[%s3 + $0x40] sm:$0xff]
  %v792 = vld [vmem:[%s3 + $0x48] sm:$0xff]
  %v793 = vld [vmem:[%s3 + $0x50] sm:$0xff]
  %v794 = vld [vmem:[%s3 + $0x58] sm:$0xff]
  %v795 = vld [vmem:[%s3 + $0x60] sm:$0xff]
  %v796 = vld [vmem:[%s3 + $0x68] sm:$0xff]
  %v797 = vld [vmem:[%s3 + $0x70] sm:$0xff]
  %v798 = vld [vmem:[%s3 + $0x78] sm:$0xff]
  %799 = vmatprep.subr.mxu0 0.0
  %800 = vmatpush1.msra.mxu0 %v783
  %801 = vmatprep.subr.mxu0 0.0
  %802 = vmatpush1.msra.mxu0 %v784
  %803 = vmatprep.subr.mxu0 0.0
  %804 = vmatpush1.msra.mxu0 %v785
  %805 = vmatprep.subr.mxu0 0.0
  %806 = vmatpush1.msra.mxu0 %v786
  %807 = vmatprep.subr.mxu0 0.0
  %808 = vmatpush1.msra.mxu0 %v787
  %809 = vmatprep.subr.mxu0 0.0
  %810 = vmatpush1.msra.mxu0 %v788
  %811 = vmatprep.subr.mxu0 0.0
  %812 = vmatpush1.msra.mxu0 %v789
  %813 = vmatprep.subr.mxu0 0.0
  %814 = vmatpush1.msra.mxu0 %v790
  %815 = vmatprep.subr.mxu0 0.0
  %816 = vmatpush1.msra.mxu0 %v791
  %817 = vmatprep.subr.mxu0 0.0
  %818 = vmatpush1.msra.mxu0 %v792
  %819 = vmatprep.subr.mxu0 0.0
  %820 = vmatpush1.msra.mxu0 %v793
  %821 = vmatprep.subr.mxu0 0.0
  %822 = vmatpush1.msra.mxu0 %v794
  %823 = vmatprep.subr.mxu0 0.0
  %824 = vmatpush1.msra.mxu0 %v795
  %825 = vmatprep.subr.mxu0 0.0
  %826 = vmatpush1.msra.mxu0 %v796
  %827 = vmatprep.subr.mxu0 0.0
  %828 = vmatpush1.msra.mxu0 %v797
  %829 = vmatprep.subr.mxu0 0.0
  %830 = vmatpush1.msra.mxu0 %v798
  %831 = vmatprep.subr.mxu0 0.0
  %832 = vmatpush1.msra.mxu0 0.0
  %833 = vmatprep.subr.mxu0 0.0
  %834 = vmatpush1.msra.mxu0 0.0
  %835 = vmatprep.subr.mxu0 0.0
  %836 = vmatpush1.msra.mxu0 0.0
  %837 = vmatprep.subr.mxu0 0.0
  %838 = vmatpush1.msra.mxu0 0.0
  %839 = vmatprep.subr.mxu0 0.0
  %840 = vmatpush1.msra.mxu0 0.0
  %841 = vmatprep.subr.mxu0 0.0
  %842 = vmatpush1.msra.mxu0 0.0
  %843 = vmatprep.subr.mxu0 0.0
  %844 = vmatpush1.msra.mxu0 0.0
  %845 = vmatprep.subr.mxu0 0.0
  %846 = vmatpush1.msra.mxu0 0.0
  %847 = vmatprep.subr.mxu0 0.0
  %848 = vmatpush1.msra.mxu0 0.0
  %849 = vmatprep.subr.mxu0 0.0
  %850 = vmatpush1.msra.mxu0 0.0
  %851 = vmatprep.subr.mxu0 0.0
  %852 = vmatpush1.msra.mxu0 0.0
  %853 = vmatprep.subr.mxu0 0.0
  %854 = vmatpush1.msra.mxu0 0.0
  %855 = vmatprep.subr.mxu0 0.0
  %856 = vmatpush1.msra.mxu0 0.0
  %857 = vmatprep.subr.mxu0 0.0
  %858 = vmatpush1.msra.mxu0 0.0
  %859 = vmatprep.subr.mxu0 0.0
  %860 = vmatpush1.msra.mxu0 0.0
  %861 = vmatprep.subr.mxu0 0.0
  %862 = vmatpush1.msra.mxu0 0.0
  %863 = vmatprep.mubr.f32.mxu0 0.0
  %864 = vmatmul.mubr.f32.gmra.mrb[0].mxu0 %v761
  %v865 = vpop.f32.mrb[0].mxu0
  %v866 = vadd.f32 0.0, %v865
  %v867 = vpop.f32.mrb[0].mxu0
  %868 = vdwg.mxu0
  %v869 = vadd.f32 %v866, 0.0
  %s870 = scalar_lea.vmem %s3, 128
  %v871 = vld [vmem:[%s870] sm:$0xff]
  %v872 = vld [vmem:[%s870 + $0x8] sm:$0xff]
  %v873 = vld [vmem:[%s870 + $0x10] sm:$0xff]
  %v874 = vld [vmem:[%s870 + $0x18] sm:$0xff]
  %v875 = vld [vmem:[%s870 + $0x20] sm:$0xff]
  %v876 = vld [vmem:[%s870 + $0x28] sm:$0xff]
  %v877 = vld [vmem:[%s870 + $0x30] sm:$0xff]
  %v878 = vld [vmem:[%s870 + $0x38] sm:$0xff]
  %v879 = vld [vmem:[%s870 + $0x40] sm:$0xff]
  %v880 = vld [vmem:[%s870 + $0x48] sm:$0xff]
  %v881 = vld [vmem:[%s870 + $0x50] sm:$0xff]
  %v882 = vld [vmem:[%s870 + $0x58] sm:$0xff]
  %v883 = vld [vmem:[%s870 + $0x60] sm:$0xff]
  %v884 = vld [vmem:[%s870 + $0x68] sm:$0xff]
  %v885 = vld [vmem:[%s870 + $0x70] sm:$0xff]
  %v886 = vld [vmem:[%s870 + $0x78] sm:$0xff]
  %vm889 = vcmask 1046528
  %v890 = vrot.slane %v761, 1
  %v891 = vrot.slane %v766, 1
  %v892 = vsel %vm889, %v890, %v891
  %894 = vmatprep.subr.mxu0 0.0
  %895 = vmatpush1.msra.mxu0 %v871
  %896 = vmatprep.subr.mxu0 0.0
  %897 = vmatpush1.msra.mxu0 %v872
  %898 = vmatprep.subr.mxu0 0.0
  %899 = vmatpush1.msra.mxu0 %v873
  %900 = vmatprep.subr.mxu0 0.0
  %901 = vmatpush1.msra.mxu0 %v874
  %902 = vmatprep.subr.mxu0 0.0
  %903 = vmatpush1.msra.mxu0 %v875
  %904 = vmatprep.subr.mxu0 0.0
  %905 = vmatpush1.msra.mxu0 %v876
  %906 = vmatprep.subr.mxu0 0.0
  %907 = vmatpush1.msra.mxu0 %v877
  %908 = vmatprep.subr.mxu0 0.0
  %909 = vmatpush1.msra.mxu0 %v878
  %910 = vmatprep.subr.mxu0 0.0
  %911 = vmatpush1.msra.mxu0 %v879
  %912 = vmatprep.subr.mxu0 0.0
  %913 = vmatpush1.msra.mxu0 %v880
  %914 = vmatprep.subr.mxu0 0.0
  %915 = vmatpush1.msra.mxu0 %v881
  %916 = vmatprep.subr.mxu0 0.0
  %917 = vmatpush1.msra.mxu0 %v882
  %918 = vmatprep.subr.mxu0 0.0
  %919 = vmatpush1.msra.mxu0 %v883
  %920 = vmatprep.subr.mxu0 0.0
  %921 = vmatpush1.msra.mxu0 %v884
  %922 = vmatprep.subr.mxu0 0.0
  %923 = vmatpush1.msra.mxu0 %v885
  %924 = vmatprep.subr.mxu0 0.0
  %925 = vmatpush1.msra.mxu0 %v886
  %926 = vmatprep.subr.mxu0 0.0
  %927 = vmatpush1.msra.mxu0 0.0
  %928 = vmatprep.subr.mxu0 0.0
  %929 = vmatpush1.msra.mxu0 0.0
  %930 = vmatprep.subr.mxu0 0.0
  %931 = vmatpush1.msra.mxu0 0.0
  %932 = vmatprep.subr.mxu0 0.0
  %933 = vmatpush1.msra.mxu0 0.0
  %934 = vmatprep.subr.mxu0 0.0
  %935 = vmatpush1.msra.mxu0 0.0
  %936 = vmatprep.subr.mxu0 0.0
  %937 = vmatpush1.msra.mxu0 0.0
  %938 = vmatprep.subr.mxu0 0.0
  %939 = vmatpush1.msra.mxu0 0.0
  %940 = vmatprep.subr.mxu0 0.0
  %941 = vmatpush1.msra.mxu0 0.0
  %942 = vmatprep.subr.mxu0 0.0
  %943 = vmatpush1.msra.mxu0 0.0
  %944 = vmatprep.subr.mxu0 0.0
  %945 = vmatpush1.msra.mxu0 0.0
  %946 = vmatprep.subr.mxu0 0.0
  %947 = vmatpush1.msra.mxu0 0.0
  %948 = vmatprep.subr.mxu0 0.0
  %949 = vmatpush1.msra.mxu0 0.0
  %950 = vmatprep.subr.mxu0 0.0
  %951 = vmatpush1.msra.mxu0 0.0
  %952 = vmatprep.subr.mxu0 0.0
  %953 = vmatpush1.msra.mxu0 0.0
  %954 = vmatprep.subr.mxu0 0.0
  %955 = vmatpush1.msra.mxu0 0.0
  %956 = vmatprep.subr.mxu0 0.0
  %957 = vmatpush1.msra.mxu0 0.0
  %958 = vmatprep.mubr.f32.mxu0 0.0
  %959 = vmatmul.mubr.f32.gmra.mrb[0].mxu0 %v892
  %v960 = vpop.f32.mrb[0].mxu0
  %v961 = vadd.f32 0.0, %v960
  %v962 = vpop.f32.mrb[0].mxu0
  %963 = vdwg.mxu0
  %v964 = vadd.f32 %v869, %v961
  %s965 = scalar_lea.vmem %s3, 256
  %v966 = vld [vmem:[%s965] sm:$0xff]
  %v967 = vld [vmem:[%s965 + $0x8] sm:$0xff]
  %v968 = vld [vmem:[%s965 + $0x10] sm:$0xff]
  %v969 = vld [vmem:[%s965 + $0x18] sm:$0xff]
  %v970 = vld [vmem:[%s965 + $0x20] sm:$0xff]
  %v971 = vld [vmem:[%s965 + $0x28] sm:$0xff]
  %v972 = vld [vmem:[%s965 + $0x30] sm:$0xff]
  %v973 = vld [vmem:[%s965 + $0x38] sm:$0xff]
  %v974 = vld [vmem:[%s965 + $0x40] sm:$0xff]
  %v975 = vld [vmem:[%s965 + $0x48] sm:$0xff]
  %v976 = vld [vmem:[%s965 + $0x50] sm:$0xff]
  %v977 = vld [vmem:[%s965 + $0x58] sm:$0xff]
  %v978 = vld [vmem:[%s965 + $0x60] sm:$0xff]
  %v979 = vld [vmem:[%s965 + $0x68] sm:$0xff]
  %v980 = vld [vmem:[%s965 + $0x70] sm:$0xff]
  %v981 = vld [vmem:[%s965 + $0x78] sm:$0xff]
  %vm982 = vcmask 1045504
  %v983 = vrot.slane %v761, 2
  %v984 = vrot.slane %v766, 2
  %v985 = vsel %vm982, %v983, %v984
  %987 = vmatprep.subr.mxu0 0.0
  %988 = vmatpush1.msra.mxu0 %v966
  %989 = vmatprep.subr.mxu0 0.0
  %990 = vmatpush1.msra.mxu0 %v967
  %991 = vmatprep.subr.mxu0 0.0
  %992 = vmatpush1.msra.mxu0 %v968
  %993 = vmatprep.subr.mxu0 0.0
  %994 = vmatpush1.msra.mxu0 %v969
  %995 = vmatprep.subr.mxu0 0.0
  %996 = vmatpush1.msra.mxu0 %v970
  %997 = vmatprep.subr.mxu0 0.0
  %998 = vmatpush1.msra.mxu0 %v971
  %999 = vmatprep.subr.mxu0 0.0
  %1000 = vmatpush1.msra.mxu0 %v972
  %1001 = vmatprep.subr.mxu0 0.0
  %1002 = vmatpush1.msra.mxu0 %v973
  %1003 = vmatprep.subr.mxu0 0.0
  %1004 = vmatpush1.msra.mxu0 %v974
  %1005 = vmatprep.subr.mxu0 0.0
  %1006 = vmatpush1.msra.mxu0 %v975
  %1007 = vmatprep.subr.mxu0 0.0
  %1008 = vmatpush1.msra.mxu0 %v976
  %1009 = vmatprep.subr.mxu0 0.0
  %1010 = vmatpush1.msra.mxu0 %v977
  %1011 = vmatprep.subr.mxu0 0.0
  %1012 = vmatpush1.msra.mxu0 %v978
  %1013 = vmatprep.subr.mxu0 0.0
  %1014 = vmatpush1.msra.mxu0 %v979
  %1015 = vmatprep.subr.mxu0 0.0
  %1016 = vmatpush1.msra.mxu0 %v980
  %1017 = vmatprep.subr.mxu0 0.0
  %1018 = vmatpush1.msra.mxu0 %v981
  %1019 = vmatprep.subr.mxu0 0.0
  %1020 = vmatpush1.msra.mxu0 0.0
  %1021 = vmatprep.subr.mxu0 0.0
  %1022 = vmatpush1.msra.mxu0 0.0
  %1023 = vmatprep.subr.mxu0 0.0
  %1024 = vmatpush1.msra.mxu0 0.0
  %1025 = vmatprep.subr.mxu0 0.0
  %1026 = vmatpush1.msra.mxu0 0.0
  %1027 = vmatprep.subr.mxu0 0.0
  %1028 = vmatpush1.msra.mxu0 0.0
  %1029 = vmatprep.subr.mxu0 0.0
  %1030 = vmatpush1.msra.mxu0 0.0
  %1031 = vmatprep.subr.mxu0 0.0
  %1032 = vmatpush1.msra.mxu0 0.0
  %1033 = vmatprep.subr.mxu0 0.0
  %1034 = vmatpush1.msra.mxu0 0.0
  %1035 = vmatprep.subr.mxu0 0.0
  %1036 = vmatpush1.msra.mxu0 0.0
  %1037 = vmatprep.subr.mxu0 0.0
  %1038 = vmatpush1.msra.mxu0 0.0
  %1039 = vmatprep.subr.mxu0 0.0
  %1040 = vmatpush1.msra.mxu0 0.0
  %1041 = vmatprep.subr.mxu0 0.0
  %1042 = vmatpush1.msra.mxu0 0.0
  %1043 = vmatprep.subr.mxu0 0.0
  %1044 = vmatpush1.msra.mxu0 0.0
  %1045 = vmatprep.subr.mxu0 0.0
  %1046 = vmatpush1.msra.mxu0 0.0
  %1047 = vmatprep.subr.mxu0 0.0
  %1048 = vmatpush1.msra.mxu0 0.0
  %1049 = vmatprep.subr.mxu0 0.0
  %1050 = vmatpush1.msra.mxu0 0.0
  %1051 = vmatprep.mubr.f32.mxu0 0.0
  %1052 = vmatmul.mubr.f32.gmra.mrb[0].mxu0 %v985
  %v1053 = vpop.f32.mrb[0].mxu0
  %v1054 = vadd.f32 0.0, %v1053
  %v1055 = vpop.f32.mrb[0].mxu0
  %1056 = vdwg.mxu0
  %v1057 = vadd.f32 %v964, %v1054
  %s1058 = scalar_lea.vmem %s3, 384
  %v1059 = vld [vmem:[%s1058] sm:$0xff]
  %v1060 = vld [vmem:[%s1058 + $0x8] sm:$0xff]
  %v1061 = vld [vmem:[%s1058 + $0x10] sm:$0xff]
  %v1062 = vld [vmem:[%s1058 + $0x18] sm:$0xff]
  %v1063 = vld [vmem:[%s1058 + $0x20] sm:$0xff]
  %v1064 = vld [vmem:[%s1058 + $0x28] sm:$0xff]
  %v1065 = vld [vmem:[%s1058 + $0x30] sm:$0xff]
  %v1066 = vld [vmem:[%s1058 + $0x38] sm:$0xff]
  %v1067 = vld [vmem:[%s1058 + $0x40] sm:$0xff]
  %v1068 = vld [vmem:[%s1058 + $0x48] sm:$0xff]
  %v1069 = vld [vmem:[%s1058 + $0x50] sm:$0xff]
  %v1070 = vld [vmem:[%s1058 + $0x58] sm:$0xff]
  %v1071 = vld [vmem:[%s1058 + $0x60] sm:$0xff]
  %v1072 = vld [vmem:[%s1058 + $0x68] sm:$0xff]
  %v1073 = vld [vmem:[%s1058 + $0x70] sm:$0xff]
  %v1074 = vld [vmem:[%s1058 + $0x78] sm:$0xff]
  %vm1075 = vcmask 1044480
  %v1076 = vrot.slane %v761, 3
  %v1077 = vrot.slane %v766, 3
  %v1078 = vsel %vm1075, %v1076, %v1077
  %1080 = vmatprep.subr.mxu0 0.0
  %1081 = vmatpush1.msra.mxu0 %v1059
  %1082 = vmatprep.subr.mxu0 0.0
  %1083 = vmatpush1.msra.mxu0 %v1060
  %1084 = vmatprep.subr.mxu0 0.0
  %1085 = vmatpush1.msra.mxu0 %v1061
  %1086 = vmatprep.subr.mxu0 0.0
  %1087 = vmatpush1.msra.mxu0 %v1062
  %1088 = vmatprep.subr.mxu0 0.0
  %1089 = vmatpush1.msra.mxu0 %v1063
  %1090 = vmatprep.subr.mxu0 0.0
  %1091 = vmatpush1.msra.mxu0 %v1064
  %1092 = vmatprep.subr.mxu0 0.0
  %1093 = vmatpush1.msra.mxu0 %v1065
  %1094 = vmatprep.subr.mxu0 0.0
  %1095 = vmatpush1.msra.mxu0 %v1066
  %1096 = vmatprep.subr.mxu0 0.0
  %1097 = vmatpush1.msra.mxu0 %v1067
  %1098 = vmatprep.subr.mxu0 0.0
  %1099 = vmatpush1.msra.mxu0 %v1068
  %1100 = vmatprep.subr.mxu0 0.0
  %1101 = vmatpush1.msra.mxu0 %v1069
  %1102 = vmatprep.subr.mxu0 0.0
  %1103 = vmatpush1.msra.mxu0 %v1070
  %1104 = vmatprep.subr.mxu0 0.0
  %1105 = vmatpush1.msra.mxu0 %v1071
  %1106 = vmatprep.subr.mxu0 0.0
  %1107 = vmatpush1.msra.mxu0 %v1072
  %1108 = vmatprep.subr.mxu0 0.0
  %1109 = vmatpush1.msra.mxu0 %v1073
  %1110 = vmatprep.subr.mxu0 0.0
  %1111 = vmatpush1.msra.mxu0 %v1074
  %1112 = vmatprep.subr.mxu0 0.0
  %1113 = vmatpush1.msra.mxu0 0.0
  %1114 = vmatprep.subr.mxu0 0.0
  %1115 = vmatpush1.msra.mxu0 0.0
  %1116 = vmatprep.subr.mxu0 0.0
  %1117 = vmatpush1.msra.mxu0 0.0
  %1118 = vmatprep.subr.mxu0 0.0
  %1119 = vmatpush1.msra.mxu0 0.0
  %1120 = vmatprep.subr.mxu0 0.0
  %1121 = vmatpush1.msra.mxu0 0.0
  %1122 = vmatprep.subr.mxu0 0.0
  %1123 = vmatpush1.msra.mxu0 0.0
  %1124 = vmatprep.subr.mxu0 0.0
  %1125 = vmatpush1.msra.mxu0 0.0
  %1126 = vmatprep.subr.mxu0 0.0
  %1127 = vmatpush1.msra.mxu0 0.0
  %1128 = vmatprep.subr.mxu0 0.0
  %1129 = vmatpush1.msra.mxu0 0.0
  %1130 = vmatprep.subr.mxu0 0.0
  %1131 = vmatpush1.msra.mxu0 0.0
  %1132 = vmatprep.subr.mxu0 0.0
  %1133 = vmatpush1.msra.mxu0 0.0
  %1134 = vmatprep.subr.mxu0 0.0
  %1135 = vmatpush1.msra.mxu0 0.0
  %1136 = vmatprep.subr.mxu0 0.0
  %1137 = vmatpush1.msra.mxu0 0.0
  %1138 = vmatprep.subr.mxu0 0.0
  %1139 = vmatpush1.msra.mxu0 0.0
  %1140 = vmatprep.subr.mxu0 0.0
  %1141 = vmatpush1.msra.mxu0 0.0
  %1142 = vmatprep.subr.mxu0 0.0
  %1143 = vmatpush1.msra.mxu0 0.0
  %1144 = vmatprep.mubr.f32.mxu0 0.0
  %1145 = vmatmul.mubr.f32.gmra.mrb[0].mxu0 %v1078
  %v1146 = vpop.f32.mrb[0].mxu0
  %v1147 = vadd.f32 0.0, %v1146
  %v1148 = vpop.f32.mrb[0].mxu0
  %1149 = vdwg.mxu0
  %v1150 = vadd.f32 %v1057, %v1147
  %s1151 = scalar_lea.vmem %s3, 512
  %v1152 = vld [vmem:[%s1151] sm:$0xff]
  %v1153 = vld [vmem:[%s1151 + $0x8] sm:$0xff]
  %v1154 = vld [vmem:[%s1151 + $0x10] sm:$0xff]
  %v1155 = vld [vmem:[%s1151 + $0x18] sm:$0xff]
  %v1156 = vld [vmem:[%s1151 + $0x20] sm:$0xff]
  %v1157 = vld [vmem:[%s1151 + $0x28] sm:$0xff]
  %v1158 = vld [vmem:[%s1151 + $0x30] sm:$0xff]
  %v1159 = vld [vmem:[%s1151 + $0x38] sm:$0xff]
  %v1160 = vld [vmem:[%s1151 + $0x40] sm:$0xff]
  %v1161 = vld [vmem:[%s1151 + $0x48] sm:$0xff]
  %v1162 = vld [vmem:[%s1151 + $0x50] sm:$0xff]
  %v1163 = vld [vmem:[%s1151 + $0x58] sm:$0xff]
  %v1164 = vld [vmem:[%s1151 + $0x60] sm:$0xff]
  %v1165 = vld [vmem:[%s1151 + $0x68] sm:$0xff]
  %v1166 = vld [vmem:[%s1151 + $0x70] sm:$0xff]
  %v1167 = vld [vmem:[%s1151 + $0x78] sm:$0xff]
  %vm1168 = vcmask 1043456
  %v1169 = vrot.slane %v761, 4
  %v1170 = vrot.slane %v766, 4
  %v1171 = vsel %vm1168, %v1169, %v1170
  %1173 = vmatprep.subr.mxu0 0.0
  %1174 = vmatpush1.msra.mxu0 %v1152
  %1175 = vmatprep.subr.mxu0 0.0
  %1176 = vmatpush1.msra.mxu0 %v1153
  %1177 = vmatprep.subr.mxu0 0.0
  %1178 = vmatpush1.msra.mxu0 %v1154
  %1179 = vmatprep.subr.mxu0 0.0
  %1180 = vmatpush1.msra.mxu0 %v1155
  %1181 = vmatprep.subr.mxu0 0.0
  %1182 = vmatpush1.msra.mxu0 %v1156
  %1183 = vmatprep.subr.mxu0 0.0
  %1184 = vmatpush1.msra.mxu0 %v1157
  %1185 = vmatprep.subr.mxu0 0.0
  %1186 = vmatpush1.msra.mxu0 %v1158
  %1187 = vmatprep.subr.mxu0 0.0
  %1188 = vmatpush1.msra.mxu0 %v1159
  %1189 = vmatprep.subr.mxu0 0.0
  %1190 = vmatpush1.msra.mxu0 %v1160
  %1191 = vmatprep.subr.mxu0 0.0
  %1192 = vmatpush1.msra.mxu0 %v1161
  %1193 = vmatprep.subr.mxu0 0.0
  %1194 = vmatpush1.msra.mxu0 %v1162
  %1195 = vmatprep.subr.mxu0 0.0
  %1196 = vmatpush1.msra.mxu0 %v1163
  %1197 = vmatprep.subr.mxu0 0.0
  %1198 = vmatpush1.msra.mxu0 %v1164
  %1199 = vmatprep.subr.mxu0 0.0
  %1200 = vmatpush1.msra.mxu0 %v1165
  %1201 = vmatprep.subr.mxu0 0.0
  %1202 = vmatpush1.msra.mxu0 %v1166
  %1203 = vmatprep.subr.mxu0 0.0
  %1204 = vmatpush1.msra.mxu0 %v1167
  %1205 = vmatprep.subr.mxu0 0.0
  %1206 = vmatpush1.msra.mxu0 0.0
  %1207 = vmatprep.subr.mxu0 0.0
  %1208 = vmatpush1.msra.mxu0 0.0
  %1209 = vmatprep.subr.mxu0 0.0
  %1210 = vmatpush1.msra.mxu0 0.0
  %1211 = vmatprep.subr.mxu0 0.0
  %1212 = vmatpush1.msra.mxu0 0.0
  %1213 = vmatprep.subr.mxu0 0.0
  %1214 = vmatpush1.msra.mxu0 0.0
  %1215 = vmatprep.subr.mxu0 0.0
  %1216 = vmatpush1.msra.mxu0 0.0
  %1217 = vmatprep.subr.mxu0 0.0
  %1218 = vmatpush1.msra.mxu0 0.0
  %1219 = vmatprep.subr.mxu0 0.0
  %1220 = vmatpush1.msra.mxu0 0.0
  %1221 = vmatprep.subr.mxu0 0.0
  %1222 = vmatpush1.msra.mxu0 0.0
  %1223 = vmatprep.subr.mxu0 0.0
  %1224 = vmatpush1.msra.mxu0 0.0
  %1225 = vmatprep.subr.mxu0 0.0
  %1226 = vmatpush1.msra.mxu0 0.0
  %1227 = vmatprep.subr.mxu0 0.0
  %1228 = vmatpush1.msra.mxu0 0.0
  %1229 = vmatprep.subr.mxu0 0.0
  %1230 = vmatpush1.msra.mxu0 0.0
  %1231 = vmatprep.subr.mxu0 0.0
  %1232 = vmatpush1.msra.mxu0 0.0
  %1233 = vmatprep.subr.mxu0 0.0
  %1234 = vmatpush1.msra.mxu0 0.0
  %1235 = vmatprep.subr.mxu0 0.0
  %1236 = vmatpush1.msra.mxu0 0.0
  %1237 = vmatprep.mubr.f32.mxu0 0.0
  %1238 = vmatmul.mubr.f32.gmra.mrb[0].mxu0 %v1171
  %v1239 = vpop.f32.mrb[0].mxu0
  %v1240 = vadd.f32 0.0, %v1239
  %v1241 = vpop.f32.mrb[0].mxu0
  %1242 = vdwg.mxu0
  %v1243 = vadd.f32 %v1150, %v1240
  %s1244 = scalar_lea.vmem %s3, 640
  %v1245 = vld [vmem:[%s1244] sm:$0xff]
  %v1246 = vld [vmem:[%s1244 + $0x8] sm:$0xff]
  %v1247 = vld [vmem:[%s1244 + $0x10] sm:$0xff]
  %v1248 = vld [vmem:[%s1244 + $0x18] sm:$0xff]
  %v1249 = vld [vmem:[%s1244 + $0x20] sm:$0xff]
  %v1250 = vld [vmem:[%s1244 + $0x28] sm:$0xff]
  %v1251 = vld [vmem:[%s1244 + $0x30] sm:$0xff]
  %v1252 = vld [vmem:[%s1244 + $0x38] sm:$0xff]
  %v1253 = vld [vmem:[%s1244 + $0x40] sm:$0xff]
  %v1254 = vld [vmem:[%s1244 + $0x48] sm:$0xff]
  %v1255 = vld [vmem:[%s1244 + $0x50] sm:$0xff]
  %v1256 = vld [vmem:[%s1244 + $0x58] sm:$0xff]
  %v1257 = vld [vmem:[%s1244 + $0x60] sm:$0xff]
  %v1258 = vld [vmem:[%s1244 + $0x68] sm:$0xff]
  %v1259 = vld [vmem:[%s1244 + $0x70] sm:$0xff]
  %v1260 = vld [vmem:[%s1244 + $0x78] sm:$0xff]
  %vm1261 = vcmask 1042432
  %v1262 = vrot.slane %v761, 5
  %v1263 = vrot.slane %v766, 5
  %v1264 = vsel %vm1261, %v1262, %v1263
  %1266 = vmatprep.subr.mxu0 0.0
  %1267 = vmatpush1.msra.mxu0 %v1245
  %1268 = vmatprep.subr.mxu0 0.0
  %1269 = vmatpush1.msra.mxu0 %v1246
  %1270 = vmatprep.subr.mxu0 0.0
  %1271 = vmatpush1.msra.mxu0 %v1247
  %1272 = vmatprep.subr.mxu0 0.0
  %1273 = vmatpush1.msra.mxu0 %v1248
  %1274 = vmatprep.subr.mxu0 0.0
  %1275 = vmatpush1.msra.mxu0 %v1249
  %1276 = vmatprep.subr.mxu0 0.0
  %1277 = vmatpush1.msra.mxu0 %v1250
  %1278 = vmatprep.subr.mxu0 0.0
  %1279 = vmatpush1.msra.mxu0 %v1251
  %1280 = vmatprep.subr.mxu0 0.0
  %1281 = vmatpush1.msra.mxu0 %v1252
  %1282 = vmatprep.subr.mxu0 0.0
  %1283 = vmatpush1.msra.mxu0 %v1253
  %1284 = vmatprep.subr.mxu0 0.0
  %1285 = vmatpush1.msra.mxu0 %v1254
  %1286 = vmatprep.subr.mxu0 0.0
  %1287 = vmatpush1.msra.mxu0 %v1255
  %1288 = vmatprep.subr.mxu0 0.0
  %1289 = vmatpush1.msra.mxu0 %v1256
  %1290 = vmatprep.subr.mxu0 0.0
  %1291 = vmatpush1.msra.mxu0 %v1257
  %1292 = vmatprep.subr.mxu0 0.0
  %1293 = vmatpush1.msra.mxu0 %v1258
  %1294 = vmatprep.subr.mxu0 0.0
  %1295 = vmatpush1.msra.mxu0 %v1259
  %1296 = vmatprep.subr.mxu0 0.0
  %1297 = vmatpush1.msra.mxu0 %v1260
  %1298 = vmatprep.subr.mxu0 0.0
  %1299 = vmatpush1.msra.mxu0 0.0
  %1300 = vmatprep.subr.mxu0 0.0
  %1301 = vmatpush1.msra.mxu0 0.0
  %1302 = vmatprep.subr.mxu0 0.0
  %1303 = vmatpush1.msra.mxu0 0.0
  %1304 = vmatprep.subr.mxu0 0.0
  %1305 = vmatpush1.msra.mxu0 0.0
  %1306 = vmatprep.subr.mxu0 0.0
  %1307 = vmatpush1.msra.mxu0 0.0
  %1308 = vmatprep.subr.mxu0 0.0
  %1309 = vmatpush1.msra.mxu0 0.0
  %1310 = vmatprep.subr.mxu0 0.0
  %1311 = vmatpush1.msra.mxu0 0.0
  %1312 = vmatprep.subr.mxu0 0.0
  %1313 = vmatpush1.msra.mxu0 0.0
  %1314 = vmatprep.subr.mxu0 0.0
  %1315 = vmatpush1.msra.mxu0 0.0
  %1316 = vmatprep.subr.mxu0 0.0
  %1317 = vmatpush1.msra.mxu0 0.0
  %1318 = vmatprep.subr.mxu0 0.0
  %1319 = vmatpush1.msra.mxu0 0.0
  %1320 = vmatprep.subr.mxu0 0.0
  %1321 = vmatpush1.msra.mxu0 0.0
  %1322 = vmatprep.subr.mxu0 0.0
  %1323 = vmatpush1.msra.mxu0 0.0
  %1324 = vmatprep.subr.mxu0 0.0
  %1325 = vmatpush1.msra.mxu0 0.0
  %1326 = vmatprep.subr.mxu0 0.0
  %1327 = vmatpush1.msra.mxu0 0.0
  %1328 = vmatprep.subr.mxu0 0.0
  %1329 = vmatpush1.msra.mxu0 0.0
  %1330 = vmatprep.mubr.f32.mxu0 0.0
  %1331 = vmatmul.mubr.f32.gmra.mrb[0].mxu0 %v1264
  %v1332 = vpop.f32.mrb[0].mxu0
  %v1333 = vadd.f32 0.0, %v1332
  %v1334 = vpop.f32.mrb[0].mxu0
  %1335 = vdwg.mxu0
  %v1336 = vadd.f32 %v1243, %v1333
  %s1337 = scalar_lea.vmem %s3, 768
  %v1338 = vld [vmem:[%s1337] sm:$0xff]
  %v1339 = vld [vmem:[%s1337 + $0x8] sm:$0xff]
  %v1340 = vld [vmem:[%s1337 + $0x10] sm:$0xff]
  %v1341 = vld [vmem:[%s1337 + $0x18] sm:$0xff]
  %v1342 = vld [vmem:[%s1337 + $0x20] sm:$0xff]
  %v1343 = vld [vmem:[%s1337 + $0x28] sm:$0xff]
  %v1344 = vld [vmem:[%s1337 + $0x30] sm:$0xff]
  %v1345 = vld [vmem:[%s1337 + $0x38] sm:$0xff]
  %v1346 = vld [vmem:[%s1337 + $0x40] sm:$0xff]
  %v1347 = vld [vmem:[%s1337 + $0x48] sm:$0xff]
  %v1348 = vld [vmem:[%s1337 + $0x50] sm:$0xff]
  %v1349 = vld [vmem:[%s1337 + $0x58] sm:$0xff]
  %v1350 = vld [vmem:[%s1337 + $0x60] sm:$0xff]
  %v1351 = vld [vmem:[%s1337 + $0x68] sm:$0xff]
  %v1352 = vld [vmem:[%s1337 + $0x70] sm:$0xff]
  %v1353 = vld [vmem:[%s1337 + $0x78] sm:$0xff]
  %vm1354 = vcmask 1041408
  %v1355 = vrot.slane %v761, 6
  %v1356 = vrot.slane %v766, 6
  %v1357 = vsel %vm1354, %v1355, %v1356
  %1359 = vmatprep.subr.mxu0 0.0
  %1360 = vmatpush1.msra.mxu0 %v1338
  %1361 = vmatprep.subr.mxu0 0.0
  %1362 = vmatpush1.msra.mxu0 %v1339
  %1363 = vmatprep.subr.mxu0 0.0
  %1364 = vmatpush1.msra.mxu0 %v1340
  %1365 = vmatprep.subr.mxu0 0.0
  %1366 = vmatpush1.msra.mxu0 %v1341
  %1367 = vmatprep.subr.mxu0 0.0
  %1368 = vmatpush1.msra.mxu0 %v1342
  %1369 = vmatprep.subr.mxu0 0.0
  %1370 = vmatpush1.msra.mxu0 %v1343
  %1371 = vmatprep.subr.mxu0 0.0
  %1372 = vmatpush1.msra.mxu0 %v1344
  %1373 = vmatprep.subr.mxu0 0.0
  %1374 = vmatpush1.msra.mxu0 %v1345
  %1375 = vmatprep.subr.mxu0 0.0
  %1376 = vmatpush1.msra.mxu0 %v1346
  %1377 = vmatprep.subr.mxu0 0.0
  %1378 = vmatpush1.msra.mxu0 %v1347
  %1379 = vmatprep.subr.mxu0 0.0
  %1380 = vmatpush1.msra.mxu0 %v1348
  %1381 = vmatprep.subr.mxu0 0.0
  %1382 = vmatpush1.msra.mxu0 %v1349
  %1383 = vmatprep.subr.mxu0 0.0
  %1384 = vmatpush1.msra.mxu0 %v1350
  %1385 = vmatprep.subr.mxu0 0.0
  %1386 = vmatpush1.msra.mxu0 %v1351
  %1387 = vmatprep.subr.mxu0 0.0
  %1388 = vmatpush1.msra.mxu0 %v1352
  %1389 = vmatprep.subr.mxu0 0.0
  %1390 = vmatpush1.msra.mxu0 %v1353
  %1391 = vmatprep.subr.mxu0 0.0
  %1392 = vmatpush1.msra.mxu0 0.0
  %1393 = vmatprep.subr.mxu0 0.0
  %1394 = vmatpush1.msra.mxu0 0.0
  %1395 = vmatprep.subr.mxu0 0.0
  %1396 = vmatpush1.msra.mxu0 0.0
  %1397 = vmatprep.subr.mxu0 0.0
  %1398 = vmatpush1.msra.mxu0 0.0
  %1399 = vmatprep.subr.mxu0 0.0
  %1400 = vmatpush1.msra.mxu0 0.0
  %1401 = vmatprep.subr.mxu0 0.0
  %1402 = vmatpush1.msra.mxu0 0.0
  %1403 = vmatprep.subr.mxu0 0.0
  %1404 = vmatpush1.msra.mxu0 0.0
  %1405 = vmatprep.subr.mxu0 0.0
  %1406 = vmatpush1.msra.mxu0 0.0
  %1407 = vmatprep.subr.mxu0 0.0
  %1408 = vmatpush1.msra.mxu0 0.0
  %1409 = vmatprep.subr.mxu0 0.0
  %1410 = vmatpush1.msra.mxu0 0.0
  %1411 = vmatprep.subr.mxu0 0.0
  %1412 = vmatpush1.msra.mxu0 0.0
  %1413 = vmatprep.subr.mxu0 0.0
  %1414 = vmatpush1.msra.mxu0 0.0
  %1415 = vmatprep.subr.mxu0 0.0
  %1416 = vmatpush1.msra.mxu0 0.0
  %1417 = vmatprep.subr.mxu0 0.0
  %1418 = vmatpush1.msra.mxu0 0.0
  %1419 = vmatprep.subr.mxu0 0.0
  %1420 = vmatpush1.msra.mxu0 0.0
  %1421 = vmatprep.subr.mxu0 0.0
  %1422 = vmatpush1.msra.mxu0 0.0
  %1423 = vmatprep.mubr.f32.mxu0 0.0
  %1424 = vmatmul.mubr.f32.gmra.mrb[0].mxu0 %v1357
  %v1425 = vpop.f32.mrb[0].mxu0
  %v1426 = vadd.f32 0.0, %v1425
  %v1427 = vpop.f32.mrb[0].mxu0
  %1428 = vdwg.mxu0
  %v1429 = vadd.f32 %v1336, %v1426
  %s1430 = scalar_lea.vmem %s3, 896
  %v1431 = vld [vmem:[%s1430] sm:$0xff]
  %v1432 = vld [vmem:[%s1430 + $0x8] sm:$0xff]
  %v1433 = vld [vmem:[%s1430 + $0x10] sm:$0xff]
  %v1434 = vld [vmem:[%s1430 + $0x18] sm:$0xff]
  %v1435 = vld [vmem:[%s1430 + $0x20] sm:$0xff]
  %v1436 = vld [vmem:[%s1430 + $0x28] sm:$0xff]
  %v1437 = vld [vmem:[%s1430 + $0x30] sm:$0xff]
  %v1438 = vld [vmem:[%s1430 + $0x38] sm:$0xff]
  %v1439 = vld [vmem:[%s1430 + $0x40] sm:$0xff]
  %v1440 = vld [vmem:[%s1430 + $0x48] sm:$0xff]
  %v1441 = vld [vmem:[%s1430 + $0x50] sm:$0xff]
  %v1442 = vld [vmem:[%s1430 + $0x58] sm:$0xff]
  %v1443 = vld [vmem:[%s1430 + $0x60] sm:$0xff]
  %v1444 = vld [vmem:[%s1430 + $0x68] sm:$0xff]
  %v1445 = vld [vmem:[%s1430 + $0x70] sm:$0xff]
  %v1446 = vld [vmem:[%s1430 + $0x78] sm:$0xff]
  %vm1447 = vcmask 1040384
  %v1448 = vrot.slane %v761, 7
  %v1449 = vrot.slane %v766, 7
  %v1450 = vsel %vm1447, %v1448, %v1449
  %1452 = vmatprep.subr.mxu0 0.0
  %1453 = vmatpush1.msra.mxu0 %v1431
  %1454 = vmatprep.subr.mxu0 0.0
  %1455 = vmatpush1.msra.mxu0 %v1432
  %1456 = vmatprep.subr.mxu0 0.0
  %1457 = vmatpush1.msra.mxu0 %v1433
  %1458 = vmatprep.subr.mxu0 0.0
  %1459 = vmatpush1.msra.mxu0 %v1434
  %1460 = vmatprep.subr.mxu0 0.0
  %1461 = vmatpush1.msra.mxu0 %v1435
  %1462 = vmatprep.subr.mxu0 0.0
  %1463 = vmatpush1.msra.mxu0 %v1436
  %1464 = vmatprep.subr.mxu0 0.0
  %1465 = vmatpush1.msra.mxu0 %v1437
  %1466 = vmatprep.subr.mxu0 0.0
  %1467 = vmatpush1.msra.mxu0 %v1438
  %1468 = vmatprep.subr.mxu0 0.0
  %1469 = vmatpush1.msra.mxu0 %v1439
  %1470 = vmatprep.subr.mxu0 0.0
  %1471 = vmatpush1.msra.mxu0 %v1440
  %1472 = vmatprep.subr.mxu0 0.0
  %1473 = vmatpush1.msra.mxu0 %v1441
  %1474 = vmatprep.subr.mxu0 0.0
  %1475 = vmatpush1.msra.mxu0 %v1442
  %1476 = vmatprep.subr.mxu0 0.0
  %1477 = vmatpush1.msra.mxu0 %v1443
  %1478 = vmatprep.subr.mxu0 0.0
  %1479 = vmatpush1.msra.mxu0 %v1444
  %1480 = vmatprep.subr.mxu0 0.0
  %1481 = vmatpush1.msra.mxu0 %v1445
  %1482 = vmatprep.subr.mxu0 0.0
  %1483 = vmatpush1.msra.mxu0 %v1446
  %1484 = vmatprep.subr.mxu0 0.0
  %1485 = vmatpush1.msra.mxu0 0.0
  %1486 = vmatprep.subr.mxu0 0.0
  %1487 = vmatpush1.msra.mxu0 0.0
  %1488 = vmatprep.subr.mxu0 0.0
  %1489 = vmatpush1.msra.mxu0 0.0
  %1490 = vmatprep.subr.mxu0 0.0
  %1491 = vmatpush1.msra.mxu0 0.0
  %1492 = vmatprep.subr.mxu0 0.0
  %1493 = vmatpush1.msra.mxu0 0.0
  %1494 = vmatprep.subr.mxu0 0.0
  %1495 = vmatpush1.msra.mxu0 0.0
  %1496 = vmatprep.subr.mxu0 0.0
  %1497 = vmatpush1.msra.mxu0 0.0
  %1498 = vmatprep.subr.mxu0 0.0
  %1499 = vmatpush1.msra.mxu0 0.0
  %1500 = vmatprep.subr.mxu0 0.0
  %1501 = vmatpush1.msra.mxu0 0.0
  %1502 = vmatprep.subr.mxu0 0.0
  %1503 = vmatpush1.msra.mxu0 0.0
  %1504 = vmatprep.subr.mxu0 0.0
  %1505 = vmatpush1.msra.mxu0 0.0
  %1506 = vmatprep.subr.mxu0 0.0
  %1507 = vmatpush1.msra.mxu0 0.0
  %1508 = vmatprep.subr.mxu0 0.0
  %1509 = vmatpush1.msra.mxu0 0.0
  %1510 = vmatprep.subr.mxu0 0.0
  %1511 = vmatpush1.msra.mxu0 0.0
  %1512 = vmatprep.subr.mxu0 0.0
  %1513 = vmatpush1.msra.mxu0 0.0
  %1514 = vmatprep.subr.mxu0 0.0
  %1515 = vmatpush1.msra.mxu0 0.0
  %1516 = vmatprep.mubr.f32.mxu0 0.0
  %1517 = vmatmul.mubr.f32.gmra.mrb[0].mxu0 %v1450
  %v1518 = vpop.f32.mrb[0].mxu0
  %v1519 = vadd.f32 0.0, %v1518
  %v1520 = vpop.f32.mrb[0].mxu0
  %1521 = vdwg.mxu0
  %v1522 = vadd.f32 %v1429, %v1519
  %s1523 = scalar_lea.vmem %s3, 1024
  %v1524 = vld [vmem:[%s1523] sm:$0xff]
  %v1525 = vld [vmem:[%s1523 + $0x8] sm:$0xff]
  %v1526 = vld [vmem:[%s1523 + $0x10] sm:$0xff]
  %v1527 = vld [vmem:[%s1523 + $0x18] sm:$0xff]
  %v1528 = vld [vmem:[%s1523 + $0x20] sm:$0xff]
  %v1529 = vld [vmem:[%s1523 + $0x28] sm:$0xff]
  %v1530 = vld [vmem:[%s1523 + $0x30] sm:$0xff]
  %v1531 = vld [vmem:[%s1523 + $0x38] sm:$0xff]
  %v1532 = vld [vmem:[%s1523 + $0x40] sm:$0xff]
  %v1533 = vld [vmem:[%s1523 + $0x48] sm:$0xff]
  %v1534 = vld [vmem:[%s1523 + $0x50] sm:$0xff]
  %v1535 = vld [vmem:[%s1523 + $0x58] sm:$0xff]
  %v1536 = vld [vmem:[%s1523 + $0x60] sm:$0xff]
  %v1537 = vld [vmem:[%s1523 + $0x68] sm:$0xff]
  %v1538 = vld [vmem:[%s1523 + $0x70] sm:$0xff]
  %v1539 = vld [vmem:[%s1523 + $0x78] sm:$0xff]
  %1540 = vmatprep.subr.mxu0 0.0
  %1541 = vmatpush1.msra.mxu0 %v1524
  %1542 = vmatprep.subr.mxu0 0.0
  %1543 = vmatpush1.msra.mxu0 %v1525
  %1544 = vmatprep.subr.mxu0 0.0
  %1545 = vmatpush1.msra.mxu0 %v1526
  %1546 = vmatprep.subr.mxu0 0.0
  %1547 = vmatpush1.msra.mxu0 %v1527
  %1548 = vmatprep.subr.mxu0 0.0
  %1549 = vmatpush1.msra.mxu0 %v1528
  %1550 = vmatprep.subr.mxu0 0.0
  %1551 = vmatpush1.msra.mxu0 %v1529
  %1552 = vmatprep.subr.mxu0 0.0
  %1553 = vmatpush1.msra.mxu0 %v1530
  %1554 = vmatprep.subr.mxu0 0.0
  %1555 = vmatpush1.msra.mxu0 %v1531
  %1556 = vmatprep.subr.mxu0 0.0
  %1557 = vmatpush1.msra.mxu0 %v1532
  %1558 = vmatprep.subr.mxu0 0.0
  %1559 = vmatpush1.msra.mxu0 %v1533
  %1560 = vmatprep.subr.mxu0 0.0
  %1561 = vmatpush1.msra.mxu0 %v1534
  %1562 = vmatprep.subr.mxu0 0.0
  %1563 = vmatpush1.msra.mxu0 %v1535
  %1564 = vmatprep.subr.mxu0 0.0
  %1565 = vmatpush1.msra.mxu0 %v1536
  %1566 = vmatprep.subr.mxu0 0.0
  %1567 = vmatpush1.msra.mxu0 %v1537
  %1568 = vmatprep.subr.mxu0 0.0
  %1569 = vmatpush1.msra.mxu0 %v1538
  %1570 = vmatprep.subr.mxu0 0.0
  %1571 = vmatpush1.msra.mxu0 %v1539
  %1572 = vmatprep.subr.mxu0 0.0
  %1573 = vmatpush1.msra.mxu0 0.0
  %1574 = vmatprep.subr.mxu0 0.0
  %1575 = vmatpush1.msra.mxu0 0.0
  %1576 = vmatprep.subr.mxu0 0.0
  %1577 = vmatpush1.msra.mxu0 0.0
  %1578 = vmatprep.subr.mxu0 0.0
  %1579 = vmatpush1.msra.mxu0 0.0
  %1580 = vmatprep.subr.mxu0 0.0
  %1581 = vmatpush1.msra.mxu0 0.0
  %1582 = vmatprep.subr.mxu0 0.0
  %1583 = vmatpush1.msra.mxu0 0.0
  %1584 = vmatprep.subr.mxu0 0.0
  %1585 = vmatpush1.msra.mxu0 0.0
  %1586 = vmatprep.subr.mxu0 0.0
  %1587 = vmatpush1.msra.mxu0 0.0
  %1588 = vmatprep.subr.mxu0 0.0
  %1589 = vmatpush1.msra.mxu0 0.0
  %1590 = vmatprep.subr.mxu0 0.0
  %1591 = vmatpush1.msra.mxu0 0.0
  %1592 = vmatprep.subr.mxu0 0.0
  %1593 = vmatpush1.msra.mxu0 0.0
  %1594 = vmatprep.subr.mxu0 0.0
  %1595 = vmatpush1.msra.mxu0 0.0
  %1596 = vmatprep.subr.mxu0 0.0
  %1597 = vmatpush1.msra.mxu0 0.0
  %1598 = vmatprep.subr.mxu0 0.0
  %1599 = vmatpush1.msra.mxu0 0.0
  %1600 = vmatprep.subr.mxu0 0.0
  %1601 = vmatpush1.msra.mxu0 0.0
  %1602 = vmatprep.subr.mxu0 0.0
  %1603 = vmatpush1.msra.mxu0 0.0
  %1604 = vmatprep.mubr.f32.mxu0 0.0
  %1605 = vmatmul.mubr.f32.gmra.mrb[0].mxu0 %v766
  %v1606 = vpop.f32.mrb[0].mxu0
  %v1607 = vadd.f32 0.0, %v1606
  %v1608 = vpop.f32.mrb[0].mxu0
  %1609 = vdwg.mxu0
  %v1610 = vadd.f32 %v1522, %v1607
  %s1611 = scalar_lea.vmem %s3, 1152
  %v1612 = vld [vmem:[%s1611] sm:$0xff]
  %v1613 = vld [vmem:[%s1611 + $0x8] sm:$0xff]
  %v1614 = vld [vmem:[%s1611 + $0x10] sm:$0xff]
  %v1615 = vld [vmem:[%s1611 + $0x18] sm:$0xff]
  %v1616 = vld [vmem:[%s1611 + $0x20] sm:$0xff]
  %v1617 = vld [vmem:[%s1611 + $0x28] sm:$0xff]
  %v1618 = vld [vmem:[%s1611 + $0x30] sm:$0xff]
  %v1619 = vld [vmem:[%s1611 + $0x38] sm:$0xff]
  %v1620 = vld [vmem:[%s1611 + $0x40] sm:$0xff]
  %v1621 = vld [vmem:[%s1611 + $0x48] sm:$0xff]
  %v1622 = vld [vmem:[%s1611 + $0x50] sm:$0xff]
  %v1623 = vld [vmem:[%s1611 + $0x58] sm:$0xff]
  %v1624 = vld [vmem:[%s1611 + $0x60] sm:$0xff]
  %v1625 = vld [vmem:[%s1611 + $0x68] sm:$0xff]
  %v1626 = vld [vmem:[%s1611 + $0x70] sm:$0xff]
  %v1627 = vld [vmem:[%s1611 + $0x78] sm:$0xff]
  %v1629 = vrot.slane %v771, 1
  %v1630 = vsel %vm889, %v891, %v1629
  %1632 = vmatprep.subr.mxu0 0.0
  %1633 = vmatpush1.msra.mxu0 %v1612
  %1634 = vmatprep.subr.mxu0 0.0
  %1635 = vmatpush1.msra.mxu0 %v1613
  %1636 = vmatprep.subr.mxu0 0.0
  %1637 = vmatpush1.msra.mxu0 %v1614
  %1638 = vmatprep.subr.mxu0 0.0
  %1639 = vmatpush1.msra.mxu0 %v1615
  %1640 = vmatprep.subr.mxu0 0.0
  %1641 = vmatpush1.msra.mxu0 %v1616
  %1642 = vmatprep.subr.mxu0 0.0
  %1643 = vmatpush1.msra.mxu0 %v1617
  %1644 = vmatprep.subr.mxu0 0.0
  %1645 = vmatpush1.msra.mxu0 %v1618
  %1646 = vmatprep.subr.mxu0 0.0
  %1647 = vmatpush1.msra.mxu0 %v1619
  %1648 = vmatprep.subr.mxu0 0.0
  %1649 = vmatpush1.msra.mxu0 %v1620
  %1650 = vmatprep.subr.mxu0 0.0
  %1651 = vmatpush1.msra.mxu0 %v1621
  %1652 = vmatprep.subr.mxu0 0.0
  %1653 = vmatpush1.msra.mxu0 %v1622
  %1654 = vmatprep.subr.mxu0 0.0
  %1655 = vmatpush1.msra.mxu0 %v1623
  %1656 = vmatprep.subr.mxu0 0.0
  %1657 = vmatpush1.msra.mxu0 %v1624
  %1658 = vmatprep.subr.mxu0 0.0
  %1659 = vmatpush1.msra.mxu0 %v1625
  %1660 = vmatprep.subr.mxu0 0.0
  %1661 = vmatpush1.msra.mxu0 %v1626
  %1662 = vmatprep.subr.mxu0 0.0
  %1663 = vmatpush1.msra.mxu0 %v1627
  %1664 = vmatprep.subr.mxu0 0.0
  %1665 = vmatpush1.msra.mxu0 0.0
  %1666 = vmatprep.subr.mxu0 0.0
  %1667 = vmatpush1.msra.mxu0 0.0
  %1668 = vmatprep.subr.mxu0 0.0
  %1669 = vmatpush1.msra.mxu0 0.0
  %1670 = vmatprep.subr.mxu0 0.0
  %1671 = vmatpush1.msra.mxu0 0.0
  %1672 = vmatprep.subr.mxu0 0.0
  %1673 = vmatpush1.msra.mxu0 0.0
  %1674 = vmatprep.subr.mxu0 0.0
  %1675 = vmatpush1.msra.mxu0 0.0
  %1676 = vmatprep.subr.mxu0 0.0
  %1677 = vmatpush1.msra.mxu0 0.0
  %1678 = vmatprep.subr.mxu0 0.0
  %1679 = vmatpush1.msra.mxu0 0.0
  %1680 = vmatprep.subr.mxu0 0.0
  %1681 = vmatpush1.msra.mxu0 0.0
  %1682 = vmatprep.subr.mxu0 0.0
  %1683 = vmatpush1.msra.mxu0 0.0
  %1684 = vmatprep.subr.mxu0 0.0
  %1685 = vmatpush1.msra.mxu0 0.0
  %1686 = vmatprep.subr.mxu0 0.0
  %1687 = vmatpush1.msra.mxu0 0.0
  %1688 = vmatprep.subr.mxu0 0.0
  %1689 = vmatpush1.msra.mxu0 0.0
  %1690 = vmatprep.subr.mxu0 0.0
  %1691 = vmatpush1.msra.mxu0 0.0
  %1692 = vmatprep.subr.mxu0 0.0
  %1693 = vmatpush1.msra.mxu0 0.0
  %1694 = vmatprep.subr.mxu0 0.0
  %1695 = vmatpush1.msra.mxu0 0.0
  %1696 = vmatprep.mubr.f32.mxu0 0.0
  %1697 = vmatmul.mubr.f32.gmra.mrb[0].mxu0 %v1630
  %v1698 = vpop.f32.mrb[0].mxu0
  %v1699 = vadd.f32 0.0, %v1698
  %v1700 = vpop.f32.mrb[0].mxu0
  %1701 = vdwg.mxu0
  %v1702 = vadd.f32 %v1610, %v1699
  %s1703 = scalar_lea.vmem %s3, 1280
  %v1704 = vld [vmem:[%s1703] sm:$0xff]
  %v1705 = vld [vmem:[%s1703 + $0x8] sm:$0xff]
  %v1706 = vld [vmem:[%s1703 + $0x10] sm:$0xff]
  %v1707 = vld [vmem:[%s1703 + $0x18] sm:$0xff]
  %v1708 = vld [vmem:[%s1703 + $0x20] sm:$0xff]
  %v1709 = vld [vmem:[%s1703 + $0x28] sm:$0xff]
  %v1710 = vld [vmem:[%s1703 + $0x30] sm:$0xff]
  %v1711 = vld [vmem:[%s1703 + $0x38] sm:$0xff]
  %v1712 = vld [vmem:[%s1703 + $0x40] sm:$0xff]
  %v1713 = vld [vmem:[%s1703 + $0x48] sm:$0xff]
  %v1714 = vld [vmem:[%s1703 + $0x50] sm:$0xff]
  %v1715 = vld [vmem:[%s1703 + $0x58] sm:$0xff]
  %v1716 = vld [vmem:[%s1703 + $0x60] sm:$0xff]
  %v1717 = vld [vmem:[%s1703 + $0x68] sm:$0xff]
  %v1718 = vld [vmem:[%s1703 + $0x70] sm:$0xff]
  %v1719 = vld [vmem:[%s1703 + $0x78] sm:$0xff]
  %v1720 = vrot.slane %v771, 2
  %v1721 = vsel %vm982, %v984, %v1720
  %1723 = vmatprep.subr.mxu0 0.0
  %1724 = vmatpush1.msra.mxu0 %v1704
  %1725 = vmatprep.subr.mxu0 0.0
  %1726 = vmatpush1.msra.mxu0 %v1705
  %1727 = vmatprep.subr.mxu0 0.0
  %1728 = vmatpush1.msra.mxu0 %v1706
  %1729 = vmatprep.subr.mxu0 0.0
  %1730 = vmatpush1.msra.mxu0 %v1707
  %1731 = vmatprep.subr.mxu0 0.0
  %1732 = vmatpush1.msra.mxu0 %v1708
  %1733 = vmatprep.subr.mxu0 0.0
  %1734 = vmatpush1.msra.mxu0 %v1709
  %1735 = vmatprep.subr.mxu0 0.0
  %1736 = vmatpush1.msra.mxu0 %v1710
  %1737 = vmatprep.subr.mxu0 0.0
  %1738 = vmatpush1.msra.mxu0 %v1711
  %1739 = vmatprep.subr.mxu0 0.0
  %1740 = vmatpush1.msra.mxu0 %v1712
  %1741 = vmatprep.subr.mxu0 0.0
  %1742 = vmatpush1.msra.mxu0 %v1713
  %1743 = vmatprep.subr.mxu0 0.0
  %1744 = vmatpush1.msra.mxu0 %v1714
  %1745 = vmatprep.subr.mxu0 0.0
  %1746 = vmatpush1.msra.mxu0 %v1715
  %1747 = vmatprep.subr.mxu0 0.0
  %1748 = vmatpush1.msra.mxu0 %v1716
  %1749 = vmatprep.subr.mxu0 0.0
  %1750 = vmatpush1.msra.mxu0 %v1717
  %1751 = vmatprep.subr.mxu0 0.0
  %1752 = vmatpush1.msra.mxu0 %v1718
  %1753 = vmatprep.subr.mxu0 0.0
  %1754 = vmatpush1.msra.mxu0 %v1719
  %1755 = vmatprep.subr.mxu0 0.0
  %1756 = vmatpush1.msra.mxu0 0.0
  %1757 = vmatprep.subr.mxu0 0.0
  %1758 = vmatpush1.msra.mxu0 0.0
  %1759 = vmatprep.subr.mxu0 0.0
  %1760 = vmatpush1.msra.mxu0 0.0
  %1761 = vmatprep.subr.mxu0 0.0
  %1762 = vmatpush1.msra.mxu0 0.0
  %1763 = vmatprep.subr.mxu0 0.0
  %1764 = vmatpush1.msra.mxu0 0.0
  %1765 = vmatprep.subr.mxu0 0.0
  %1766 = vmatpush1.msra.mxu0 0.0
  %1767 = vmatprep.subr.mxu0 0.0
  %1768 = vmatpush1.msra.mxu0 0.0
  %1769 = vmatprep.subr.mxu0 0.0
  %1770 = vmatpush1.msra.mxu0 0.0
  %1771 = vmatprep.subr.mxu0 0.0
  %1772 = vmatpush1.msra.mxu0 0.0
  %1773 = vmatprep.subr.mxu0 0.0
  %1774 = vmatpush1.msra.mxu0 0.0
  %1775 = vmatprep.subr.mxu0 0.0
  %1776 = vmatpush1.msra.mxu0 0.0
  %1777 = vmatprep.subr.mxu0 0.0
  %1778 = vmatpush1.msra.mxu0 0.0
  %1779 = vmatprep.subr.mxu0 0.0
  %1780 = vmatpush1.msra.mxu0 0.0
  %1781 = vmatprep.subr.mxu0 0.0
  %1782 = vmatpush1.msra.mxu0 0.0
  %1783 = vmatprep.subr.mxu0 0.0
  %1784 = vmatpush1.msra.mxu0 0.0
  %1785 = vmatprep.subr.mxu0 0.0
  %1786 = vmatpush1.msra.mxu0 0.0
  %1787 = vmatprep.mubr.f32.mxu0 0.0
  %1788 = vmatmul.mubr.f32.gmra.mrb[0].mxu0 %v1721
  %v1789 = vpop.f32.mrb[0].mxu0
  %v1790 = vadd.f32 0.0, %v1789
  %v1791 = vpop.f32.mrb[0].mxu0
  %1792 = vdwg.mxu0
  %v1793 = vadd.f32 %v1702, %v1790
  %s1794 = scalar_lea.vmem %s3, 1408
  %v1795 = vld [vmem:[%s1794] sm:$0xff]
  %v1796 = vld [vmem:[%s1794 + $0x8] sm:$0xff]
  %v1797 = vld [vmem:[%s1794 + $0x10] sm:$0xff]
  %v1798 = vld [vmem:[%s1794 + $0x18] sm:$0xff]
  %v1799 = vld [vmem:[%s1794 + $0x20] sm:$0xff]
  %v1800 = vld [vmem:[%s1794 + $0x28] sm:$0xff]
  %v1801 = vld [vmem:[%s1794 + $0x30] sm:$0xff]
  %v1802 = vld [vmem:[%s1794 + $0x38] sm:$0xff]
  %v1803 = vld [vmem:[%s1794 + $0x40] sm:$0xff]
  %v1804 = vld [vmem:[%s1794 + $0x48] sm:$0xff]
  %v1805 = vld [vmem:[%s1794 + $0x50] sm:$0xff]
  %v1806 = vld [vmem:[%s1794 + $0x58] sm:$0xff]
  %v1807 = vld [vmem:[%s1794 + $0x60] sm:$0xff]
  %v1808 = vld [vmem:[%s1794 + $0x68] sm:$0xff]
  %v1809 = vld [vmem:[%s1794 + $0x70] sm:$0xff]
  %v1810 = vld [vmem:[%s1794 + $0x78] sm:$0xff]
  %v1811 = vrot.slane %v771, 3
  %v1812 = vsel %vm1075, %v1077, %v1811
  %1814 = vmatprep.subr.mxu0 0.0
  %1815 = vmatpush1.msra.mxu0 %v1795
  %1816 = vmatprep.subr.mxu0 0.0
  %1817 = vmatpush1.msra.mxu0 %v1796
  %1818 = vmatprep.subr.mxu0 0.0
  %1819 = vmatpush1.msra.mxu0 %v1797
  %1820 = vmatprep.subr.mxu0 0.0
  %1821 = vmatpush1.msra.mxu0 %v1798
  %1822 = vmatprep.subr.mxu0 0.0
  %1823 = vmatpush1.msra.mxu0 %v1799
  %1824 = vmatprep.subr.mxu0 0.0
  %1825 = vmatpush1.msra.mxu0 %v1800
  %1826 = vmatprep.subr.mxu0 0.0
  %1827 = vmatpush1.msra.mxu0 %v1801
  %1828 = vmatprep.subr.mxu0 0.0
  %1829 = vmatpush1.msra.mxu0 %v1802
  %1830 = vmatprep.subr.mxu0 0.0
  %1831 = vmatpush1.msra.mxu0 %v1803
  %1832 = vmatprep.subr.mxu0 0.0
  %1833 = vmatpush1.msra.mxu0 %v1804
  %1834 = vmatprep.subr.mxu0 0.0
  %1835 = vmatpush1.msra.mxu0 %v1805
  %1836 = vmatprep.subr.mxu0 0.0
  %1837 = vmatpush1.msra.mxu0 %v1806
  %1838 = vmatprep.subr.mxu0 0.0
  %1839 = vmatpush1.msra.mxu0 %v1807
  %1840 = vmatprep.subr.mxu0 0.0
  %1841 = vmatpush1.msra.mxu0 %v1808
  %1842 = vmatprep.subr.mxu0 0.0
  %1843 = vmatpush1.msra.mxu0 %v1809
  %1844 = vmatprep.subr.mxu0 0.0
  %1845 = vmatpush1.msra.mxu0 %v1810
  %1846 = vmatprep.subr.mxu0 0.0
  %1847 = vmatpush1.msra.mxu0 0.0
  %1848 = vmatprep.subr.mxu0 0.0
  %1849 = vmatpush1.msra.mxu0 0.0
  %1850 = vmatprep.subr.mxu0 0.0
  %1851 = vmatpush1.msra.mxu0 0.0
  %1852 = vmatprep.subr.mxu0 0.0
  %1853 = vmatpush1.msra.mxu0 0.0
  %1854 = vmatprep.subr.mxu0 0.0
  %1855 = vmatpush1.msra.mxu0 0.0
  %1856 = vmatprep.subr.mxu0 0.0
  %1857 = vmatpush1.msra.mxu0 0.0
  %1858 = vmatprep.subr.mxu0 0.0
  %1859 = vmatpush1.msra.mxu0 0.0
  %1860 = vmatprep.subr.mxu0 0.0
  %1861 = vmatpush1.msra.mxu0 0.0
  %1862 = vmatprep.subr.mxu0 0.0
  %1863 = vmatpush1.msra.mxu0 0.0
  %1864 = vmatprep.subr.mxu0 0.0
  %1865 = vmatpush1.msra.mxu0 0.0
  %1866 = vmatprep.subr.mxu0 0.0
  %1867 = vmatpush1.msra.mxu0 0.0
  %1868 = vmatprep.subr.mxu0 0.0
  %1869 = vmatpush1.msra.mxu0 0.0
  %1870 = vmatprep.subr.mxu0 0.0
  %1871 = vmatpush1.msra.mxu0 0.0
  %1872 = vmatprep.subr.mxu0 0.0
  %1873 = vmatpush1.msra.mxu0 0.0
  %1874 = vmatprep.subr.mxu0 0.0
  %1875 = vmatpush1.msra.mxu0 0.0
  %1876 = vmatprep.subr.mxu0 0.0
  %1877 = vmatpush1.msra.mxu0 0.0
  %1878 = vmatprep.mubr.f32.mxu0 0.0
  %1879 = vmatmul.mubr.f32.gmra.mrb[0].mxu0 %v1812
  %v1880 = vpop.f32.mrb[0].mxu0
  %v1881 = vadd.f32 0.0, %v1880
  %v1882 = vpop.f32.mrb[0].mxu0
  %1883 = vdwg.mxu0
  %v1884 = vadd.f32 %v1793, %v1881
  %s1885 = scalar_lea.vmem %s3, 1536
  %v1886 = vld [vmem:[%s1885] sm:$0xff]
  %v1887 = vld [vmem:[%s1885 + $0x8] sm:$0xff]
  %v1888 = vld [vmem:[%s1885 + $0x10] sm:$0xff]
  %v1889 = vld [vmem:[%s1885 + $0x18] sm:$0xff]
  %v1890 = vld [vmem:[%s1885 + $0x20] sm:$0xff]
  %v1891 = vld [vmem:[%s1885 + $0x28] sm:$0xff]
  %v1892 = vld [vmem:[%s1885 + $0x30] sm:$0xff]
  %v1893 = vld [vmem:[%s1885 + $0x38] sm:$0xff]
  %v1894 = vld [vmem:[%s1885 + $0x40] sm:$0xff]
  %v1895 = vld [vmem:[%s1885 + $0x48] sm:$0xff]
  %v1896 = vld [vmem:[%s1885 + $0x50] sm:$0xff]
  %v1897 = vld [vmem:[%s1885 + $0x58] sm:$0xff]
  %v1898 = vld [vmem:[%s1885 + $0x60] sm:$0xff]
  %v1899 = vld [vmem:[%s1885 + $0x68] sm:$0xff]
  %v1900 = vld [vmem:[%s1885 + $0x70] sm:$0xff]
  %v1901 = vld [vmem:[%s1885 + $0x78] sm:$0xff]
  %v1902 = vrot.slane %v771, 4
  %v1903 = vsel %vm1168, %v1170, %v1902
  %1905 = vmatprep.subr.mxu0 0.0
  %1906 = vmatpush1.msra.mxu0 %v1886
  %1907 = vmatprep.subr.mxu0 0.0
  %1908 = vmatpush1.msra.mxu0 %v1887
  %1909 = vmatprep.subr.mxu0 0.0
  %1910 = vmatpush1.msra.mxu0 %v1888
  %1911 = vmatprep.subr.mxu0 0.0
  %1912 = vmatpush1.msra.mxu0 %v1889
  %1913 = vmatprep.subr.mxu0 0.0
  %1914 = vmatpush1.msra.mxu0 %v1890
  %1915 = vmatprep.subr.mxu0 0.0
  %1916 = vmatpush1.msra.mxu0 %v1891
  %1917 = vmatprep.subr.mxu0 0.0
  %1918 = vmatpush1.msra.mxu0 %v1892
  %1919 = vmatprep.subr.mxu0 0.0
  %1920 = vmatpush1.msra.mxu0 %v1893
  %1921 = vmatprep.subr.mxu0 0.0
  %1922 = vmatpush1.msra.mxu0 %v1894
  %1923 = vmatprep.subr.mxu0 0.0
  %1924 = vmatpush1.msra.mxu0 %v1895
  %1925 = vmatprep.subr.mxu0 0.0
  %1926 = vmatpush1.msra.mxu0 %v1896
  %1927 = vmatprep.subr.mxu0 0.0
  %1928 = vmatpush1.msra.mxu0 %v1897
  %1929 = vmatprep.subr.mxu0 0.0
  %1930 = vmatpush1.msra.mxu0 %v1898
  %1931 = vmatprep.subr.mxu0 0.0
  %1932 = vmatpush1.msra.mxu0 %v1899
  %1933 = vmatprep.subr.mxu0 0.0
  %1934 = vmatpush1.msra.mxu0 %v1900
  %1935 = vmatprep.subr.mxu0 0.0
  %1936 = vmatpush1.msra.mxu0 %v1901
  %1937 = vmatprep.subr.mxu0 0.0
  %1938 = vmatpush1.msra.mxu0 0.0
  %1939 = vmatprep.subr.mxu0 0.0
  %1940 = vmatpush1.msra.mxu0 0.0
  %1941 = vmatprep.subr.mxu0 0.0
  %1942 = vmatpush1.msra.mxu0 0.0
  %1943 = vmatprep.subr.mxu0 0.0
  %1944 = vmatpush1.msra.mxu0 0.0
  %1945 = vmatprep.subr.mxu0 0.0
  %1946 = vmatpush1.msra.mxu0 0.0
  %1947 = vmatprep.subr.mxu0 0.0
  %1948 = vmatpush1.msra.mxu0 0.0
  %1949 = vmatprep.subr.mxu0 0.0
  %1950 = vmatpush1.msra.mxu0 0.0
  %1951 = vmatprep.subr.mxu0 0.0
  %1952 = vmatpush1.msra.mxu0 0.0
  %1953 = vmatprep.subr.mxu0 0.0
  %1954 = vmatpush1.msra.mxu0 0.0
  %1955 = vmatprep.subr.mxu0 0.0
  %1956 = vmatpush1.msra.mxu0 0.0
  %1957 = vmatprep.subr.mxu0 0.0
  %1958 = vmatpush1.msra.mxu0 0.0
  %1959 = vmatprep.subr.mxu0 0.0
  %1960 = vmatpush1.msra.mxu0 0.0
  %1961 = vmatprep.subr.mxu0 0.0
  %1962 = vmatpush1.msra.mxu0 0.0
  %1963 = vmatprep.subr.mxu0 0.0
  %1964 = vmatpush1.msra.mxu0 0.0
  %1965 = vmatprep.subr.mxu0 0.0
  %1966 = vmatpush1.msra.mxu0 0.0
  %1967 = vmatprep.subr.mxu0 0.0
  %1968 = vmatpush1.msra.mxu0 0.0
  %1969 = vmatprep.mubr.f32.mxu0 0.0
  %1970 = vmatmul.mubr.f32.gmra.mrb[0].mxu0 %v1903
  %v1971 = vpop.f32.mrb[0].mxu0
  %v1972 = vadd.f32 0.0, %v1971
  %v1973 = vpop.f32.mrb[0].mxu0
  %1974 = vdwg.mxu0
  %v1975 = vadd.f32 %v1884, %v1972
  %s1976 = scalar_lea.vmem %s3, 1664
  %v1977 = vld [vmem:[%s1976] sm:$0xff]
  %v1978 = vld [vmem:[%s1976 + $0x8] sm:$0xff]
  %v1979 = vld [vmem:[%s1976 + $0x10] sm:$0xff]
  %v1980 = vld [vmem:[%s1976 + $0x18] sm:$0xff]
  %v1981 = vld [vmem:[%s1976 + $0x20] sm:$0xff]
  %v1982 = vld [vmem:[%s1976 + $0x28] sm:$0xff]
  %v1983 = vld [vmem:[%s1976 + $0x30] sm:$0xff]
  %v1984 = vld [vmem:[%s1976 + $0x38] sm:$0xff]
  %v1985 = vld [vmem:[%s1976 + $0x40] sm:$0xff]
  %v1986 = vld [vmem:[%s1976 + $0x48] sm:$0xff]
  %v1987 = vld [vmem:[%s1976 + $0x50] sm:$0xff]
  %v1988 = vld [vmem:[%s1976 + $0x58] sm:$0xff]
  %v1989 = vld [vmem:[%s1976 + $0x60] sm:$0xff]
  %v1990 = vld [vmem:[%s1976 + $0x68] sm:$0xff]
  %v1991 = vld [vmem:[%s1976 + $0x70] sm:$0xff]
  %v1992 = vld [vmem:[%s1976 + $0x78] sm:$0xff]
  %v1993 = vrot.slane %v771, 5
  %v1994 = vsel %vm1261, %v1263, %v1993
  %1996 = vmatprep.subr.mxu0 0.0
  %1997 = vmatpush1.msra.mxu0 %v1977
  %1998 = vmatprep.subr.mxu0 0.0
  %1999 = vmatpush1.msra.mxu0 %v1978
  %2000 = vmatprep.subr.mxu0 0.0
  %2001 = vmatpush1.msra.mxu0 %v1979
  %2002 = vmatprep.subr.mxu0 0.0
  %2003 = vmatpush1.msra.mxu0 %v1980
  %2004 = vmatprep.subr.mxu0 0.0
  %2005 = vmatpush1.msra.mxu0 %v1981
  %2006 = vmatprep.subr.mxu0 0.0
  %2007 = vmatpush1.msra.mxu0 %v1982
  %2008 = vmatprep.subr.mxu0 0.0
  %2009 = vmatpush1.msra.mxu0 %v1983
  %2010 = vmatprep.subr.mxu0 0.0
  %2011 = vmatpush1.msra.mxu0 %v1984
  %2012 = vmatprep.subr.mxu0 0.0
  %2013 = vmatpush1.msra.mxu0 %v1985
  %2014 = vmatprep.subr.mxu0 0.0
  %2015 = vmatpush1.msra.mxu0 %v1986
  %2016 = vmatprep.subr.mxu0 0.0
  %2017 = vmatpush1.msra.mxu0 %v1987
  %2018 = vmatprep.subr.mxu0 0.0
  %2019 = vmatpush1.msra.mxu0 %v1988
  %2020 = vmatprep.subr.mxu0 0.0
  %2021 = vmatpush1.msra.mxu0 %v1989
  %2022 = vmatprep.subr.mxu0 0.0
  %2023 = vmatpush1.msra.mxu0 %v1990
  %2024 = vmatprep.subr.mxu0 0.0
  %2025 = vmatpush1.msra.mxu0 %v1991
  %2026 = vmatprep.subr.mxu0 0.0
  %2027 = vmatpush1.msra.mxu0 %v1992
  %2028 = vmatprep.subr.mxu0 0.0
  %2029 = vmatpush1.msra.mxu0 0.0
  %2030 = vmatprep.subr.mxu0 0.0
  %2031 = vmatpush1.msra.mxu0 0.0
  %2032 = vmatprep.subr.mxu0 0.0
  %2033 = vmatpush1.msra.mxu0 0.0
  %2034 = vmatprep.subr.mxu0 0.0
  %2035 = vmatpush1.msra.mxu0 0.0
  %2036 = vmatprep.subr.mxu0 0.0
  %2037 = vmatpush1.msra.mxu0 0.0
  %2038 = vmatprep.subr.mxu0 0.0
  %2039 = vmatpush1.msra.mxu0 0.0
  %2040 = vmatprep.subr.mxu0 0.0
  %2041 = vmatpush1.msra.mxu0 0.0
  %2042 = vmatprep.subr.mxu0 0.0
  %2043 = vmatpush1.msra.mxu0 0.0
  %2044 = vmatprep.subr.mxu0 0.0
  %2045 = vmatpush1.msra.mxu0 0.0
  %2046 = vmatprep.subr.mxu0 0.0
  %2047 = vmatpush1.msra.mxu0 0.0
  %2048 = vmatprep.subr.mxu0 0.0
  %2049 = vmatpush1.msra.mxu0 0.0
  %2050 = vmatprep.subr.mxu0 0.0
  %2051 = vmatpush1.msra.mxu0 0.0
  %2052 = vmatprep.subr.mxu0 0.0
  %2053 = vmatpush1.msra.mxu0 0.0
  %2054 = vmatprep.subr.mxu0 0.0
  %2055 = vmatpush1.msra.mxu0 0.0
  %2056 = vmatprep.subr.mxu0 0.0
  %2057 = vmatpush1.msra.mxu0 0.0
  %2058 = vmatprep.subr.mxu0 0.0
  %2059 = vmatpush1.msra.mxu0 0.0
  %2060 = vmatprep.mubr.f32.mxu0 0.0
  %2061 = vmatmul.mubr.f32.gmra.mrb[0].mxu0 %v1994
  %v2062 = vpop.f32.mrb[0].mxu0
  %v2063 = vadd.f32 0.0, %v2062
  %v2064 = vpop.f32.mrb[0].mxu0
  %2065 = vdwg.mxu0
  %v2066 = vadd.f32 %v1975, %v2063
  %s2067 = scalar_lea.vmem %s3, 1792
  %v2068 = vld [vmem:[%s2067] sm:$0xff]
  %v2069 = vld [vmem:[%s2067 + $0x8] sm:$0xff]
  %v2070 = vld [vmem:[%s2067 + $0x10] sm:$0xff]
  %v2071 = vld [vmem:[%s2067 + $0x18] sm:$0xff]
  %v2072 = vld [vmem:[%s2067 + $0x20] sm:$0xff]
  %v2073 = vld [vmem:[%s2067 + $0x28] sm:$0xff]
  %v2074 = vld [vmem:[%s2067 + $0x30] sm:$0xff]
  %v2075 = vld [vmem:[%s2067 + $0x38] sm:$0xff]
  %v2076 = vld [vmem:[%s2067 + $0x40] sm:$0xff]
  %v2077 = vld [vmem:[%s2067 + $0x48] sm:$0xff]
  %v2078 = vld [vmem:[%s2067 + $0x50] sm:$0xff]
  %v2079 = vld [vmem:[%s2067 + $0x58] sm:$0xff]
  %v2080 = vld [vmem:[%s2067 + $0x60] sm:$0xff]
  %v2081 = vld [vmem:[%s2067 + $0x68] sm:$0xff]
  %v2082 = vld [vmem:[%s2067 + $0x70] sm:$0xff]
  %v2083 = vld [vmem:[%s2067 + $0x78] sm:$0xff]
  %v2084 = vrot.slane %v771, 6
  %v2085 = vsel %vm1354, %v1356, %v2084
  %2087 = vmatprep.subr.mxu0 0.0
  %2088 = vmatpush1.msra.mxu0 %v2068
  %2089 = vmatprep.subr.mxu0 0.0
  %2090 = vmatpush1.msra.mxu0 %v2069
  %2091 = vmatprep.subr.mxu0 0.0
  %2092 = vmatpush1.msra.mxu0 %v2070
  %2093 = vmatprep.subr.mxu0 0.0
  %2094 = vmatpush1.msra.mxu0 %v2071
  %2095 = vmatprep.subr.mxu0 0.0
  %2096 = vmatpush1.msra.mxu0 %v2072
  %2097 = vmatprep.subr.mxu0 0.0
  %2098 = vmatpush1.msra.mxu0 %v2073
  %2099 = vmatprep.subr.mxu0 0.0
  %2100 = vmatpush1.msra.mxu0 %v2074
  %2101 = vmatprep.subr.mxu0 0.0
  %2102 = vmatpush1.msra.mxu0 %v2075
  %2103 = vmatprep.subr.mxu0 0.0
  %2104 = vmatpush1.msra.mxu0 %v2076
  %2105 = vmatprep.subr.mxu0 0.0
  %2106 = vmatpush1.msra.mxu0 %v2077
  %2107 = vmatprep.subr.mxu0 0.0
  %2108 = vmatpush1.msra.mxu0 %v2078
  %2109 = vmatprep.subr.mxu0 0.0
  %2110 = vmatpush1.msra.mxu0 %v2079
  %2111 = vmatprep.subr.mxu0 0.0
  %2112 = vmatpush1.msra.mxu0 %v2080
  %2113 = vmatprep.subr.mxu0 0.0
  %2114 = vmatpush1.msra.mxu0 %v2081
  %2115 = vmatprep.subr.mxu0 0.0
  %2116 = vmatpush1.msra.mxu0 %v2082
  %2117 = vmatprep.subr.mxu0 0.0
  %2118 = vmatpush1.msra.mxu0 %v2083
  %2119 = vmatprep.subr.mxu0 0.0
  %2120 = vmatpush1.msra.mxu0 0.0
  %2121 = vmatprep.subr.mxu0 0.0
  %2122 = vmatpush1.msra.mxu0 0.0
  %2123 = vmatprep.subr.mxu0 0.0
  %2124 = vmatpush1.msra.mxu0 0.0
  %2125 = vmatprep.subr.mxu0 0.0
  %2126 = vmatpush1.msra.mxu0 0.0
  %2127 = vmatprep.subr.mxu0 0.0
  %2128 = vmatpush1.msra.mxu0 0.0
  %2129 = vmatprep.subr.mxu0 0.0
  %2130 = vmatpush1.msra.mxu0 0.0
  %2131 = vmatprep.subr.mxu0 0.0
  %2132 = vmatpush1.msra.mxu0 0.0
  %2133 = vmatprep.subr.mxu0 0.0
  %2134 = vmatpush1.msra.mxu0 0.0
  %2135 = vmatprep.subr.mxu0 0.0
  %2136 = vmatpush1.msra.mxu0 0.0
  %2137 = vmatprep.subr.mxu0 0.0
  %2138 = vmatpush1.msra.mxu0 0.0
  %2139 = vmatprep.subr.mxu0 0.0
  %2140 = vmatpush1.msra.mxu0 0.0
  %2141 = vmatprep.subr.mxu0 0.0
  %2142 = vmatpush1.msra.mxu0 0.0
  %2143 = vmatprep.subr.mxu0 0.0
  %2144 = vmatpush1.msra.mxu0 0.0
  %2145 = vmatprep.subr.mxu0 0.0
  %2146 = vmatpush1.msra.mxu0 0.0
  %2147 = vmatprep.subr.mxu0 0.0
  %2148 = vmatpush1.msra.mxu0 0.0
  %2149 = vmatprep.subr.mxu0 0.0
  %2150 = vmatpush1.msra.mxu0 0.0
  %2151 = vmatprep.mubr.f32.mxu0 0.0
  %2152 = vmatmul.mubr.f32.gmra.mrb[0].mxu0 %v2085
  %v2153 = vpop.f32.mrb[0].mxu0
  %v2154 = vadd.f32 0.0, %v2153
  %v2155 = vpop.f32.mrb[0].mxu0
  %2156 = vdwg.mxu0
  %v2157 = vadd.f32 %v2066, %v2154
  %s2158 = scalar_lea.vmem %s3, 1920
  %v2159 = vld [vmem:[%s2158] sm:$0xff]
  %v2160 = vld [vmem:[%s2158 + $0x8] sm:$0xff]
  %v2161 = vld [vmem:[%s2158 + $0x10] sm:$0xff]
  %v2162 = vld [vmem:[%s2158 + $0x18] sm:$0xff]
  %v2163 = vld [vmem:[%s2158 + $0x20] sm:$0xff]
  %v2164 = vld [vmem:[%s2158 + $0x28] sm:$0xff]
  %v2165 = vld [vmem:[%s2158 + $0x30] sm:$0xff]
  %v2166 = vld [vmem:[%s2158 + $0x38] sm:$0xff]
  %v2167 = vld [vmem:[%s2158 + $0x40] sm:$0xff]
  %v2168 = vld [vmem:[%s2158 + $0x48] sm:$0xff]
  %v2169 = vld [vmem:[%s2158 + $0x50] sm:$0xff]
  %v2170 = vld [vmem:[%s2158 + $0x58] sm:$0xff]
  %v2171 = vld [vmem:[%s2158 + $0x60] sm:$0xff]
  %v2172 = vld [vmem:[%s2158 + $0x68] sm:$0xff]
  %v2173 = vld [vmem:[%s2158 + $0x70] sm:$0xff]
  %v2174 = vld [vmem:[%s2158 + $0x78] sm:$0xff]
  %v2175 = vrot.slane %v771, 7
  %v2176 = vsel %vm1447, %v1449, %v2175
  %2178 = vmatprep.subr.mxu0 0.0
  %2179 = vmatpush1.msra.mxu0 %v2159
  %2180 = vmatprep.subr.mxu0 0.0
  %2181 = vmatpush1.msra.mxu0 %v2160
  %2182 = vmatprep.subr.mxu0 0.0
  %2183 = vmatpush1.msra.mxu0 %v2161
  %2184 = vmatprep.subr.mxu0 0.0
  %2185 = vmatpush1.msra.mxu0 %v2162
  %2186 = vmatprep.subr.mxu0 0.0
  %2187 = vmatpush1.msra.mxu0 %v2163
  %2188 = vmatprep.subr.mxu0 0.0
  %2189 = vmatpush1.msra.mxu0 %v2164
  %2190 = vmatprep.subr.mxu0 0.0
  %2191 = vmatpush1.msra.mxu0 %v2165
  %2192 = vmatprep.subr.mxu0 0.0
  %2193 = vmatpush1.msra.mxu0 %v2166
  %2194 = vmatprep.subr.mxu0 0.0
  %2195 = vmatpush1.msra.mxu0 %v2167
  %2196 = vmatprep.subr.mxu0 0.0
  %2197 = vmatpush1.msra.mxu0 %v2168
  %2198 = vmatprep.subr.mxu0 0.0
  %2199 = vmatpush1.msra.mxu0 %v2169
  %2200 = vmatprep.subr.mxu0 0.0
  %2201 = vmatpush1.msra.mxu0 %v2170
  %2202 = vmatprep.subr.mxu0 0.0
  %2203 = vmatpush1.msra.mxu0 %v2171
  %2204 = vmatprep.subr.mxu0 0.0
  %2205 = vmatpush1.msra.mxu0 %v2172
  %2206 = vmatprep.subr.mxu0 0.0
  %2207 = vmatpush1.msra.mxu0 %v2173
  %2208 = vmatprep.subr.mxu0 0.0
  %2209 = vmatpush1.msra.mxu0 %v2174
  %2210 = vmatprep.subr.mxu0 0.0
  %2211 = vmatpush1.msra.mxu0 0.0
  %2212 = vmatprep.subr.mxu0 0.0
  %2213 = vmatpush1.msra.mxu0 0.0
  %2214 = vmatprep.subr.mxu0 0.0
  %2215 = vmatpush1.msra.mxu0 0.0
  %2216 = vmatprep.subr.mxu0 0.0
  %2217 = vmatpush1.msra.mxu0 0.0
  %2218 = vmatprep.subr.mxu0 0.0
  %2219 = vmatpush1.msra.mxu0 0.0
  %2220 = vmatprep.subr.mxu0 0.0
  %2221 = vmatpush1.msra.mxu0 0.0
  %2222 = vmatprep.subr.mxu0 0.0
  %2223 = vmatpush1.msra.mxu0 0.0
  %2224 = vmatprep.subr.mxu0 0.0
  %2225 = vmatpush1.msra.mxu0 0.0
  %2226 = vmatprep.subr.mxu0 0.0
  %2227 = vmatpush1.msra.mxu0 0.0
  %2228 = vmatprep.subr.mxu0 0.0
  %2229 = vmatpush1.msra.mxu0 0.0
  %2230 = vmatprep.subr.mxu0 0.0
  %2231 = vmatpush1.msra.mxu0 0.0
  %2232 = vmatprep.subr.mxu0 0.0
  %2233 = vmatpush1.msra.mxu0 0.0
  %2234 = vmatprep.subr.mxu0 0.0
  %2235 = vmatpush1.msra.mxu0 0.0
  %2236 = vmatprep.subr.mxu0 0.0
  %2237 = vmatpush1.msra.mxu0 0.0
  %2238 = vmatprep.subr.mxu0 0.0
  %2239 = vmatpush1.msra.mxu0 0.0
  %2240 = vmatprep.subr.mxu0 0.0
  %2241 = vmatpush1.msra.mxu0 0.0
  %2242 = vmatprep.mubr.f32.mxu0 0.0
  %2243 = vmatmul.mubr.f32.gmra.mrb[0].mxu0 %v2176
  %v2244 = vpop.f32.mrb[0].mxu0
  %v2245 = vadd.f32 0.0, %v2244
  %v2246 = vpop.f32.mrb[0].mxu0
  %2247 = vdwg.mxu0
  %v2248 = vadd.f32 %v2157, %v2245
  %s2249 = scalar_lea.vmem %s3, 2048
  %v2250 = vld [vmem:[%s2249] sm:$0xff]
  %v2251 = vld [vmem:[%s2249 + $0x8] sm:$0xff]
  %v2252 = vld [vmem:[%s2249 + $0x10] sm:$0xff]
  %v2253 = vld [vmem:[%s2249 + $0x18] sm:$0xff]
  %v2254 = vld [vmem:[%s2249 + $0x20] sm:$0xff]
  %v2255 = vld [vmem:[%s2249 + $0x28] sm:$0xff]
  %v2256 = vld [vmem:[%s2249 + $0x30] sm:$0xff]
  %v2257 = vld [vmem:[%s2249 + $0x38] sm:$0xff]
  %v2258 = vld [vmem:[%s2249 + $0x40] sm:$0xff]
  %v2259 = vld [vmem:[%s2249 + $0x48] sm:$0xff]
  %v2260 = vld [vmem:[%s2249 + $0x50] sm:$0xff]
  %v2261 = vld [vmem:[%s2249 + $0x58] sm:$0xff]
  %v2262 = vld [vmem:[%s2249 + $0x60] sm:$0xff]
  %v2263 = vld [vmem:[%s2249 + $0x68] sm:$0xff]
  %v2264 = vld [vmem:[%s2249 + $0x70] sm:$0xff]
  %v2265 = vld [vmem:[%s2249 + $0x78] sm:$0xff]
  %2266 = vmatprep.subr.mxu0 0.0
  %2267 = vmatpush1.msra.mxu0 %v2250
  %2268 = vmatprep.subr.mxu0 0.0
  %2269 = vmatpush1.msra.mxu0 %v2251
  %2270 = vmatprep.subr.mxu0 0.0
  %2271 = vmatpush1.msra.mxu0 %v2252
  %2272 = vmatprep.subr.mxu0 0.0
  %2273 = vmatpush1.msra.mxu0 %v2253
  %2274 = vmatprep.subr.mxu0 0.0
  %2275 = vmatpush1.msra.mxu0 %v2254
  %2276 = vmatprep.subr.mxu0 0.0
  %2277 = vmatpush1.msra.mxu0 %v2255
  %2278 = vmatprep.subr.mxu0 0.0
  %2279 = vmatpush1.msra.mxu0 %v2256
  %2280 = vmatprep.subr.mxu0 0.0
  %2281 = vmatpush1.msra.mxu0 %v2257
  %2282 = vmatprep.subr.mxu0 0.0
  %2283 = vmatpush1.msra.mxu0 %v2258
  %2284 = vmatprep.subr.mxu0 0.0
  %2285 = vmatpush1.msra.mxu0 %v2259
  %2286 = vmatprep.subr.mxu0 0.0
  %2287 = vmatpush1.msra.mxu0 %v2260
  %2288 = vmatprep.subr.mxu0 0.0
  %2289 = vmatpush1.msra.mxu0 %v2261
  %2290 = vmatprep.subr.mxu0 0.0
  %2291 = vmatpush1.msra.mxu0 %v2262
  %2292 = vmatprep.subr.mxu0 0.0
  %2293 = vmatpush1.msra.mxu0 %v2263
  %2294 = vmatprep.subr.mxu0 0.0
  %2295 = vmatpush1.msra.mxu0 %v2264
  %2296 = vmatprep.subr.mxu0 0.0
  %2297 = vmatpush1.msra.mxu0 %v2265
  %2298 = vmatprep.subr.mxu0 0.0
  %2299 = vmatpush1.msra.mxu0 0.0
  %2300 = vmatprep.subr.mxu0 0.0
  %2301 = vmatpush1.msra.mxu0 0.0
  %2302 = vmatprep.subr.mxu0 0.0
  %2303 = vmatpush1.msra.mxu0 0.0
  %2304 = vmatprep.subr.mxu0 0.0
  %2305 = vmatpush1.msra.mxu0 0.0
  %2306 = vmatprep.subr.mxu0 0.0
  %2307 = vmatpush1.msra.mxu0 0.0
  %2308 = vmatprep.subr.mxu0 0.0
  %2309 = vmatpush1.msra.mxu0 0.0
  %2310 = vmatprep.subr.mxu0 0.0
  %2311 = vmatpush1.msra.mxu0 0.0
  %2312 = vmatprep.subr.mxu0 0.0
  %2313 = vmatpush1.msra.mxu0 0.0
  %2314 = vmatprep.subr.mxu0 0.0
  %2315 = vmatpush1.msra.mxu0 0.0
  %2316 = vmatprep.subr.mxu0 0.0
  %2317 = vmatpush1.msra.mxu0 0.0
  %2318 = vmatprep.subr.mxu0 0.0
  %2319 = vmatpush1.msra.mxu0 0.0
  %2320 = vmatprep.subr.mxu0 0.0
  %2321 = vmatpush1.msra.mxu0 0.0
  %2322 = vmatprep.subr.mxu0 0.0
  %2323 = vmatpush1.msra.mxu0 0.0
  %2324 = vmatprep.subr.mxu0 0.0
  %2325 = vmatpush1.msra.mxu0 0.0
  %2326 = vmatprep.subr.mxu0 0.0
  %2327 = vmatpush1.msra.mxu0 0.0
  %2328 = vmatprep.subr.mxu0 0.0
  %2329 = vmatpush1.msra.mxu0 0.0
  %2330 = vmatprep.mubr.f32.mxu0 0.0
  %2331 = vmatmul.mubr.f32.gmra.mrb[0].mxu0 %v771
  %v2332 = vpop.f32.mrb[0].mxu0
  %v2333 = vadd.f32 0.0, %v2332
  %v2334 = vpop.f32.mrb[0].mxu0
  %2335 = vdwg.mxu0
  %v2336 = vadd.f32 %v2248, %v2333
  %s2337 = scalar_lea.vmem %s3, 2176
  %v2338 = vld [vmem:[%s2337] sm:$0xff]
  %v2339 = vld [vmem:[%s2337 + $0x8] sm:$0xff]
  %v2340 = vld [vmem:[%s2337 + $0x10] sm:$0xff]
  %v2341 = vld [vmem:[%s2337 + $0x18] sm:$0xff]
  %v2342 = vld [vmem:[%s2337 + $0x20] sm:$0xff]
  %v2343 = vld [vmem:[%s2337 + $0x28] sm:$0xff]
  %v2344 = vld [vmem:[%s2337 + $0x30] sm:$0xff]
  %v2345 = vld [vmem:[%s2337 + $0x38] sm:$0xff]
  %v2346 = vld [vmem:[%s2337 + $0x40] sm:$0xff]
  %v2347 = vld [vmem:[%s2337 + $0x48] sm:$0xff]
  %v2348 = vld [vmem:[%s2337 + $0x50] sm:$0xff]
  %v2349 = vld [vmem:[%s2337 + $0x58] sm:$0xff]
  %v2350 = vld [vmem:[%s2337 + $0x60] sm:$0xff]
  %v2351 = vld [vmem:[%s2337 + $0x68] sm:$0xff]
  %v2352 = vld [vmem:[%s2337 + $0x70] sm:$0xff]
  %v2353 = vld [vmem:[%s2337 + $0x78] sm:$0xff]
  %v2355 = vrot.slane %v776, 1
  %v2356 = vsel %vm889, %v1629, %v2355
  %2358 = vmatprep.subr.mxu0 0.0
  %2359 = vmatpush1.msra.mxu0 %v2338
  %2360 = vmatprep.subr.mxu0 0.0
  %2361 = vmatpush1.msra.mxu0 %v2339
  %2362 = vmatprep.subr.mxu0 0.0
  %2363 = vmatpush1.msra.mxu0 %v2340
  %2364 = vmatprep.subr.mxu0 0.0
  %2365 = vmatpush1.msra.mxu0 %v2341
  %2366 = vmatprep.subr.mxu0 0.0
  %2367 = vmatpush1.msra.mxu0 %v2342
  %2368 = vmatprep.subr.mxu0 0.0
  %2369 = vmatpush1.msra.mxu0 %v2343
  %2370 = vmatprep.subr.mxu0 0.0
  %2371 = vmatpush1.msra.mxu0 %v2344
  %2372 = vmatprep.subr.mxu0 0.0
  %2373 = vmatpush1.msra.mxu0 %v2345
  %2374 = vmatprep.subr.mxu0 0.0
  %2375 = vmatpush1.msra.mxu0 %v2346
  %2376 = vmatprep.subr.mxu0 0.0
  %2377 = vmatpush1.msra.mxu0 %v2347
  %2378 = vmatprep.subr.mxu0 0.0
  %2379 = vmatpush1.msra.mxu0 %v2348
  %2380 = vmatprep.subr.mxu0 0.0
  %2381 = vmatpush1.msra.mxu0 %v2349
  %2382 = vmatprep.subr.mxu0 0.0
  %2383 = vmatpush1.msra.mxu0 %v2350
  %2384 = vmatprep.subr.mxu0 0.0
  %2385 = vmatpush1.msra.mxu0 %v2351
  %2386 = vmatprep.subr.mxu0 0.0
  %2387 = vmatpush1.msra.mxu0 %v2352
  %2388 = vmatprep.subr.mxu0 0.0
  %2389 = vmatpush1.msra.mxu0 %v2353
  %2390 = vmatprep.subr.mxu0 0.0
  %2391 = vmatpush1.msra.mxu0 0.0
  %2392 = vmatprep.subr.mxu0 0.0
  %2393 = vmatpush1.msra.mxu0 0.0
  %2394 = vmatprep.subr.mxu0 0.0
  %2395 = vmatpush1.msra.mxu0 0.0
  %2396 = vmatprep.subr.mxu0 0.0
  %2397 = vmatpush1.msra.mxu0 0.0
  %2398 = vmatprep.subr.mxu0 0.0
  %2399 = vmatpush1.msra.mxu0 0.0
  %2400 = vmatprep.subr.mxu0 0.0
  %2401 = vmatpush1.msra.mxu0 0.0
  %2402 = vmatprep.subr.mxu0 0.0
  %2403 = vmatpush1.msra.mxu0 0.0
  %2404 = vmatprep.subr.mxu0 0.0
  %2405 = vmatpush1.msra.mxu0 0.0
  %2406 = vmatprep.subr.mxu0 0.0
  %2407 = vmatpush1.msra.mxu0 0.0
  %2408 = vmatprep.subr.mxu0 0.0
  %2409 = vmatpush1.msra.mxu0 0.0
  %2410 = vmatprep.subr.mxu0 0.0
  %2411 = vmatpush1.msra.mxu0 0.0
  %2412 = vmatprep.subr.mxu0 0.0
  %2413 = vmatpush1.msra.mxu0 0.0
  %2414 = vmatprep.subr.mxu0 0.0
  %2415 = vmatpush1.msra.mxu0 0.0
  %2416 = vmatprep.subr.mxu0 0.0
  %2417 = vmatpush1.msra.mxu0 0.0
  %2418 = vmatprep.subr.mxu0 0.0
  %2419 = vmatpush1.msra.mxu0 0.0
  %2420 = vmatprep.subr.mxu0 0.0
  %2421 = vmatpush1.msra.mxu0 0.0
  %2422 = vmatprep.mubr.f32.mxu0 0.0
  %2423 = vmatmul.mubr.f32.gmra.mrb[0].mxu0 %v2356
  %v2424 = vpop.f32.mrb[0].mxu0
  %v2425 = vadd.f32 0.0, %v2424
  %v2426 = vpop.f32.mrb[0].mxu0
  %2427 = vdwg.mxu0
  %v2428 = vadd.f32 %v2336, %v2425
  %s2429 = scalar_lea.vmem %s3, 2304
  %v2430 = vld [vmem:[%s2429] sm:$0xff]
  %v2431 = vld [vmem:[%s2429 + $0x8] sm:$0xff]
  %v2432 = vld [vmem:[%s2429 + $0x10] sm:$0xff]
  %v2433 = vld [vmem:[%s2429 + $0x18] sm:$0xff]
  %v2434 = vld [vmem:[%s2429 + $0x20] sm:$0xff]
  %v2435 = vld [vmem:[%s2429 + $0x28] sm:$0xff]
  %v2436 = vld [vmem:[%s2429 + $0x30] sm:$0xff]
  %v2437 = vld [vmem:[%s2429 + $0x38] sm:$0xff]
  %v2438 = vld [vmem:[%s2429 + $0x40] sm:$0xff]
  %v2439 = vld [vmem:[%s2429 + $0x48] sm:$0xff]
  %v2440 = vld [vmem:[%s2429 + $0x50] sm:$0xff]
  %v2441 = vld [vmem:[%s2429 + $0x58] sm:$0xff]
  %v2442 = vld [vmem:[%s2429 + $0x60] sm:$0xff]
  %v2443 = vld [vmem:[%s2429 + $0x68] sm:$0xff]
  %v2444 = vld [vmem:[%s2429 + $0x70] sm:$0xff]
  %v2445 = vld [vmem:[%s2429 + $0x78] sm:$0xff]
  %v2446 = vrot.slane %v776, 2
  %v2447 = vsel %vm982, %v1720, %v2446
  %2449 = vmatprep.subr.mxu0 0.0
  %2450 = vmatpush1.msra.mxu0 %v2430
  %2451 = vmatprep.subr.mxu0 0.0
  %2452 = vmatpush1.msra.mxu0 %v2431
  %2453 = vmatprep.subr.mxu0 0.0
  %2454 = vmatpush1.msra.mxu0 %v2432
  %2455 = vmatprep.subr.mxu0 0.0
  %2456 = vmatpush1.msra.mxu0 %v2433
  %2457 = vmatprep.subr.mxu0 0.0
  %2458 = vmatpush1.msra.mxu0 %v2434
  %2459 = vmatprep.subr.mxu0 0.0
  %2460 = vmatpush1.msra.mxu0 %v2435
  %2461 = vmatprep.subr.mxu0 0.0
  %2462 = vmatpush1.msra.mxu0 %v2436
  %2463 = vmatprep.subr.mxu0 0.0
  %2464 = vmatpush1.msra.mxu0 %v2437
  %2465 = vmatprep.subr.mxu0 0.0
  %2466 = vmatpush1.msra.mxu0 %v2438
  %2467 = vmatprep.subr.mxu0 0.0
  %2468 = vmatpush1.msra.mxu0 %v2439
  %2469 = vmatprep.subr.mxu0 0.0
  %2470 = vmatpush1.msra.mxu0 %v2440
  %2471 = vmatprep.subr.mxu0 0.0
  %2472 = vmatpush1.msra.mxu0 %v2441
  %2473 = vmatprep.subr.mxu0 0.0
  %2474 = vmatpush1.msra.mxu0 %v2442
  %2475 = vmatprep.subr.mxu0 0.0
  %2476 = vmatpush1.msra.mxu0 %v2443
  %2477 = vmatprep.subr.mxu0 0.0
  %2478 = vmatpush1.msra.mxu0 %v2444
  %2479 = vmatprep.subr.mxu0 0.0
  %2480 = vmatpush1.msra.mxu0 %v2445
  %2481 = vmatprep.subr.mxu0 0.0
  %2482 = vmatpush1.msra.mxu0 0.0
  %2483 = vmatprep.subr.mxu0 0.0
  %2484 = vmatpush1.msra.mxu0 0.0
  %2485 = vmatprep.subr.mxu0 0.0
  %2486 = vmatpush1.msra.mxu0 0.0
  %2487 = vmatprep.subr.mxu0 0.0
  %2488 = vmatpush1.msra.mxu0 0.0
  %2489 = vmatprep.subr.mxu0 0.0
  %2490 = vmatpush1.msra.mxu0 0.0
  %2491 = vmatprep.subr.mxu0 0.0
  %2492 = vmatpush1.msra.mxu0 0.0
  %2493 = vmatprep.subr.mxu0 0.0
  %2494 = vmatpush1.msra.mxu0 0.0
  %2495 = vmatprep.subr.mxu0 0.0
  %2496 = vmatpush1.msra.mxu0 0.0
  %2497 = vmatprep.subr.mxu0 0.0
  %2498 = vmatpush1.msra.mxu0 0.0
  %2499 = vmatprep.subr.mxu0 0.0
  %2500 = vmatpush1.msra.mxu0 0.0
  %2501 = vmatprep.subr.mxu0 0.0
  %2502 = vmatpush1.msra.mxu0 0.0
  %2503 = vmatprep.subr.mxu0 0.0
  %2504 = vmatpush1.msra.mxu0 0.0
  %2505 = vmatprep.subr.mxu0 0.0
  %2506 = vmatpush1.msra.mxu0 0.0
  %2507 = vmatprep.subr.mxu0 0.0
  %2508 = vmatpush1.msra.mxu0 0.0
  %2509 = vmatprep.subr.mxu0 0.0
  %2510 = vmatpush1.msra.mxu0 0.0
  %2511 = vmatprep.subr.mxu0 0.0
  %2512 = vmatpush1.msra.mxu0 0.0
  %2513 = vmatprep.mubr.f32.mxu0 0.0
  %2514 = vmatmul.mubr.f32.gmra.mrb[0].mxu0 %v2447
  %v2515 = vpop.f32.mrb[0].mxu0
  %v2516 = vadd.f32 0.0, %v2515
  %v2517 = vpop.f32.mrb[0].mxu0
  %2518 = vdwg.mxu0
  %v2519 = vadd.f32 %v2428, %v2516
  %s2520 = scalar_lea.vmem %s3, 2432
  %v2521 = vld [vmem:[%s2520] sm:$0xff]
  %v2522 = vld [vmem:[%s2520 + $0x8] sm:$0xff]
  %v2523 = vld [vmem:[%s2520 + $0x10] sm:$0xff]
  %v2524 = vld [vmem:[%s2520 + $0x18] sm:$0xff]
  %v2525 = vld [vmem:[%s2520 + $0x20] sm:$0xff]
  %v2526 = vld [vmem:[%s2520 + $0x28] sm:$0xff]
  %v2527 = vld [vmem:[%s2520 + $0x30] sm:$0xff]
  %v2528 = vld [vmem:[%s2520 + $0x38] sm:$0xff]
  %v2529 = vld [vmem:[%s2520 + $0x40] sm:$0xff]
  %v2530 = vld [vmem:[%s2520 + $0x48] sm:$0xff]
  %v2531 = vld [vmem:[%s2520 + $0x50] sm:$0xff]
  %v2532 = vld [vmem:[%s2520 + $0x58] sm:$0xff]
  %v2533 = vld [vmem:[%s2520 + $0x60] sm:$0xff]
  %v2534 = vld [vmem:[%s2520 + $0x68] sm:$0xff]
  %v2535 = vld [vmem:[%s2520 + $0x70] sm:$0xff]
  %v2536 = vld [vmem:[%s2520 + $0x78] sm:$0xff]
  %v2537 = vrot.slane %v776, 3
  %v2538 = vsel %vm1075, %v1811, %v2537
  %2540 = vmatprep.subr.mxu0 0.0
  %2541 = vmatpush1.msra.mxu0 %v2521
  %2542 = vmatprep.subr.mxu0 0.0
  %2543 = vmatpush1.msra.mxu0 %v2522
  %2544 = vmatprep.subr.mxu0 0.0
  %2545 = vmatpush1.msra.mxu0 %v2523
  %2546 = vmatprep.subr.mxu0 0.0
  %2547 = vmatpush1.msra.mxu0 %v2524
  %2548 = vmatprep.subr.mxu0 0.0
  %2549 = vmatpush1.msra.mxu0 %v2525
  %2550 = vmatprep.subr.mxu0 0.0
  %2551 = vmatpush1.msra.mxu0 %v2526
  %2552 = vmatprep.subr.mxu0 0.0
  %2553 = vmatpush1.msra.mxu0 %v2527
  %2554 = vmatprep.subr.mxu0 0.0
  %2555 = vmatpush1.msra.mxu0 %v2528
  %2556 = vmatprep.subr.mxu0 0.0
  %2557 = vmatpush1.msra.mxu0 %v2529
  %2558 = vmatprep.subr.mxu0 0.0
  %2559 = vmatpush1.msra.mxu0 %v2530
  %2560 = vmatprep.subr.mxu0 0.0
  %2561 = vmatpush1.msra.mxu0 %v2531
  %2562 = vmatprep.subr.mxu0 0.0
  %2563 = vmatpush1.msra.mxu0 %v2532
  %2564 = vmatprep.subr.mxu0 0.0
  %2565 = vmatpush1.msra.mxu0 %v2533
  %2566 = vmatprep.subr.mxu0 0.0
  %2567 = vmatpush1.msra.mxu0 %v2534
  %2568 = vmatprep.subr.mxu0 0.0
  %2569 = vmatpush1.msra.mxu0 %v2535
  %2570 = vmatprep.subr.mxu0 0.0
  %2571 = vmatpush1.msra.mxu0 %v2536
  %2572 = vmatprep.subr.mxu0 0.0
  %2573 = vmatpush1.msra.mxu0 0.0
  %2574 = vmatprep.subr.mxu0 0.0
  %2575 = vmatpush1.msra.mxu0 0.0
  %2576 = vmatprep.subr.mxu0 0.0
  %2577 = vmatpush1.msra.mxu0 0.0
  %2578 = vmatprep.subr.mxu0 0.0
  %2579 = vmatpush1.msra.mxu0 0.0
  %2580 = vmatprep.subr.mxu0 0.0
  %2581 = vmatpush1.msra.mxu0 0.0
  %2582 = vmatprep.subr.mxu0 0.0
  %2583 = vmatpush1.msra.mxu0 0.0
  %2584 = vmatprep.subr.mxu0 0.0
  %2585 = vmatpush1.msra.mxu0 0.0
  %2586 = vmatprep.subr.mxu0 0.0
  %2587 = vmatpush1.msra.mxu0 0.0
  %2588 = vmatprep.subr.mxu0 0.0
  %2589 = vmatpush1.msra.mxu0 0.0
  %2590 = vmatprep.subr.mxu0 0.0
  %2591 = vmatpush1.msra.mxu0 0.0
  %2592 = vmatprep.subr.mxu0 0.0
  %2593 = vmatpush1.msra.mxu0 0.0
  %2594 = vmatprep.subr.mxu0 0.0
  %2595 = vmatpush1.msra.mxu0 0.0
  %2596 = vmatprep.subr.mxu0 0.0
  %2597 = vmatpush1.msra.mxu0 0.0
  %2598 = vmatprep.subr.mxu0 0.0
  %2599 = vmatpush1.msra.mxu0 0.0
  %2600 = vmatprep.subr.mxu0 0.0
  %2601 = vmatpush1.msra.mxu0 0.0
  %2602 = vmatprep.subr.mxu0 0.0
  %2603 = vmatpush1.msra.mxu0 0.0
  %2604 = vmatprep.mubr.f32.mxu0 0.0
  %2605 = vmatmul.mubr.f32.gmra.mrb[0].mxu0 %v2538
  %v2606 = vpop.f32.mrb[0].mxu0
  %v2607 = vadd.f32 0.0, %v2606
  %v2608 = vpop.f32.mrb[0].mxu0
  %2609 = vdwg.mxu0
  %v2610 = vadd.f32 %v2519, %v2607
  %s2611 = scalar_lea.vmem %s3, 2560
  %v2612 = vld [vmem:[%s2611] sm:$0xff]
  %v2613 = vld [vmem:[%s2611 + $0x8] sm:$0xff]
  %v2614 = vld [vmem:[%s2611 + $0x10] sm:$0xff]
  %v2615 = vld [vmem:[%s2611 + $0x18] sm:$0xff]
  %v2616 = vld [vmem:[%s2611 + $0x20] sm:$0xff]
  %v2617 = vld [vmem:[%s2611 + $0x28] sm:$0xff]
  %v2618 = vld [vmem:[%s2611 + $0x30] sm:$0xff]
  %v2619 = vld [vmem:[%s2611 + $0x38] sm:$0xff]
  %v2620 = vld [vmem:[%s2611 + $0x40] sm:$0xff]
  %v2621 = vld [vmem:[%s2611 + $0x48] sm:$0xff]
  %v2622 = vld [vmem:[%s2611 + $0x50] sm:$0xff]
  %v2623 = vld [vmem:[%s2611 + $0x58] sm:$0xff]
  %v2624 = vld [vmem:[%s2611 + $0x60] sm:$0xff]
  %v2625 = vld [vmem:[%s2611 + $0x68] sm:$0xff]
  %v2626 = vld [vmem:[%s2611 + $0x70] sm:$0xff]
  %v2627 = vld [vmem:[%s2611 + $0x78] sm:$0xff]
  %v2628 = vrot.slane %v776, 4
  %v2629 = vsel %vm1168, %v1902, %v2628
  %2631 = vmatprep.subr.mxu0 0.0
  %2632 = vmatpush1.msra.mxu0 %v2612
  %2633 = vmatprep.subr.mxu0 0.0
  %2634 = vmatpush1.msra.mxu0 %v2613
  %2635 = vmatprep.subr.mxu0 0.0
  %2636 = vmatpush1.msra.mxu0 %v2614
  %2637 = vmatprep.subr.mxu0 0.0
  %2638 = vmatpush1.msra.mxu0 %v2615
  %2639 = vmatprep.subr.mxu0 0.0
  %2640 = vmatpush1.msra.mxu0 %v2616
  %2641 = vmatprep.subr.mxu0 0.0
  %2642 = vmatpush1.msra.mxu0 %v2617
  %2643 = vmatprep.subr.mxu0 0.0
  %2644 = vmatpush1.msra.mxu0 %v2618
  %2645 = vmatprep.subr.mxu0 0.0
  %2646 = vmatpush1.msra.mxu0 %v2619
  %2647 = vmatprep.subr.mxu0 0.0
  %2648 = vmatpush1.msra.mxu0 %v2620
  %2649 = vmatprep.subr.mxu0 0.0
  %2650 = vmatpush1.msra.mxu0 %v2621
  %2651 = vmatprep.subr.mxu0 0.0
  %2652 = vmatpush1.msra.mxu0 %v2622
  %2653 = vmatprep.subr.mxu0 0.0
  %2654 = vmatpush1.msra.mxu0 %v2623
  %2655 = vmatprep.subr.mxu0 0.0
  %2656 = vmatpush1.msra.mxu0 %v2624
  %2657 = vmatprep.subr.mxu0 0.0
  %2658 = vmatpush1.msra.mxu0 %v2625
  %2659 = vmatprep.subr.mxu0 0.0
  %2660 = vmatpush1.msra.mxu0 %v2626
  %2661 = vmatprep.subr.mxu0 0.0
  %2662 = vmatpush1.msra.mxu0 %v2627
  %2663 = vmatprep.subr.mxu0 0.0
  %2664 = vmatpush1.msra.mxu0 0.0
  %2665 = vmatprep.subr.mxu0 0.0
  %2666 = vmatpush1.msra.mxu0 0.0
  %2667 = vmatprep.subr.mxu0 0.0
  %2668 = vmatpush1.msra.mxu0 0.0
  %2669 = vmatprep.subr.mxu0 0.0
  %2670 = vmatpush1.msra.mxu0 0.0
  %2671 = vmatprep.subr.mxu0 0.0
  %2672 = vmatpush1.msra.mxu0 0.0
  %2673 = vmatprep.subr.mxu0 0.0
  %2674 = vmatpush1.msra.mxu0 0.0
  %2675 = vmatprep.subr.mxu0 0.0
  %2676 = vmatpush1.msra.mxu0 0.0
  %2677 = vmatprep.subr.mxu0 0.0
  %2678 = vmatpush1.msra.mxu0 0.0
  %2679 = vmatprep.subr.mxu0 0.0
  %2680 = vmatpush1.msra.mxu0 0.0
  %2681 = vmatprep.subr.mxu0 0.0
  %2682 = vmatpush1.msra.mxu0 0.0
  %2683 = vmatprep.subr.mxu0 0.0
  %2684 = vmatpush1.msra.mxu0 0.0
  %2685 = vmatprep.subr.mxu0 0.0
  %2686 = vmatpush1.msra.mxu0 0.0
  %2687 = vmatprep.subr.mxu0 0.0
  %2688 = vmatpush1.msra.mxu0 0.0
  %2689 = vmatprep.subr.mxu0 0.0
  %2690 = vmatpush1.msra.mxu0 0.0
  %2691 = vmatprep.subr.mxu0 0.0
  %2692 = vmatpush1.msra.mxu0 0.0
  %2693 = vmatprep.subr.mxu0 0.0
  %2694 = vmatpush1.msra.mxu0 0.0
  %2695 = vmatprep.mubr.f32.mxu0 0.0
  %2696 = vmatmul.mubr.f32.gmra.mrb[0].mxu0 %v2629
  %v2697 = vpop.f32.mrb[0].mxu0
  %v2698 = vadd.f32 0.0, %v2697
  %v2699 = vpop.f32.mrb[0].mxu0
  %2700 = vdwg.mxu0
  %v2701 = vadd.f32 %v2610, %v2698
  %s2702 = scalar_lea.vmem %s3, 2688
  %v2703 = vld [vmem:[%s2702] sm:$0xff]
  %v2704 = vld [vmem:[%s2702 + $0x8] sm:$0xff]
  %v2705 = vld [vmem:[%s2702 + $0x10] sm:$0xff]
  %v2706 = vld [vmem:[%s2702 + $0x18] sm:$0xff]
  %v2707 = vld [vmem:[%s2702 + $0x20] sm:$0xff]
  %v2708 = vld [vmem:[%s2702 + $0x28] sm:$0xff]
  %v2709 = vld [vmem:[%s2702 + $0x30] sm:$0xff]
  %v2710 = vld [vmem:[%s2702 + $0x38] sm:$0xff]
  %v2711 = vld [vmem:[%s2702 + $0x40] sm:$0xff]
  %v2712 = vld [vmem:[%s2702 + $0x48] sm:$0xff]
  %v2713 = vld [vmem:[%s2702 + $0x50] sm:$0xff]
  %v2714 = vld [vmem:[%s2702 + $0x58] sm:$0xff]
  %v2715 = vld [vmem:[%s2702 + $0x60] sm:$0xff]
  %v2716 = vld [vmem:[%s2702 + $0x68] sm:$0xff]
  %v2717 = vld [vmem:[%s2702 + $0x70] sm:$0xff]
  %v2718 = vld [vmem:[%s2702 + $0x78] sm:$0xff]
  %v2719 = vrot.slane %v776, 5
  %v2720 = vsel %vm1261, %v1993, %v2719
  %2722 = vmatprep.subr.mxu0 0.0
  %2723 = vmatpush1.msra.mxu0 %v2703
  %2724 = vmatprep.subr.mxu0 0.0
  %2725 = vmatpush1.msra.mxu0 %v2704
  %2726 = vmatprep.subr.mxu0 0.0
  %2727 = vmatpush1.msra.mxu0 %v2705
  %2728 = vmatprep.subr.mxu0 0.0
  %2729 = vmatpush1.msra.mxu0 %v2706
  %2730 = vmatprep.subr.mxu0 0.0
  %2731 = vmatpush1.msra.mxu0 %v2707
  %2732 = vmatprep.subr.mxu0 0.0
  %2733 = vmatpush1.msra.mxu0 %v2708
  %2734 = vmatprep.subr.mxu0 0.0
  %2735 = vmatpush1.msra.mxu0 %v2709
  %2736 = vmatprep.subr.mxu0 0.0
  %2737 = vmatpush1.msra.mxu0 %v2710
  %2738 = vmatprep.subr.mxu0 0.0
  %2739 = vmatpush1.msra.mxu0 %v2711
  %2740 = vmatprep.subr.mxu0 0.0
  %2741 = vmatpush1.msra.mxu0 %v2712
  %2742 = vmatprep.subr.mxu0 0.0
  %2743 = vmatpush1.msra.mxu0 %v2713
  %2744 = vmatprep.subr.mxu0 0.0
  %2745 = vmatpush1.msra.mxu0 %v2714
  %2746 = vmatprep.subr.mxu0 0.0
  %2747 = vmatpush1.msra.mxu0 %v2715
  %2748 = vmatprep.subr.mxu0 0.0
  %2749 = vmatpush1.msra.mxu0 %v2716
  %2750 = vmatprep.subr.mxu0 0.0
  %2751 = vmatpush1.msra.mxu0 %v2717
  %2752 = vmatprep.subr.mxu0 0.0
  %2753 = vmatpush1.msra.mxu0 %v2718
  %2754 = vmatprep.subr.mxu0 0.0
  %2755 = vmatpush1.msra.mxu0 0.0
  %2756 = vmatprep.subr.mxu0 0.0
  %2757 = vmatpush1.msra.mxu0 0.0
  %2758 = vmatprep.subr.mxu0 0.0
  %2759 = vmatpush1.msra.mxu0 0.0
  %2760 = vmatprep.subr.mxu0 0.0
  %2761 = vmatpush1.msra.mxu0 0.0
  %2762 = vmatprep.subr.mxu0 0.0
  %2763 = vmatpush1.msra.mxu0 0.0
  %2764 = vmatprep.subr.mxu0 0.0
  %2765 = vmatpush1.msra.mxu0 0.0
  %2766 = vmatprep.subr.mxu0 0.0
  %2767 = vmatpush1.msra.mxu0 0.0
  %2768 = vmatprep.subr.mxu0 0.0
  %2769 = vmatpush1.msra.mxu0 0.0
  %2770 = vmatprep.subr.mxu0 0.0
  %2771 = vmatpush1.msra.mxu0 0.0
  %2772 = vmatprep.subr.mxu0 0.0
  %2773 = vmatpush1.msra.mxu0 0.0
  %2774 = vmatprep.subr.mxu0 0.0
  %2775 = vmatpush1.msra.mxu0 0.0
  %2776 = vmatprep.subr.mxu0 0.0
  %2777 = vmatpush1.msra.mxu0 0.0
  %2778 = vmatprep.subr.mxu0 0.0
  %2779 = vmatpush1.msra.mxu0 0.0
  %2780 = vmatprep.subr.mxu0 0.0
  %2781 = vmatpush1.msra.mxu0 0.0
  %2782 = vmatprep.subr.mxu0 0.0
  %2783 = vmatpush1.msra.mxu0 0.0
  %2784 = vmatprep.subr.mxu0 0.0
  %2785 = vmatpush1.msra.mxu0 0.0
  %2786 = vmatprep.mubr.f32.mxu0 0.0
  %2787 = vmatmul.mubr.f32.gmra.mrb[0].mxu0 %v2720
  %v2788 = vpop.f32.mrb[0].mxu0
  %v2789 = vadd.f32 0.0, %v2788
  %v2790 = vpop.f32.mrb[0].mxu0
  %2791 = vdwg.mxu0
  %v2792 = vadd.f32 %v2701, %v2789
  %s2793 = scalar_lea.vmem %s3, 2816
  %v2794 = vld [vmem:[%s2793] sm:$0xff]
  %v2795 = vld [vmem:[%s2793 + $0x8] sm:$0xff]
  %v2796 = vld [vmem:[%s2793 + $0x10] sm:$0xff]
  %v2797 = vld [vmem:[%s2793 + $0x18] sm:$0xff]
  %v2798 = vld [vmem:[%s2793 + $0x20] sm:$0xff]
  %v2799 = vld [vmem:[%s2793 + $0x28] sm:$0xff]
  %v2800 = vld [vmem:[%s2793 + $0x30] sm:$0xff]
  %v2801 = vld [vmem:[%s2793 + $0x38] sm:$0xff]
  %v2802 = vld [vmem:[%s2793 + $0x40] sm:$0xff]
  %v2803 = vld [vmem:[%s2793 + $0x48] sm:$0xff]
  %v2804 = vld [vmem:[%s2793 + $0x50] sm:$0xff]
  %v2805 = vld [vmem:[%s2793 + $0x58] sm:$0xff]
  %v2806 = vld [vmem:[%s2793 + $0x60] sm:$0xff]
  %v2807 = vld [vmem:[%s2793 + $0x68] sm:$0xff]
  %v2808 = vld [vmem:[%s2793 + $0x70] sm:$0xff]
  %v2809 = vld [vmem:[%s2793 + $0x78] sm:$0xff]
  %v2810 = vrot.slane %v776, 6
  %v2811 = vsel %vm1354, %v2084, %v2810
  %2813 = vmatprep.subr.mxu0 0.0
  %2814 = vmatpush1.msra.mxu0 %v2794
  %2815 = vmatprep.subr.mxu0 0.0
  %2816 = vmatpush1.msra.mxu0 %v2795
  %2817 = vmatprep.subr.mxu0 0.0
  %2818 = vmatpush1.msra.mxu0 %v2796
  %2819 = vmatprep.subr.mxu0 0.0
  %2820 = vmatpush1.msra.mxu0 %v2797
  %2821 = vmatprep.subr.mxu0 0.0
  %2822 = vmatpush1.msra.mxu0 %v2798
  %2823 = vmatprep.subr.mxu0 0.0
  %2824 = vmatpush1.msra.mxu0 %v2799
  %2825 = vmatprep.subr.mxu0 0.0
  %2826 = vmatpush1.msra.mxu0 %v2800
  %2827 = vmatprep.subr.mxu0 0.0
  %2828 = vmatpush1.msra.mxu0 %v2801
  %2829 = vmatprep.subr.mxu0 0.0
  %2830 = vmatpush1.msra.mxu0 %v2802
  %2831 = vmatprep.subr.mxu0 0.0
  %2832 = vmatpush1.msra.mxu0 %v2803
  %2833 = vmatprep.subr.mxu0 0.0
  %2834 = vmatpush1.msra.mxu0 %v2804
  %2835 = vmatprep.subr.mxu0 0.0
  %2836 = vmatpush1.msra.mxu0 %v2805
  %2837 = vmatprep.subr.mxu0 0.0
  %2838 = vmatpush1.msra.mxu0 %v2806
  %2839 = vmatprep.subr.mxu0 0.0
  %2840 = vmatpush1.msra.mxu0 %v2807
  %2841 = vmatprep.subr.mxu0 0.0
  %2842 = vmatpush1.msra.mxu0 %v2808
  %2843 = vmatprep.subr.mxu0 0.0
  %2844 = vmatpush1.msra.mxu0 %v2809
  %2845 = vmatprep.subr.mxu0 0.0
  %2846 = vmatpush1.msra.mxu0 0.0
  %2847 = vmatprep.subr.mxu0 0.0
  %2848 = vmatpush1.msra.mxu0 0.0
  %2849 = vmatprep.subr.mxu0 0.0
  %2850 = vmatpush1.msra.mxu0 0.0
  %2851 = vmatprep.subr.mxu0 0.0
  %2852 = vmatpush1.msra.mxu0 0.0
  %2853 = vmatprep.subr.mxu0 0.0
  %2854 = vmatpush1.msra.mxu0 0.0
  %2855 = vmatprep.subr.mxu0 0.0
  %2856 = vmatpush1.msra.mxu0 0.0
  %2857 = vmatprep.subr.mxu0 0.0
  %2858 = vmatpush1.msra.mxu0 0.0
  %2859 = vmatprep.subr.mxu0 0.0
  %2860 = vmatpush1.msra.mxu0 0.0
  %2861 = vmatprep.subr.mxu0 0.0
  %2862 = vmatpush1.msra.mxu0 0.0
  %2863 = vmatprep.subr.mxu0 0.0
  %2864 = vmatpush1.msra.mxu0 0.0
  %2865 = vmatprep.subr.mxu0 0.0
  %2866 = vmatpush1.msra.mxu0 0.0
  %2867 = vmatprep.subr.mxu0 0.0
  %2868 = vmatpush1.msra.mxu0 0.0
  %2869 = vmatprep.subr.mxu0 0.0
  %2870 = vmatpush1.msra.mxu0 0.0
  %2871 = vmatprep.subr.mxu0 0.0
  %2872 = vmatpush1.msra.mxu0 0.0
  %2873 = vmatprep.subr.mxu0 0.0
  %2874 = vmatpush1.msra.mxu0 0.0
  %2875 = vmatprep.subr.mxu0 0.0
  %2876 = vmatpush1.msra.mxu0 0.0
  %2877 = vmatprep.mubr.f32.mxu0 0.0
  %2878 = vmatmul.mubr.f32.gmra.mrb[0].mxu0 %v2811
  %v2879 = vpop.f32.mrb[0].mxu0
  %v2880 = vadd.f32 0.0, %v2879
  %v2881 = vpop.f32.mrb[0].mxu0
  %2882 = vdwg.mxu0
  %v2883 = vadd.f32 %v2792, %v2880
  %s2884 = scalar_lea.vmem %s3, 2944
  %v2885 = vld [vmem:[%s2884] sm:$0xff]
  %v2886 = vld [vmem:[%s2884 + $0x8] sm:$0xff]
  %v2887 = vld [vmem:[%s2884 + $0x10] sm:$0xff]
  %v2888 = vld [vmem:[%s2884 + $0x18] sm:$0xff]
  %v2889 = vld [vmem:[%s2884 + $0x20] sm:$0xff]
  %v2890 = vld [vmem:[%s2884 + $0x28] sm:$0xff]
  %v2891 = vld [vmem:[%s2884 + $0x30] sm:$0xff]
  %v2892 = vld [vmem:[%s2884 + $0x38] sm:$0xff]
  %v2893 = vld [vmem:[%s2884 + $0x40] sm:$0xff]
  %v2894 = vld [vmem:[%s2884 + $0x48] sm:$0xff]
  %v2895 = vld [vmem:[%s2884 + $0x50] sm:$0xff]
  %v2896 = vld [vmem:[%s2884 + $0x58] sm:$0xff]
  %v2897 = vld [vmem:[%s2884 + $0x60] sm:$0xff]
  %v2898 = vld [vmem:[%s2884 + $0x68] sm:$0xff]
  %v2899 = vld [vmem:[%s2884 + $0x70] sm:$0xff]
  %v2900 = vld [vmem:[%s2884 + $0x78] sm:$0xff]
  %v2901 = vrot.slane %v776, 7
  %v2902 = vsel %vm1447, %v2175, %v2901
  %2904 = vmatprep.subr.mxu0 0.0
  %2905 = vmatpush1.msra.mxu0 %v2885
  %2906 = vmatprep.subr.mxu0 0.0
  %2907 = vmatpush1.msra.mxu0 %v2886
  %2908 = vmatprep.subr.mxu0 0.0
  %2909 = vmatpush1.msra.mxu0 %v2887
  %2910 = vmatprep.subr.mxu0 0.0
  %2911 = vmatpush1.msra.mxu0 %v2888
  %2912 = vmatprep.subr.mxu0 0.0
  %2913 = vmatpush1.msra.mxu0 %v2889
  %2914 = vmatprep.subr.mxu0 0.0
  %2915 = vmatpush1.msra.mxu0 %v2890
  %2916 = vmatprep.subr.mxu0 0.0
  %2917 = vmatpush1.msra.mxu0 %v2891
  %2918 = vmatprep.subr.mxu0 0.0
  %2919 = vmatpush1.msra.mxu0 %v2892
  %2920 = vmatprep.subr.mxu0 0.0
  %2921 = vmatpush1.msra.mxu0 %v2893
  %2922 = vmatprep.subr.mxu0 0.0
  %2923 = vmatpush1.msra.mxu0 %v2894
  %2924 = vmatprep.subr.mxu0 0.0
  %2925 = vmatpush1.msra.mxu0 %v2895
  %2926 = vmatprep.subr.mxu0 0.0
  %2927 = vmatpush1.msra.mxu0 %v2896
  %2928 = vmatprep.subr.mxu0 0.0
  %2929 = vmatpush1.msra.mxu0 %v2897
  %2930 = vmatprep.subr.mxu0 0.0
  %2931 = vmatpush1.msra.mxu0 %v2898
  %2932 = vmatprep.subr.mxu0 0.0
  %2933 = vmatpush1.msra.mxu0 %v2899
  %2934 = vmatprep.subr.mxu0 0.0
  %2935 = vmatpush1.msra.mxu0 %v2900
  %2936 = vmatprep.subr.mxu0 0.0
  %2937 = vmatpush1.msra.mxu0 0.0
  %2938 = vmatprep.subr.mxu0 0.0
  %2939 = vmatpush1.msra.mxu0 0.0
  %2940 = vmatprep.subr.mxu0 0.0
  %2941 = vmatpush1.msra.mxu0 0.0
  %2942 = vmatprep.subr.mxu0 0.0
  %2943 = vmatpush1.msra.mxu0 0.0
  %2944 = vmatprep.subr.mxu0 0.0
  %2945 = vmatpush1.msra.mxu0 0.0
  %2946 = vmatprep.subr.mxu0 0.0
  %2947 = vmatpush1.msra.mxu0 0.0
  %2948 = vmatprep.subr.mxu0 0.0
  %2949 = vmatpush1.msra.mxu0 0.0
  %2950 = vmatprep.subr.mxu0 0.0
  %2951 = vmatpush1.msra.mxu0 0.0
  %2952 = vmatprep.subr.mxu0 0.0
  %2953 = vmatpush1.msra.mxu0 0.0
  %2954 = vmatprep.subr.mxu0 0.0
  %2955 = vmatpush1.msra.mxu0 0.0
  %2956 = vmatprep.subr.mxu0 0.0
  %2957 = vmatpush1.msra.mxu0 0.0
  %2958 = vmatprep.subr.mxu0 0.0
  %2959 = vmatpush1.msra.mxu0 0.0
  %2960 = vmatprep.subr.mxu0 0.0
  %2961 = vmatpush1.msra.mxu0 0.0
  %2962 = vmatprep.subr.mxu0 0.0
  %2963 = vmatpush1.msra.mxu0 0.0
  %2964 = vmatprep.subr.mxu0 0.0
  %2965 = vmatpush1.msra.mxu0 0.0
  %2966 = vmatprep.subr.mxu0 0.0
  %2967 = vmatpush1.msra.mxu0 0.0
  %2968 = vmatprep.mubr.f32.mxu0 0.0
  %2969 = vmatmul.mubr.f32.gmra.mrb[0].mxu0 %v2902
  %v2970 = vpop.f32.mrb[0].mxu0
  %v2971 = vadd.f32 0.0, %v2970
  %v2972 = vpop.f32.mrb[0].mxu0
  %2973 = vdwg.mxu0
  %v2974 = vadd.f32 %v2883, %v2971
  %s2975 = scalar_lea.vmem %s3, 3072
  %v2976 = vld [vmem:[%s2975] sm:$0xff]
  %v2977 = vld [vmem:[%s2975 + $0x8] sm:$0xff]
  %v2978 = vld [vmem:[%s2975 + $0x10] sm:$0xff]
  %v2979 = vld [vmem:[%s2975 + $0x18] sm:$0xff]
  %v2980 = vld [vmem:[%s2975 + $0x20] sm:$0xff]
  %v2981 = vld [vmem:[%s2975 + $0x28] sm:$0xff]
  %v2982 = vld [vmem:[%s2975 + $0x30] sm:$0xff]
  %v2983 = vld [vmem:[%s2975 + $0x38] sm:$0xff]
  %v2984 = vld [vmem:[%s2975 + $0x40] sm:$0xff]
  %v2985 = vld [vmem:[%s2975 + $0x48] sm:$0xff]
  %v2986 = vld [vmem:[%s2975 + $0x50] sm:$0xff]
  %v2987 = vld [vmem:[%s2975 + $0x58] sm:$0xff]
  %v2988 = vld [vmem:[%s2975 + $0x60] sm:$0xff]
  %v2989 = vld [vmem:[%s2975 + $0x68] sm:$0xff]
  %v2990 = vld [vmem:[%s2975 + $0x70] sm:$0xff]
  %v2991 = vld [vmem:[%s2975 + $0x78] sm:$0xff]
  %2992 = vmatprep.subr.mxu0 0.0
  %2993 = vmatpush1.msra.mxu0 %v2976
  %2994 = vmatprep.subr.mxu0 0.0
  %2995 = vmatpush1.msra.mxu0 %v2977
  %2996 = vmatprep.subr.mxu0 0.0
  %2997 = vmatpush1.msra.mxu0 %v2978
  %2998 = vmatprep.subr.mxu0 0.0
  %2999 = vmatpush1.msra.mxu0 %v2979
  %3000 = vmatprep.subr.mxu0 0.0
  %3001 = vmatpush1.msra.mxu0 %v2980
  %3002 = vmatprep.subr.mxu0 0.0
  %3003 = vmatpush1.msra.mxu0 %v2981
  %3004 = vmatprep.subr.mxu0 0.0
  %3005 = vmatpush1.msra.mxu0 %v2982
  %3006 = vmatprep.subr.mxu0 0.0
  %3007 = vmatpush1.msra.mxu0 %v2983
  %3008 = vmatprep.subr.mxu0 0.0
  %3009 = vmatpush1.msra.mxu0 %v2984
  %3010 = vmatprep.subr.mxu0 0.0
  %3011 = vmatpush1.msra.mxu0 %v2985
  %3012 = vmatprep.subr.mxu0 0.0
  %3013 = vmatpush1.msra.mxu0 %v2986
  %3014 = vmatprep.subr.mxu0 0.0
  %3015 = vmatpush1.msra.mxu0 %v2987
  %3016 = vmatprep.subr.mxu0 0.0
  %3017 = vmatpush1.msra.mxu0 %v2988
  %3018 = vmatprep.subr.mxu0 0.0
  %3019 = vmatpush1.msra.mxu0 %v2989
  %3020 = vmatprep.subr.mxu0 0.0
  %3021 = vmatpush1.msra.mxu0 %v2990
  %3022 = vmatprep.subr.mxu0 0.0
  %3023 = vmatpush1.msra.mxu0 %v2991
  %3024 = vmatprep.subr.mxu0 0.0
  %3025 = vmatpush1.msra.mxu0 0.0
  %3026 = vmatprep.subr.mxu0 0.0
  %3027 = vmatpush1.msra.mxu0 0.0
  %3028 = vmatprep.subr.mxu0 0.0
  %3029 = vmatpush1.msra.mxu0 0.0
  %3030 = vmatprep.subr.mxu0 0.0
  %3031 = vmatpush1.msra.mxu0 0.0
  %3032 = vmatprep.subr.mxu0 0.0
  %3033 = vmatpush1.msra.mxu0 0.0
  %3034 = vmatprep.subr.mxu0 0.0
  %3035 = vmatpush1.msra.mxu0 0.0
  %3036 = vmatprep.subr.mxu0 0.0
  %3037 = vmatpush1.msra.mxu0 0.0
  %3038 = vmatprep.subr.mxu0 0.0
  %3039 = vmatpush1.msra.mxu0 0.0
  %3040 = vmatprep.subr.mxu0 0.0
  %3041 = vmatpush1.msra.mxu0 0.0
  %3042 = vmatprep.subr.mxu0 0.0
  %3043 = vmatpush1.msra.mxu0 0.0
  %3044 = vmatprep.subr.mxu0 0.0
  %3045 = vmatpush1.msra.mxu0 0.0
  %3046 = vmatprep.subr.mxu0 0.0
  %3047 = vmatpush1.msra.mxu0 0.0
  %3048 = vmatprep.subr.mxu0 0.0
  %3049 = vmatpush1.msra.mxu0 0.0
  %3050 = vmatprep.subr.mxu0 0.0
  %3051 = vmatpush1.msra.mxu0 0.0
  %3052 = vmatprep.subr.mxu0 0.0
  %3053 = vmatpush1.msra.mxu0 0.0
  %3054 = vmatprep.subr.mxu0 0.0
  %3055 = vmatpush1.msra.mxu0 0.0
  %3056 = vmatprep.mubr.f32.mxu0 0.0
  %3057 = vmatmul.mubr.f32.gmra.mrb[0].mxu0 %v776
  %v3058 = vpop.f32.mrb[0].mxu0
  %v3059 = vadd.f32 0.0, %v3058
  %v3060 = vpop.f32.mrb[0].mxu0
  %3061 = vdwg.mxu0
  %v3062 = vadd.f32 %v2974, %v3059
  %v3063 = vld [vmem:[%s4] sm:$0x1]
  %v3064 = vadd.f32 %v3062, %v3063
  %3065 = vst [vmem:[%s6] sm:$0x1] %v3064
  // Predicated region
  $region22: #{model_forward.1} parent=0 // pred_check
    _
  $region23: #{model_forward.1} parent=0 // pred_check_branch
    %3067 = sbr.rel (0) target = $region25
  $region24: #{model_forward.1} parent=0 // pred_region
    _
  $region25: #{model_forward.1} parent=0 // pred_fallthru
    _
  // Predicated region
  $region26: #{model_forward.1} parent=0 // pred_check
    _
  $region27: #{model_forward.1} parent=0 // pred_check_branch
    %3069 = sbr.rel (0) target = $region29
  $region28: #{model_forward.1} parent=0 // pred_region
    _
  $region29: #{model_forward.1} parent=0 // pred_fallthru
    _
  // Predicated region
  $region30: #{model_forward.1} parent=0 // pred_check
    _
  $region31: #{model_forward.1} parent=0 // pred_check_branch
    %3071 = sbr.rel (0) target = $region33
  $region32: #{model_forward.1} parent=0 // pred_region
    _
  $region33: #{model_forward.1} parent=0 // pred_fallthru
    _
  // Predicated region
  $region34: #{model_forward.1} parent=0 // pred_check
    _
  $region35: #{model_forward.1} parent=0 // pred_check_branch
    %3073 = sbr.rel (0) target = $region37
  $region36: #{model_forward.1} parent=0 // pred_region
    _
  $region37: #{model_forward.1} parent=0 // pred_fallthru
    _

</llo_original>
